<compile_context>
chip_gen: v7x
topology: tpu7x:2x2x1
jax: 0.10.0
libtpu: 0.0.40
codegen_flags: <defaults>
</compile_context>

<pallas_src>
import functools

import jax
import jax.numpy as jnp
from jax import lax
from jax.experimental import pallas as pl
from jax.experimental.pallas import tpu as pltpu


def _speckle_ce_kernel(xm_ref, xt_ref, xb_ref, tm_ref, tt_ref, tb_ref,
                       out_ref,
                       tk_ref, ta_ref, sp_ref, nll_ref, cnt_ref,
                       *, num_classes, ignore_index, ksize, threshold):
    C = num_classes
    kh = ksize // 2
    inv_w = 1.0 / float(ksize * ksize - 1)        # off-centre conv weight
    win_area = float(ksize * ksize)

    chunk = pl.program_id(1)                      # H-chunk within the sample
    h = pl.program_id(2)                          # row band within the chunk
    nb = pl.num_programs(2)
    g = chunk * nb + h                            # global band index in image
    n_bands = pl.num_programs(1) * nb

    # ----------------------- chunk-start init (h == 0) ------------------------
    @pl.when(h == 0)
    def _init():
        sp_ref[...] = jnp.zeros_like(sp_ref)
        nll_ref[...] = jnp.zeros_like(nll_ref)
        cnt_ref[...] = jnp.zeros_like(cnt_ref)
        # Seed the carried top halo (kh rows immediately above this chunk).
        #   chunk == 0 : rows above the image -> keep = 0 (exactly the original
        #                constant-1.0 border pad: contributes 0 to the counts)
        #   chunk  > 0 : last kh rows of the 8-row HBM block above the chunk
        top_ok = (chunk > 0).astype(jnp.float32)
        keep_t = (tt_ref[0, 8 - kh:8, :] != ignore_index).astype(jnp.float32)
        mt = xt_ref[0, 0, 8 - kh:8, :].astype(jnp.float32)
        at = jnp.zeros_like(mt)
        for c in range(1, C):
            xc = xt_ref[0, c, 8 - kh:8, :].astype(jnp.float32)
            at = jnp.where(xc > mt, float(c), at)
            mt = jnp.maximum(mt, xc)
        tk_ref[...] = keep_t * top_ok
        ta_ref[...] = at

    # ------------------------------- main band --------------------------------
    tgt = tm_ref[0]                                               # (TH, W) int32
    keep = (tgt != ignore_index).astype(jnp.float32)
    TH, W = keep.shape
    row_idx = lax.broadcasted_iota(jnp.int32, (TH, W), 0)
    col_idx = lax.broadcasted_iota(jnp.int32, (TH, W), 1)

    top_keep = tk_ref[...]                                        # (kh, W)
    top_amax = ta_ref[...]                                        # (kh, W)

    bot_ok = (g < n_bands - 1).astype(jnp.float32)
    bot_keep = (tb_ref[0, 0:kh, :] != ignore_index).astype(jnp.float32) * bot_ok

    # pass 1: running max + first-occurrence argmax (band + bottom halo rows)
    m = xm_ref[0, 0].astype(jnp.float32)
    amax = jnp.zeros_like(m)
    mb = xb_ref[0, 0, 0:kh, :].astype(jnp.float32)
    amax_b = jnp.zeros_like(mb)
    for c in range(1, C):
        xc = xm_ref[0, c].astype(jnp.float32)
        amax = jnp.where(xc > m, float(c), amax)
        m = jnp.maximum(m, xc)
        xbc = xb_ref[0, c, 0:kh, :].astype(jnp.float32)
        amax_b = jnp.where(xbc > mb, float(c), amax_b)
        mb = jnp.maximum(mb, xbc)

    # Value-space separable ksize x ksize box sum: rolls on the XLU, adds on the
    # VALU, no scratch stores.  Zero fill outside the image is exactly the
    # original constant-1.0 spatial pad (which contributes 0 to these counts).
    def box_sum(top, mid, bot):
        r = mid
        for d in range(1, kh + 1):
            r = r + jnp.where(row_idx < TH - d,
                              pltpu.roll(mid, shift=(TH - d) % TH, axis=0), 0.0)
            r = r + jnp.where(row_idx >= d,
                              pltpu.roll(mid, shift=d % TH, axis=0), 0.0)
        for t in range(kh):
            r = r + jnp.where(row_idx <= t, top[t:t + 1, :], 0.0)
            r = r + jnp.where(row_idx >= TH - kh + t, bot[t:t + 1, :], 0.0)
        y = r
        for d in range(1, kh + 1):
            y = y + jnp.where(col_idx < W - d,
                              pltpu.roll(r, shift=W - d, axis=1), 0.0)
            y = y + jnp.where(col_idx >= d,
                              pltpu.roll(r, shift=d, axis=1), 0.0)
        return y

    box_k = box_sum(top_keep, keep, bot_keep)

    # pass 2 (streaming over classes, O(1) live slabs): softmax pieces, CE pick,
    # and the per-class speckle differential.  The class sum is accumulated
    # unnormalized (sum_c e_c * diff_c); the single softmax divide happens once.
    se = jnp.zeros_like(m)
    tot_u = jnp.zeros_like(m)
    picked = jnp.zeros_like(m)
    for c in range(C):
        xc = xm_ref[0, c].astype(jnp.float32)
        e_c = jnp.exp(xc - m)
        se = se + e_c
        # NOTE: targets outside [0, C) that are not ignore_index contribute a
        # picked logit of 0 (the reference clips); only matters for bad labels.
        picked = picked + jnp.where(tgt == c, xc, 0.0)
        a_c = jnp.where(amax == c, keep, 0.0)
        a_t = jnp.where(top_amax == c, top_keep, 0.0)
        a_b = jnp.where(amax_b == c, bot_keep, 0.0)
        box_a = box_sum(a_t, a_c, a_b)
        center = 1.0 + keep - a_c                     # "non_zero" at the centre
        win = win_area + box_k - box_a                # window sum of non_zero
        diff = (win - center) * inv_w - center
        diff = jnp.where(diff < threshold, 0.0, diff)
        tot_u = tot_u + e_c * diff

    inv_se = pl.reciprocal(se, approx=False)          # EUP slot
    speckle_band = tot_u * keep * inv_se
    logp_picked = picked - m - jnp.log(se)

    # deferred reduction: sublane-reduce per band, lane-reduce once at finalize
    sp_ref[...] = sp_ref[...] + jnp.sum(speckle_band, axis=0, keepdims=True)
    nll_ref[...] = nll_ref[...] + jnp.sum(-logp_picked * keep, axis=0,
                                          keepdims=True)
    cnt_ref[...] = cnt_ref[...] + jnp.sum(keep, axis=0, keepdims=True)

    # carry this band's bottom kh rows as the next band's top halo
    tk_ref[...] = keep[TH - kh:TH, :]
    ta_ref[...] = amax[TH - kh:TH, :]

    @pl.when(h == nb - 1)
    def _finalize():
        lane = lax.broadcasted_iota(jnp.int32, (1, 128), 1)
        sp = jnp.sum(sp_ref[...], axis=1, keepdims=True)
        nl = jnp.sum(nll_ref[...], axis=1, keepdims=True)
        ct = jnp.sum(cnt_ref[...], axis=1, keepdims=True)
        out_ref[0] = (jnp.where(lane == 0, sp, 0.0)
                      + jnp.where(lane == 1, nl, 0.0)
                      + jnp.where(lane == 2, ct, 0.0))


def _vmem_capacity_bytes():
    try:
        return int(pltpu.get_tpu_info().vmem_capacity_bytes)
    except Exception:                       # fallback if introspection missing
        return 64 * 1024 * 1024


def _pick_tile_rows(chunk_rows, num_classes, w, logit_itemsize):
    """Largest band height (multiple of 8 dividing chunk_rows) whose
    double-buffered working set fits a per-generation VMEM budget."""
    budget = int(0.40 * _vmem_capacity_bytes())
    # per band row: double-buffered logits + target blocks plus ~20 live (TH, W)
    # f32 intermediates of the streaming class loop.
    per_row = 2 * num_classes * w * logit_itemsize + 2 * w * 4 + 20 * w * 4
    # fixed: double-buffered 8-row halo blocks (top + bottom) + scratch slack.
    fixed = 4 * (num_classes * 8 * w * logit_itemsize + 8 * w * 4) + (1 << 20)
    best = 8
    for t in range(8, min(chunk_rows, 512) + 1, 8):
        if chunk_rows % t == 0 and t * per_row + fixed <= budget:
            best = t
    return best


def ce_speckle_loss(logits, target, *, ignore_index=255, ce_ratio=0.6,
                    kernel_size=5, scale_factor=0.0001, threshold=None,
                    n_chunks=None):
    """Forward pass of CE_SpeckleLoss.

    logits: (N, C, H, W) float (f32 or bf16); target: (N, H, W) int.
    Returns (total_loss, ce_loss, speckle_loss).
    """
    assert kernel_size % 2 == 1 and kernel_size >= 3
    kh = kernel_size // 2
    assert kh <= 8, "8-row halo blocks limit kernel_size to <= 17"
    N, C, H, W = logits.shape
    assert W >= kernel_size and H >= 8
    if threshold is None:
        threshold = (kernel_size ** 2 - kernel_size) * (1.0 / (kernel_size ** 2 - 1))

    target = target.astype(jnp.int32)

    if H % 8 == 0:
        if n_chunks is None:
            # use both v7x TensorCores even when the batch alone can't
            n_chunks = 1 if N >= 2 else (2 if (H // 8) % 2 == 0 else 1)
        assert (H // 8) % n_chunks == 0, "n_chunks must divide H/8"
        chunk_rows = H // n_chunks
        TH = _pick_tile_rows(chunk_rows, C, W, logits.dtype.itemsize)
        hb = TH // 8
        bands = chunk_rows // TH
        last_hb = H // 8 - 1

        def top_l(n, ck, h): return (n, 0, jnp.maximum(ck * bands * hb - 1, 0), 0)
        def top_t(n, ck, h): return (n, jnp.maximum(ck * bands * hb - 1, 0), 0)
        def bot_l(n, ck, h): return (n, 0, jnp.minimum((ck * bands + h + 1) * hb, last_hb), 0)
        def bot_t(n, ck, h): return (n, jnp.minimum((ck * bands + h + 1) * hb, last_hb), 0)
    else:
        # H not a multiple of 8: one full-height band per sample (block dims ==
        # array dims) -- avoids any host-side pad copy of the logits.
        n_chunks, TH, bands = 1, H, 1

        def top_l(n, ck, h): return (n, 0, 0, 0)
        def top_t(n, ck, h): return (n, 0, 0)
        def bot_l(n, ck, h): return (n, 0, 0, 0)
        def bot_t(n, ck, h): return (n, 0, 0)

    def main_l(n, ck, h): return (n, 0, ck * bands + h, 0)
    def main_t(n, ck, h): return (n, ck * bands + h, 0)
    def out_map(n, ck, h): return (n * n_chunks + ck, 0, 0)

    kernel = functools.partial(
        _speckle_ce_kernel, num_classes=C, ignore_index=ignore_index,
        ksize=kernel_size, threshold=float(threshold))

    bytes_in = (logits.size * logits.dtype.itemsize + target.size * 4)
    cost = pl.CostEstimate(
        flops=int(45 * N * C * H * W),
        transcendentals=int(N * (C + 2) * H * W),
        bytes_accessed=int(bytes_in + N * n_chunks * 128 * 4))

    out = pl.pallas_call(
        kernel,
        out_shape=jax.ShapeDtypeStruct((N * n_chunks, 1, 128), jnp.float32),
        grid_spec=pltpu.PrefetchScalarGridSpec(
            num_scalar_prefetch=0,
            grid=(N, n_chunks, bands),
            in_specs=[
                # main row band of logits
                pl.BlockSpec((1, C, TH, W), main_l),
                # 8-row block above the chunk (constant per chunk -> fetched once)
                pl.BlockSpec((1, C, 8, W), top_l),
                # 8-row block below the current band (first kh rows used)
                pl.BlockSpec((1, C, 8, W), bot_l),
                # same tiling for the target map
                pl.BlockSpec((1, TH, W), main_t),
                pl.BlockSpec((1, 8, W), top_t),
                pl.BlockSpec((1, 8, W), bot_t),
            ],
            out_specs=pl.BlockSpec((1, 1, 128), out_map),
            scratch_shapes=[
                pltpu.VMEM((kh, W), jnp.float32),   # carried top-halo keep mask
                pltpu.VMEM((kh, W), jnp.float32),   # carried top-halo argmax idx
                pltpu.VMEM((1, W), jnp.float32),    # speckle partial (per lane)
                pltpu.VMEM((1, W), jnp.float32),    # nll partial
                pltpu.VMEM((1, W), jnp.float32),    # valid-pixel count partial
            ],
        ),
        compiler_params=pltpu.CompilerParams(
            dimension_semantics=("parallel", "parallel", "arbitrary"),
            vmem_limit_bytes=int(0.9 * _vmem_capacity_bytes())),
        cost_estimate=cost,
    )(logits, logits, logits, target, target, target)

    out = out.reshape(N, n_chunks, 128).sum(axis=1)     # sum H-chunk partials
    sp_sum, nll, cnt = out[:, 0], out[:, 1], out[:, 2]
    speckle_loss = scale_factor * jnp.mean(sp_sum)
    ce_loss = jnp.sum(nll) / jnp.sum(cnt)
    total = ce_ratio * ce_loss + (1.0 - ce_ratio) * speckle_loss
    return total, ce_loss, speckle_loss


def reference(logits, target, *, ignore_index=255, ce_ratio=0.6, kernel_size=5,
              scale_factor=0.0001, threshold=None):
    """Pure-JAX transcription of the PyTorch forward, for verification."""
    if threshold is None:
        threshold = (kernel_size ** 2 - kernel_size) * (1.0 / (kernel_size ** 2 - 1))
    N, C, H, W = logits.shape
    kh = kernel_size // 2

    mask = target != ignore_index                        # (N, H, W)
    mask_c = mask[:, None, :, :]                         # (N, 1, H, W)

    probs = jax.nn.softmax(logits, axis=1)
    am = jnp.argmax(probs, axis=1)
    one_hot = jax.nn.one_hot(am, C, axis=1, dtype=jnp.float32)
    one_hot = one_hot * mask_c + (~mask_c).astype(jnp.float32)
    non_zero = jnp.where(one_hot == 0.0, 2.0, one_hot)
    padded = jnp.pad(non_zero, ((0, 0), (0, 0), (kh, kh), (kh, kh)),
                     constant_values=1.0)
    kern = jnp.full((C, 1, kernel_size, kernel_size),
                    1.0 / (kernel_size ** 2 - 1), jnp.float32)
    kern = kern.at[:, :, kh, kh].set(-1.0)
    diff = lax.conv_general_dilated(
        padded, kern, window_strides=(1, 1), padding='VALID',
        dimension_numbers=('NCHW', 'OIHW', 'NCHW'), feature_group_count=C)
    diff = jnp.where(diff < threshold, 0.0, diff)
    diff = probs * diff * mask_c
    speckle = scale_factor * jnp.mean(jnp.sum(diff, axis=(1, 2, 3)))

    logp = jax.nn.log_softmax(logits, axis=1)
    t_clip = jnp.clip(target, 0, C - 1)
    picked = jnp.take_along_axis(logp, t_clip[:, None, :, :], axis=1)[:, 0]
    ce = -(picked * mask).sum() / mask.sum()
    total = ce_ratio * ce + (1.0 - ce_ratio) * speckle
    return total, ce, speckle


if __name__ == "__main__":
    key = jax.random.PRNGKey(0)
    k1, k2 = jax.random.split(key)
    N, C, H, W = 2, 4, 16, 16

    logits = jax.random.normal(k1, (N, C, H, W), dtype=jnp.float32)
    target = jax.random.randint(k2, (N, H, W), 0, C, dtype=jnp.int32)
    target = target.at[:, :3, :].set(255)          # exercise ignore_index

    # (a) explicitly chosen threshold -> well-conditioned comparison, tight check.
    #     (the module's default threshold (k^2-k)/(k^2-1) lies exactly on an
    #     attainable differential value, so its classification there is
    #     rounding-order dependent even in the original PyTorch code.)
    tot, ce, sp = ce_speckle_loss(logits, target, threshold=0.8)
    tot = jax.block_until_ready(tot)
    r_tot, r_ce, r_sp = reference(logits, target, threshold=0.8)
    assert jnp.allclose(ce, r_ce, rtol=1e-5, atol=1e-5), (float(ce), float(r_ce))
    assert jnp.allclose(sp, r_sp, rtol=1e-4, atol=1e-7), (float(sp), float(r_sp))
    assert jnp.allclose(tot, r_tot, rtol=1e-5, atol=1e-5), (float(tot), float(r_tot))

    # (b) default threshold -> loose sanity check only (see note above).
    tot_d, _, _ = ce_speckle_loss(logits, target)
    tot_d = jax.block_until_ready(tot_d)
    r_tot_d, _, _ = reference(logits, target)
    assert jnp.isfinite(tot_d)
    assert jnp.allclose(tot_d, r_tot_d, rtol=1e-3, atol=1e-2), (float(tot_d), float(r_tot_d))

    # (c) N == 1 -> automatic H-chunk split (2 parallel chunks for v7x's two
    #     TensorCores); exercises the chunk-boundary top-halo path.
    tot1, ce1, sp1 = ce_speckle_loss(logits[:1], target[:1], threshold=0.8)
    tot1 = jax.block_until_ready(tot1)
    r_tot1, r_ce1, r_sp1 = reference(logits[:1], target[:1], threshold=0.8)
    assert jnp.allclose(ce1, r_ce1, rtol=1e-5, atol=1e-5), (float(ce1), float(r_ce1))
    assert jnp.allclose(sp1, r_sp1, rtol=1e-4, atol=1e-7), (float(sp1), float(r_sp1))
    assert jnp.allclose(tot1, r_tot1, rtol=1e-5, atol=1e-5), (float(tot1), float(r_tot1))

    print("KERNEL_OK")
</pallas_src>

<mosaic_0001>
module attributes {stable_mosaic.version = 11 : i64} {
  func.func @_speckle_ce_kernel(%arg0: i32, %arg1: i32, %arg2: i32, %arg3: memref<1x4x16x16xf32, #tpu.memory_space<vmem>>, %arg4: memref<1x4x8x16xf32, #tpu.memory_space<vmem>>, %arg5: memref<1x4x8x16xf32, #tpu.memory_space<vmem>>, %arg6: memref<1x16x16xi32, #tpu.memory_space<vmem>>, %arg7: memref<1x8x16xi32, #tpu.memory_space<vmem>>, %arg8: memref<1x8x16xi32, #tpu.memory_space<vmem>>, %arg9: memref<1x1x128xf32, #tpu.memory_space<vmem>>, %arg10: memref<2x16xf32, #tpu.memory_space<vmem>>, %arg11: memref<2x16xf32, #tpu.memory_space<vmem>>, %arg12: memref<1x16xf32, #tpu.memory_space<vmem>>, %arg13: memref<1x16xf32, #tpu.memory_space<vmem>>, %arg14: memref<1x16xf32, #tpu.memory_space<vmem>>) attributes {dimension_semantics = [#tpu.dimension_semantics<parallel>, #tpu.dimension_semantics<parallel>, #tpu.dimension_semantics<arbitrary>], iteration_bounds = array<i64: 2, 1, 1>, scalar_prefetch = 0 : i64, scratch_operands = 5 : i64, tpu.core_type = #tpu.core_type<tc>, window_params = [{transform_indices = @transform_0, window_bounds = array<i64: 1, 4, 16, 16>}, {transform_indices = @transform_1, window_bounds = array<i64: 1, 4, 8, 16>}, {transform_indices = @transform_2, window_bounds = array<i64: 1, 4, 8, 16>}, {transform_indices = @transform_3, window_bounds = array<i64: 1, 16, 16>}, {transform_indices = @transform_4, window_bounds = array<i64: 1, 8, 16>}, {transform_indices = @transform_5, window_bounds = array<i64: 1, 8, 16>}, {transform_indices = @transform_6, window_bounds = array<i64: 1, 1, 128>}]} {
    %c1_i32 = arith.constant 1 : i32
    %0 = arith.muli %arg1, %c1_i32 : i32
    %1 = arith.addi %0, %arg2 : i32
    %c0_i32 = arith.constant 0 : i32
    %2 = arith.cmpi eq, %arg2, %c0_i32 : i32
    %3 = arith.extui %2 : i1 to i32
    %c0_i32_0 = arith.constant 0 : i32
    %4 = arith.cmpi ne, %3, %c0_i32_0 : i32
    scf.if %4 {
      %cst_297 = arith.constant 0.000000e+00 : f32
      %653 = vector.broadcast %cst_297 : f32 to vector<1x16xf32>
      %c0_298 = arith.constant 0 : index
      %c0_299 = arith.constant 0 : index
      %654 = vector.load %arg12[%c0_298, %c0_299] : memref<1x16xf32, #tpu.memory_space<vmem>>, vector<1x16xf32>
      tpu.vector_store %arg12[%c0_298, %c0_299], %653 {strides = array<i32>} : memref<1x16xf32, #tpu.memory_space<vmem>>, vector<1x16xf32>,
      %cst_300 = arith.constant 0.000000e+00 : f32
      %655 = vector.broadcast %cst_300 : f32 to vector<1x16xf32>
      %c0_301 = arith.constant 0 : index
      %c0_302 = arith.constant 0 : index
      %656 = vector.load %arg13[%c0_301, %c0_302] : memref<1x16xf32, #tpu.memory_space<vmem>>, vector<1x16xf32>
      tpu.vector_store %arg13[%c0_301, %c0_302], %655 {strides = array<i32>} : memref<1x16xf32, #tpu.memory_space<vmem>>, vector<1x16xf32>,
      %cst_303 = arith.constant 0.000000e+00 : f32
      %657 = vector.broadcast %cst_303 : f32 to vector<1x16xf32>
      %c0_304 = arith.constant 0 : index
      %c0_305 = arith.constant 0 : index
      %658 = vector.load %arg14[%c0_304, %c0_305] : memref<1x16xf32, #tpu.memory_space<vmem>>, vector<1x16xf32>
      tpu.vector_store %arg14[%c0_304, %c0_305], %657 {strides = array<i32>} : memref<1x16xf32, #tpu.memory_space<vmem>>, vector<1x16xf32>,
      %c0_i32_306 = arith.constant 0 : i32
      %659 = arith.cmpi sgt, %arg1, %c0_i32_306 : i32
      %660 = arith.extui %659 : i1 to i32
      %661 = arith.sitofp %660 : i32 to f32
      %c0_307 = arith.constant 0 : index
      %c6 = arith.constant 6 : index
      %c0_308 = arith.constant 0 : index
      %662 = vector.load %arg7[%c0_307, %c6, %c0_308] : memref<1x8x16xi32, #tpu.memory_space<vmem>>, vector<1x2x16xi32>
      %663 = vector.shape_cast %662 : vector<1x2x16xi32> to vector<2x16xi32>
      %c255_i32_309 = arith.constant 255 : i32
      %664 = vector.broadcast %c255_i32_309 : i32 to vector<2x16xi32>
      %665 = arith.cmpi ne, %663, %664 : vector<2x16xi32>
      %666 = arith.extui %665 : vector<2x16xi1> to vector<2x16xi32>
      %667 = arith.sitofp %666 : vector<2x16xi32> to vector<2x16xf32>
      %c0_310 = arith.constant 0 : index
      %c0_311 = arith.constant 0 : index
      %c6_312 = arith.constant 6 : index
      %c0_313 = arith.constant 0 : index
      %668 = vector.load %arg4[%c0_310, %c0_311, %c6_312, %c0_313] : memref<1x4x8x16xf32, #tpu.memory_space<vmem>>, vector<1x1x2x16xf32>
      %669 = vector.shape_cast %668 : vector<1x1x2x16xf32> to vector<2x16xf32>
      %cst_314 = arith.constant 0.000000e+00 : f32
      %670 = vector.broadcast %cst_314 : f32 to vector<2x16xf32>
      %c0_315 = arith.constant 0 : index
      %c1_316 = arith.constant 1 : index
      %c6_317 = arith.constant 6 : index
      %c0_318 = arith.constant 0 : index
      %671 = vector.load %arg4[%c0_315, %c1_316, %c6_317, %c0_318] : memref<1x4x8x16xf32, #tpu.memory_space<vmem>>, vector<1x1x2x16xf32>
      %672 = vector.shape_cast %671 : vector<1x1x2x16xf32> to vector<2x16xf32>
      %673 = arith.cmpf ogt, %672, %669 : vector<2x16xf32>
      %cst_319 = arith.constant 1.000000e+00 : f32
      %674 = vector.broadcast %cst_319 : f32 to vector<2x16xf32>
      %675 = arith.select %673, %674, %670 : vector<2x16xi1>, vector<2x16xf32>
      %676 = arith.maximumf %669, %672 : vector<2x16xf32>
      %c0_320 = arith.constant 0 : index
      %c2_321 = arith.constant 2 : index
      %c6_322 = arith.constant 6 : index
      %c0_323 = arith.constant 0 : index
      %677 = vector.load %arg4[%c0_320, %c2_321, %c6_322, %c0_323] : memref<1x4x8x16xf32, #tpu.memory_space<vmem>>, vector<1x1x2x16xf32>
      %678 = vector.shape_cast %677 : vector<1x1x2x16xf32> to vector<2x16xf32>
      %679 = arith.cmpf ogt, %678, %676 : vector<2x16xf32>
      %cst_324 = arith.constant 2.000000e+00 : f32
      %680 = vector.broadcast %cst_324 : f32 to vector<2x16xf32>
      %681 = arith.select %679, %680, %675 : vector<2x16xi1>, vector<2x16xf32>
      %682 = arith.maximumf %676, %678 : vector<2x16xf32>
      %c0_325 = arith.constant 0 : index
      %c3_326 = arith.constant 3 : index
      %c6_327 = arith.constant 6 : index
      %c0_328 = arith.constant 0 : index
      %683 = vector.load %arg4[%c0_325, %c3_326, %c6_327, %c0_328] : memref<1x4x8x16xf32, #tpu.memory_space<vmem>>, vector<1x1x2x16xf32>
      %684 = vector.shape_cast %683 : vector<1x1x2x16xf32> to vector<2x16xf32>
      %685 = arith.cmpf ogt, %684, %682 : vector<2x16xf32>
      %cst_329 = arith.constant 3.000000e+00 : f32
      %686 = vector.broadcast %cst_329 : f32 to vector<2x16xf32>
      %687 = arith.select %685, %686, %681 : vector<2x16xi1>, vector<2x16xf32>
      %688 = vector.broadcast %661 : f32 to vector<2x16xf32>
      %689 = arith.mulf %667, %688 : vector<2x16xf32>
      %c0_330 = arith.constant 0 : index
      %c0_331 = arith.constant 0 : index
      %690 = vector.load %arg10[%c0_330, %c0_331] : memref<2x16xf32, #tpu.memory_space<vmem>>, vector<2x16xf32>
      tpu.vector_store %arg10[%c0_330, %c0_331], %689 {strides = array<i32>} : memref<2x16xf32, #tpu.memory_space<vmem>>, vector<2x16xf32>,
      %c0_332 = arith.constant 0 : index
      %c0_333 = arith.constant 0 : index
      %691 = vector.load %arg11[%c0_332, %c0_333] : memref<2x16xf32, #tpu.memory_space<vmem>>, vector<2x16xf32>
      tpu.vector_store %arg11[%c0_332, %c0_333], %687 {strides = array<i32>} : memref<2x16xf32, #tpu.memory_space<vmem>>, vector<2x16xf32>,
    } else {
    }
    %c0 = arith.constant 0 : index
    %c0_1 = arith.constant 0 : index
    %c0_2 = arith.constant 0 : index
    %5 = vector.load %arg6[%c0, %c0_1, %c0_2] : memref<1x16x16xi32, #tpu.memory_space<vmem>>, vector<1x16x16xi32>
    %6 = vector.shape_cast %5 : vector<1x16x16xi32> to vector<16x16xi32>
    %c255_i32 = arith.constant 255 : i32
    %7 = vector.broadcast %c255_i32 : i32 to vector<16x16xi32>
    %8 = arith.cmpi ne, %6, %7 : vector<16x16xi32>
    %9 = arith.extui %8 : vector<16x16xi1> to vector<16x16xi32>
    %10 = arith.sitofp %9 : vector<16x16xi32> to vector<16x16xf32>
    %11 = tpu.iota {dimensions = array<i32: 0>} : vector<16x16xi32>
    %12 = tpu.iota {dimensions = array<i32: 1>} : vector<16x16xi32>
    %c0_3 = arith.constant 0 : index
    %c0_4 = arith.constant 0 : index
    %13 = vector.load %arg10[%c0_3, %c0_4] : memref<2x16xf32, #tpu.memory_space<vmem>>, vector<2x16xf32>
    %c0_5 = arith.constant 0 : index
    %c0_6 = arith.constant 0 : index
    %14 = vector.load %arg11[%c0_5, %c0_6] : memref<2x16xf32, #tpu.memory_space<vmem>>, vector<2x16xf32>
    %c0_i32_7 = arith.constant 0 : i32
    %15 = arith.cmpi slt, %1, %c0_i32_7 : i32
    %16 = arith.extui %15 : i1 to i32
    %17 = arith.sitofp %16 : i32 to f32
    %c0_8 = arith.constant 0 : index
    %c0_9 = arith.constant 0 : index
    %c0_10 = arith.constant 0 : index
    %18 = vector.load %arg8[%c0_8, %c0_9, %c0_10] : memref<1x8x16xi32, #tpu.memory_space<vmem>>, vector<1x2x16xi32>
    %19 = vector.shape_cast %18 : vector<1x2x16xi32> to vector<2x16xi32>
    %c255_i32_11 = arith.constant 255 : i32
    %20 = vector.broadcast %c255_i32_11 : i32 to vector<2x16xi32>
    %21 = arith.cmpi ne, %19, %20 : vector<2x16xi32>
    %22 = arith.extui %21 : vector<2x16xi1> to vector<2x16xi32>
    %23 = arith.sitofp %22 : vector<2x16xi32> to vector<2x16xf32>
    %24 = vector.broadcast %17 : f32 to vector<2x16xf32>
    %25 = arith.mulf %23, %24 : vector<2x16xf32>
    %c0_12 = arith.constant 0 : index
    %c0_13 = arith.constant 0 : index
    %c0_14 = arith.constant 0 : index
    %c0_15 = arith.constant 0 : index
    %26 = vector.load %arg3[%c0_12, %c0_13, %c0_14, %c0_15] : memref<1x4x16x16xf32, #tpu.memory_space<vmem>>, vector<1x1x16x16xf32>
    %27 = vector.shape_cast %26 : vector<1x1x16x16xf32> to vector<16x16xf32>
    %cst = arith.constant 0.000000e+00 : f32
    %28 = vector.broadcast %cst : f32 to vector<16x16xf32>
    %c0_16 = arith.constant 0 : index
    %c0_17 = arith.constant 0 : index
    %c0_18 = arith.constant 0 : index
    %c0_19 = arith.constant 0 : index
    %29 = vector.load %arg5[%c0_16, %c0_17, %c0_18, %c0_19] : memref<1x4x8x16xf32, #tpu.memory_space<vmem>>, vector<1x1x2x16xf32>
    %30 = vector.shape_cast %29 : vector<1x1x2x16xf32> to vector<2x16xf32>
    %cst_20 = arith.constant 0.000000e+00 : f32
    %31 = vector.broadcast %cst_20 : f32 to vector<2x16xf32>
    %c0_21 = arith.constant 0 : index
    %c1 = arith.constant 1 : index
    %c0_22 = arith.constant 0 : index
    %c0_23 = arith.constant 0 : index
    %32 = vector.load %arg3[%c0_21, %c1, %c0_22, %c0_23] : memref<1x4x16x16xf32, #tpu.memory_space<vmem>>, vector<1x1x16x16xf32>
    %33 = vector.shape_cast %32 : vector<1x1x16x16xf32> to vector<16x16xf32>
    %34 = arith.cmpf ogt, %33, %27 : vector<16x16xf32>
    %cst_24 = arith.constant 1.000000e+00 : f32
    %35 = vector.broadcast %cst_24 : f32 to vector<16x16xf32>
    %36 = arith.select %34, %35, %28 : vector<16x16xi1>, vector<16x16xf32>
    %37 = arith.maximumf %27, %33 : vector<16x16xf32>
    %c0_25 = arith.constant 0 : index
    %c1_26 = arith.constant 1 : index
    %c0_27 = arith.constant 0 : index
    %c0_28 = arith.constant 0 : index
    %38 = vector.load %arg5[%c0_25, %c1_26, %c0_27, %c0_28] : memref<1x4x8x16xf32, #tpu.memory_space<vmem>>, vector<1x1x2x16xf32>
    %39 = vector.shape_cast %38 : vector<1x1x2x16xf32> to vector<2x16xf32>
    %40 = arith.cmpf ogt, %39, %30 : vector<2x16xf32>
    %cst_29 = arith.constant 1.000000e+00 : f32
    %41 = vector.broadcast %cst_29 : f32 to vector<2x16xf32>
    %42 = arith.select %40, %41, %31 : vector<2x16xi1>, vector<2x16xf32>
    %43 = arith.maximumf %30, %39 : vector<2x16xf32>
    %c0_30 = arith.constant 0 : index
    %c2 = arith.constant 2 : index
    %c0_31 = arith.constant 0 : index
    %c0_32 = arith.constant 0 : index
    %44 = vector.load %arg3[%c0_30, %c2, %c0_31, %c0_32] : memref<1x4x16x16xf32, #tpu.memory_space<vmem>>, vector<1x1x16x16xf32>
    %45 = vector.shape_cast %44 : vector<1x1x16x16xf32> to vector<16x16xf32>
    %46 = arith.cmpf ogt, %45, %37 : vector<16x16xf32>
    %cst_33 = arith.constant 2.000000e+00 : f32
    %47 = vector.broadcast %cst_33 : f32 to vector<16x16xf32>
    %48 = arith.select %46, %47, %36 : vector<16x16xi1>, vector<16x16xf32>
    %49 = arith.maximumf %37, %45 : vector<16x16xf32>
    %c0_34 = arith.constant 0 : index
    %c2_35 = arith.constant 2 : index
    %c0_36 = arith.constant 0 : index
    %c0_37 = arith.constant 0 : index
    %50 = vector.load %arg5[%c0_34, %c2_35, %c0_36, %c0_37] : memref<1x4x8x16xf32, #tpu.memory_space<vmem>>, vector<1x1x2x16xf32>
    %51 = vector.shape_cast %50 : vector<1x1x2x16xf32> to vector<2x16xf32>
    %52 = arith.cmpf ogt, %51, %43 : vector<2x16xf32>
    %cst_38 = arith.constant 2.000000e+00 : f32
    %53 = vector.broadcast %cst_38 : f32 to vector<2x16xf32>
    %54 = arith.select %52, %53, %42 : vector<2x16xi1>, vector<2x16xf32>
    %55 = arith.maximumf %43, %51 : vector<2x16xf32>
    %c0_39 = arith.constant 0 : index
    %c3 = arith.constant 3 : index
    %c0_40 = arith.constant 0 : index
    %c0_41 = arith.constant 0 : index
    %56 = vector.load %arg3[%c0_39, %c3, %c0_40, %c0_41] : memref<1x4x16x16xf32, #tpu.memory_space<vmem>>, vector<1x1x16x16xf32>
    %57 = vector.shape_cast %56 : vector<1x1x16x16xf32> to vector<16x16xf32>
    %58 = arith.cmpf ogt, %57, %49 : vector<16x16xf32>
    %cst_42 = arith.constant 3.000000e+00 : f32
    %59 = vector.broadcast %cst_42 : f32 to vector<16x16xf32>
    %60 = arith.select %58, %59, %48 : vector<16x16xi1>, vector<16x16xf32>
    %61 = arith.maximumf %49, %57 : vector<16x16xf32>
    %c0_43 = arith.constant 0 : index
    %c3_44 = arith.constant 3 : index
    %c0_45 = arith.constant 0 : index
    %c0_46 = arith.constant 0 : index
    %62 = vector.load %arg5[%c0_43, %c3_44, %c0_45, %c0_46] : memref<1x4x8x16xf32, #tpu.memory_space<vmem>>, vector<1x1x2x16xf32>
    %63 = vector.shape_cast %62 : vector<1x1x2x16xf32> to vector<2x16xf32>
    %64 = arith.cmpf ogt, %63, %55 : vector<2x16xf32>
    %cst_47 = arith.constant 3.000000e+00 : f32
    %65 = vector.broadcast %cst_47 : f32 to vector<2x16xf32>
    %66 = arith.select %64, %65, %54 : vector<2x16xi1>, vector<2x16xf32>
    %c15_i32 = arith.constant 15 : i32
    %67 = vector.broadcast %c15_i32 : i32 to vector<16x16xi32>
    %68 = arith.cmpi slt, %11, %67 : vector<16x16xi32>
    %c15_i32_48 = arith.constant 15 : i32
    %69 = tpu.dynamic_rotate %10 by %c15_i32_48 dim 0 : vector<16x16xf32>, i32 -> vector<16x16xf32>
    %cst_49 = arith.constant 0.000000e+00 : f32
    %70 = vector.broadcast %cst_49 : f32 to vector<16x16xf32>
    %71 = arith.select %68, %69, %70 : vector<16x16xi1>, vector<16x16xf32>
    %72 = arith.addf %10, %71 : vector<16x16xf32>
    %c1_i32_50 = arith.constant 1 : i32
    %73 = vector.broadcast %c1_i32_50 : i32 to vector<16x16xi32>
    %74 = arith.cmpi sge, %11, %73 : vector<16x16xi32>
    %c1_i32_51 = arith.constant 1 : i32
    %75 = tpu.dynamic_rotate %10 by %c1_i32_51 dim 0 : vector<16x16xf32>, i32 -> vector<16x16xf32>
    %cst_52 = arith.constant 0.000000e+00 : f32
    %76 = vector.broadcast %cst_52 : f32 to vector<16x16xf32>
    %77 = arith.select %74, %75, %76 : vector<16x16xi1>, vector<16x16xf32>
    %78 = arith.addf %72, %77 : vector<16x16xf32>
    %c14_i32 = arith.constant 14 : i32
    %79 = vector.broadcast %c14_i32 : i32 to vector<16x16xi32>
    %80 = arith.cmpi slt, %11, %79 : vector<16x16xi32>
    %c14_i32_53 = arith.constant 14 : i32
    %81 = tpu.dynamic_rotate %10 by %c14_i32_53 dim 0 : vector<16x16xf32>, i32 -> vector<16x16xf32>
    %cst_54 = arith.constant 0.000000e+00 : f32
    %82 = vector.broadcast %cst_54 : f32 to vector<16x16xf32>
    %83 = arith.select %80, %81, %82 : vector<16x16xi1>, vector<16x16xf32>
    %84 = arith.addf %78, %83 : vector<16x16xf32>
    %c2_i32 = arith.constant 2 : i32
    %85 = vector.broadcast %c2_i32 : i32 to vector<16x16xi32>
    %86 = arith.cmpi sge, %11, %85 : vector<16x16xi32>
    %c2_i32_55 = arith.constant 2 : i32
    %87 = tpu.dynamic_rotate %10 by %c2_i32_55 dim 0 : vector<16x16xf32>, i32 -> vector<16x16xf32>
    %cst_56 = arith.constant 0.000000e+00 : f32
    %88 = vector.broadcast %cst_56 : f32 to vector<16x16xf32>
    %89 = arith.select %86, %87, %88 : vector<16x16xi1>, vector<16x16xf32>
    %90 = arith.addf %84, %89 : vector<16x16xf32>
    %c0_i32_57 = arith.constant 0 : i32
    %91 = vector.broadcast %c0_i32_57 : i32 to vector<16x16xi32>
    %92 = arith.cmpi sle, %11, %91 : vector<16x16xi32>
    %93 = vector.extract_strided_slice %13 {offsets = [0, 0], sizes = [1, 16], strides = [1, 1]} : vector<2x16xf32> to vector<1x16xf32>
    %cst_58 = arith.constant 0.000000e+00 : f32
    %94 = vector.shape_cast %93 : vector<1x16xf32> to vector<1x16xf32>
    %95 = vector.broadcast %94 : vector<1x16xf32> to vector<16x16xf32>
    %96 = vector.broadcast %cst_58 : f32 to vector<16x16xf32>
    %97 = arith.select %92, %95, %96 : vector<16x16xi1>, vector<16x16xf32>
    %98 = arith.addf %90, %97 : vector<16x16xf32>
    %c14_i32_59 = arith.constant 14 : i32
    %99 = vector.broadcast %c14_i32_59 : i32 to vector<16x16xi32>
    %100 = arith.cmpi sge, %11, %99 : vector<16x16xi32>
    %101 = vector.extract_strided_slice %25 {offsets = [0, 0], sizes = [1, 16], strides = [1, 1]} : vector<2x16xf32> to vector<1x16xf32>
    %cst_60 = arith.constant 0.000000e+00 : f32
    %102 = vector.shape_cast %101 : vector<1x16xf32> to vector<1x16xf32>
    %103 = vector.broadcast %102 : vector<1x16xf32> to vector<16x16xf32>
    %104 = vector.broadcast %cst_60 : f32 to vector<16x16xf32>
    %105 = arith.select %100, %103, %104 : vector<16x16xi1>, vector<16x16xf32>
    %106 = arith.addf %98, %105 : vector<16x16xf32>
    %c1_i32_61 = arith.constant 1 : i32
    %107 = vector.broadcast %c1_i32_61 : i32 to vector<16x16xi32>
    %108 = arith.cmpi sle, %11, %107 : vector<16x16xi32>
    %109 = vector.extract_strided_slice %13 {offsets = [1, 0], sizes = [1, 16], strides = [1, 1]} : vector<2x16xf32> to vector<1x16xf32>
    %cst_62 = arith.constant 0.000000e+00 : f32
    %110 = vector.shape_cast %109 : vector<1x16xf32> to vector<1x16xf32>
    %111 = vector.broadcast %110 : vector<1x16xf32> to vector<16x16xf32>
    %112 = vector.broadcast %cst_62 : f32 to vector<16x16xf32>
    %113 = arith.select %108, %111, %112 : vector<16x16xi1>, vector<16x16xf32>
    %114 = arith.addf %106, %113 : vector<16x16xf32>
    %c15_i32_63 = arith.constant 15 : i32
    %115 = vector.broadcast %c15_i32_63 : i32 to vector<16x16xi32>
    %116 = arith.cmpi sge, %11, %115 : vector<16x16xi32>
    %117 = vector.extract_strided_slice %25 {offsets = [1, 0], sizes = [1, 16], strides = [1, 1]} : vector<2x16xf32> to vector<1x16xf32>
    %cst_64 = arith.constant 0.000000e+00 : f32
    %118 = vector.shape_cast %117 : vector<1x16xf32> to vector<1x16xf32>
    %119 = vector.broadcast %118 : vector<1x16xf32> to vector<16x16xf32>
    %120 = vector.broadcast %cst_64 : f32 to vector<16x16xf32>
    %121 = arith.select %116, %119, %120 : vector<16x16xi1>, vector<16x16xf32>
    %122 = arith.addf %114, %121 : vector<16x16xf32>
    %c15_i32_65 = arith.constant 15 : i32
    %123 = vector.broadcast %c15_i32_65 : i32 to vector<16x16xi32>
    %124 = arith.cmpi slt, %12, %123 : vector<16x16xi32>
    %c15_i32_66 = arith.constant 15 : i32
    %125 = tpu.dynamic_rotate %122 by %c15_i32_66 dim 1 : vector<16x16xf32>, i32 -> vector<16x16xf32>
    %cst_67 = arith.constant 0.000000e+00 : f32
    %126 = vector.broadcast %cst_67 : f32 to vector<16x16xf32>
    %127 = arith.select %124, %125, %126 : vector<16x16xi1>, vector<16x16xf32>
    %128 = arith.addf %122, %127 : vector<16x16xf32>
    %c1_i32_68 = arith.constant 1 : i32
    %129 = vector.broadcast %c1_i32_68 : i32 to vector<16x16xi32>
    %130 = arith.cmpi sge, %12, %129 : vector<16x16xi32>
    %c1_i32_69 = arith.constant 1 : i32
    %131 = tpu.dynamic_rotate %122 by %c1_i32_69 dim 1 : vector<16x16xf32>, i32 -> vector<16x16xf32>
    %cst_70 = arith.constant 0.000000e+00 : f32
    %132 = vector.broadcast %cst_70 : f32 to vector<16x16xf32>
    %133 = arith.select %130, %131, %132 : vector<16x16xi1>, vector<16x16xf32>
    %134 = arith.addf %128, %133 : vector<16x16xf32>
    %c14_i32_71 = arith.constant 14 : i32
    %135 = vector.broadcast %c14_i32_71 : i32 to vector<16x16xi32>
    %136 = arith.cmpi slt, %12, %135 : vector<16x16xi32>
    %c14_i32_72 = arith.constant 14 : i32
    %137 = tpu.dynamic_rotate %122 by %c14_i32_72 dim 1 : vector<16x16xf32>, i32 -> vector<16x16xf32>
    %cst_73 = arith.constant 0.000000e+00 : f32
    %138 = vector.broadcast %cst_73 : f32 to vector<16x16xf32>
    %139 = arith.select %136, %137, %138 : vector<16x16xi1>, vector<16x16xf32>
    %140 = arith.addf %134, %139 : vector<16x16xf32>
    %c2_i32_74 = arith.constant 2 : i32
    %141 = vector.broadcast %c2_i32_74 : i32 to vector<16x16xi32>
    %142 = arith.cmpi sge, %12, %141 : vector<16x16xi32>
    %c2_i32_75 = arith.constant 2 : i32
    %143 = tpu.dynamic_rotate %122 by %c2_i32_75 dim 1 : vector<16x16xf32>, i32 -> vector<16x16xf32>
    %cst_76 = arith.constant 0.000000e+00 : f32
    %144 = vector.broadcast %cst_76 : f32 to vector<16x16xf32>
    %145 = arith.select %142, %143, %144 : vector<16x16xi1>, vector<16x16xf32>
    %146 = arith.addf %140, %145 : vector<16x16xf32>
    %cst_77 = arith.constant 0.000000e+00 : f32
    %147 = vector.broadcast %cst_77 : f32 to vector<16x16xf32>
    %cst_78 = arith.constant 0.000000e+00 : f32
    %148 = vector.broadcast %cst_78 : f32 to vector<16x16xf32>
    %cst_79 = arith.constant 0.000000e+00 : f32
    %149 = vector.broadcast %cst_79 : f32 to vector<16x16xf32>
    %c0_80 = arith.constant 0 : index
    %c0_81 = arith.constant 0 : index
    %c0_82 = arith.constant 0 : index
    %c0_83 = arith.constant 0 : index
    %150 = vector.load %arg3[%c0_80, %c0_81, %c0_82, %c0_83] : memref<1x4x16x16xf32, #tpu.memory_space<vmem>>, vector<1x1x16x16xf32>
    %151 = vector.shape_cast %150 : vector<1x1x16x16xf32> to vector<16x16xf32>
    %152 = arith.subf %151, %61 : vector<16x16xf32>
    %153 = math.exp %152 : vector<16x16xf32>
    %154 = arith.addf %147, %153 : vector<16x16xf32>
    %c0_i32_84 = arith.constant 0 : i32
    %155 = vector.broadcast %c0_i32_84 : i32 to vector<16x16xi32>
    %156 = arith.cmpi eq, %6, %155 : vector<16x16xi32>
    %cst_85 = arith.constant 0.000000e+00 : f32
    %157 = vector.broadcast %cst_85 : f32 to vector<16x16xf32>
    %158 = arith.select %156, %151, %157 : vector<16x16xi1>, vector<16x16xf32>
    %159 = arith.addf %149, %158 : vector<16x16xf32>
    %cst_86 = arith.constant 0.000000e+00 : f32
    %160 = vector.broadcast %cst_86 : f32 to vector<16x16xf32>
    %161 = arith.cmpf oeq, %60, %160 : vector<16x16xf32>
    %cst_87 = arith.constant 0.000000e+00 : f32
    %162 = vector.broadcast %cst_87 : f32 to vector<16x16xf32>
    %163 = arith.select %161, %10, %162 : vector<16x16xi1>, vector<16x16xf32>
    %cst_88 = arith.constant 0.000000e+00 : f32
    %164 = vector.broadcast %cst_88 : f32 to vector<2x16xf32>
    %165 = arith.cmpf oeq, %14, %164 : vector<2x16xf32>
    %cst_89 = arith.constant 0.000000e+00 : f32
    %166 = vector.broadcast %cst_89 : f32 to vector<2x16xf32>
    %167 = arith.select %165, %13, %166 : vector<2x16xi1>, vector<2x16xf32>
    %cst_90 = arith.constant 0.000000e+00 : f32
    %168 = vector.broadcast %cst_90 : f32 to vector<2x16xf32>
    %169 = arith.cmpf oeq, %66, %168 : vector<2x16xf32>
    %cst_91 = arith.constant 0.000000e+00 : f32
    %170 = vector.broadcast %cst_91 : f32 to vector<2x16xf32>
    %171 = arith.select %169, %25, %170 : vector<2x16xi1>, vector<2x16xf32>
    %c15_i32_92 = arith.constant 15 : i32
    %172 = vector.broadcast %c15_i32_92 : i32 to vector<16x16xi32>
    %173 = arith.cmpi slt, %11, %172 : vector<16x16xi32>
    %c15_i32_93 = arith.constant 15 : i32
    %174 = tpu.dynamic_rotate %163 by %c15_i32_93 dim 0 : vector<16x16xf32>, i32 -> vector<16x16xf32>
    %cst_94 = arith.constant 0.000000e+00 : f32
    %175 = vector.broadcast %cst_94 : f32 to vector<16x16xf32>
    %176 = arith.select %173, %174, %175 : vector<16x16xi1>, vector<16x16xf32>
    %177 = arith.addf %163, %176 : vector<16x16xf32>
    %c1_i32_95 = arith.constant 1 : i32
    %178 = vector.broadcast %c1_i32_95 : i32 to vector<16x16xi32>
    %179 = arith.cmpi sge, %11, %178 : vector<16x16xi32>
    %c1_i32_96 = arith.constant 1 : i32
    %180 = tpu.dynamic_rotate %163 by %c1_i32_96 dim 0 : vector<16x16xf32>, i32 -> vector<16x16xf32>
    %cst_97 = arith.constant 0.000000e+00 : f32
    %181 = vector.broadcast %cst_97 : f32 to vector<16x16xf32>
    %182 = arith.select %179, %180, %181 : vector<16x16xi1>, vector<16x16xf32>
    %183 = arith.addf %177, %182 : vector<16x16xf32>
    %c14_i32_98 = arith.constant 14 : i32
    %184 = vector.broadcast %c14_i32_98 : i32 to vector<16x16xi32>
    %185 = arith.cmpi slt, %11, %184 : vector<16x16xi32>
    %c14_i32_99 = arith.constant 14 : i32
    %186 = tpu.dynamic_rotate %163 by %c14_i32_99 dim 0 : vector<16x16xf32>, i32 -> vector<16x16xf32>
    %cst_100 = arith.constant 0.000000e+00 : f32
    %187 = vector.broadcast %cst_100 : f32 to vector<16x16xf32>
    %188 = arith.select %185, %186, %187 : vector<16x16xi1>, vector<16x16xf32>
    %189 = arith.addf %183, %188 : vector<16x16xf32>
    %c2_i32_101 = arith.constant 2 : i32
    %190 = vector.broadcast %c2_i32_101 : i32 to vector<16x16xi32>
    %191 = arith.cmpi sge, %11, %190 : vector<16x16xi32>
    %c2_i32_102 = arith.constant 2 : i32
    %192 = tpu.dynamic_rotate %163 by %c2_i32_102 dim 0 : vector<16x16xf32>, i32 -> vector<16x16xf32>
    %cst_103 = arith.constant 0.000000e+00 : f32
    %193 = vector.broadcast %cst_103 : f32 to vector<16x16xf32>
    %194 = arith.select %191, %192, %193 : vector<16x16xi1>, vector<16x16xf32>
    %195 = arith.addf %189, %194 : vector<16x16xf32>
    %c0_i32_104 = arith.constant 0 : i32
    %196 = vector.broadcast %c0_i32_104 : i32 to vector<16x16xi32>
    %197 = arith.cmpi sle, %11, %196 : vector<16x16xi32>
    %198 = vector.extract_strided_slice %167 {offsets = [0, 0], sizes = [1, 16], strides = [1, 1]} : vector<2x16xf32> to vector<1x16xf32>
    %cst_105 = arith.constant 0.000000e+00 : f32
    %199 = vector.shape_cast %198 : vector<1x16xf32> to vector<1x16xf32>
    %200 = vector.broadcast %199 : vector<1x16xf32> to vector<16x16xf32>
    %201 = vector.broadcast %cst_105 : f32 to vector<16x16xf32>
    %202 = arith.select %197, %200, %201 : vector<16x16xi1>, vector<16x16xf32>
    %203 = arith.addf %195, %202 : vector<16x16xf32>
    %c14_i32_106 = arith.constant 14 : i32
    %204 = vector.broadcast %c14_i32_106 : i32 to vector<16x16xi32>
    %205 = arith.cmpi sge, %11, %204 : vector<16x16xi32>
    %206 = vector.extract_strided_slice %171 {offsets = [0, 0], sizes = [1, 16], strides = [1, 1]} : vector<2x16xf32> to vector<1x16xf32>
    %cst_107 = arith.constant 0.000000e+00 : f32
    %207 = vector.shape_cast %206 : vector<1x16xf32> to vector<1x16xf32>
    %208 = vector.broadcast %207 : vector<1x16xf32> to vector<16x16xf32>
    %209 = vector.broadcast %cst_107 : f32 to vector<16x16xf32>
    %210 = arith.select %205, %208, %209 : vector<16x16xi1>, vector<16x16xf32>
    %211 = arith.addf %203, %210 : vector<16x16xf32>
    %c1_i32_108 = arith.constant 1 : i32
    %212 = vector.broadcast %c1_i32_108 : i32 to vector<16x16xi32>
    %213 = arith.cmpi sle, %11, %212 : vector<16x16xi32>
    %214 = vector.extract_strided_slice %167 {offsets = [1, 0], sizes = [1, 16], strides = [1, 1]} : vector<2x16xf32> to vector<1x16xf32>
    %cst_109 = arith.constant 0.000000e+00 : f32
    %215 = vector.shape_cast %214 : vector<1x16xf32> to vector<1x16xf32>
    %216 = vector.broadcast %215 : vector<1x16xf32> to vector<16x16xf32>
    %217 = vector.broadcast %cst_109 : f32 to vector<16x16xf32>
    %218 = arith.select %213, %216, %217 : vector<16x16xi1>, vector<16x16xf32>
    %219 = arith.addf %211, %218 : vector<16x16xf32>
    %c15_i32_110 = arith.constant 15 : i32
    %220 = vector.broadcast %c15_i32_110 : i32 to vector<16x16xi32>
    %221 = arith.cmpi sge, %11, %220 : vector<16x16xi32>
    %222 = vector.extract_strided_slice %171 {offsets = [1, 0], sizes = [1, 16], strides = [1, 1]} : vector<2x16xf32> to vector<1x16xf32>
    %cst_111 = arith.constant 0.000000e+00 : f32
    %223 = vector.shape_cast %222 : vector<1x16xf32> to vector<1x16xf32>
    %224 = vector.broadcast %223 : vector<1x16xf32> to vector<16x16xf32>
    %225 = vector.broadcast %cst_111 : f32 to vector<16x16xf32>
    %226 = arith.select %221, %224, %225 : vector<16x16xi1>, vector<16x16xf32>
    %227 = arith.addf %219, %226 : vector<16x16xf32>
    %c15_i32_112 = arith.constant 15 : i32
    %228 = vector.broadcast %c15_i32_112 : i32 to vector<16x16xi32>
    %229 = arith.cmpi slt, %12, %228 : vector<16x16xi32>
    %c15_i32_113 = arith.constant 15 : i32
    %230 = tpu.dynamic_rotate %227 by %c15_i32_113 dim 1 : vector<16x16xf32>, i32 -> vector<16x16xf32>
    %cst_114 = arith.constant 0.000000e+00 : f32
    %231 = vector.broadcast %cst_114 : f32 to vector<16x16xf32>
    %232 = arith.select %229, %230, %231 : vector<16x16xi1>, vector<16x16xf32>
    %233 = arith.addf %227, %232 : vector<16x16xf32>
    %c1_i32_115 = arith.constant 1 : i32
    %234 = vector.broadcast %c1_i32_115 : i32 to vector<16x16xi32>
    %235 = arith.cmpi sge, %12, %234 : vector<16x16xi32>
    %c1_i32_116 = arith.constant 1 : i32
    %236 = tpu.dynamic_rotate %227 by %c1_i32_116 dim 1 : vector<16x16xf32>, i32 -> vector<16x16xf32>
    %cst_117 = arith.constant 0.000000e+00 : f32
    %237 = vector.broadcast %cst_117 : f32 to vector<16x16xf32>
    %238 = arith.select %235, %236, %237 : vector<16x16xi1>, vector<16x16xf32>
    %239 = arith.addf %233, %238 : vector<16x16xf32>
    %c14_i32_118 = arith.constant 14 : i32
    %240 = vector.broadcast %c14_i32_118 : i32 to vector<16x16xi32>
    %241 = arith.cmpi slt, %12, %240 : vector<16x16xi32>
    %c14_i32_119 = arith.constant 14 : i32
    %242 = tpu.dynamic_rotate %227 by %c14_i32_119 dim 1 : vector<16x16xf32>, i32 -> vector<16x16xf32>
    %cst_120 = arith.constant 0.000000e+00 : f32
    %243 = vector.broadcast %cst_120 : f32 to vector<16x16xf32>
    %244 = arith.select %241, %242, %243 : vector<16x16xi1>, vector<16x16xf32>
    %245 = arith.addf %239, %244 : vector<16x16xf32>
    %c2_i32_121 = arith.constant 2 : i32
    %246 = vector.broadcast %c2_i32_121 : i32 to vector<16x16xi32>
    %247 = arith.cmpi sge, %12, %246 : vector<16x16xi32>
    %c2_i32_122 = arith.constant 2 : i32
    %248 = tpu.dynamic_rotate %227 by %c2_i32_122 dim 1 : vector<16x16xf32>, i32 -> vector<16x16xf32>
    %cst_123 = arith.constant 0.000000e+00 : f32
    %249 = vector.broadcast %cst_123 : f32 to vector<16x16xf32>
    %250 = arith.select %247, %248, %249 : vector<16x16xi1>, vector<16x16xf32>
    %251 = arith.addf %245, %250 : vector<16x16xf32>
    %cst_124 = arith.constant 1.000000e+00 : f32
    %252 = vector.broadcast %cst_124 : f32 to vector<16x16xf32>
    %253 = arith.addf %252, %10 : vector<16x16xf32>
    %254 = arith.subf %253, %163 : vector<16x16xf32>
    %cst_125 = arith.constant 2.500000e+01 : f32
    %255 = vector.broadcast %cst_125 : f32 to vector<16x16xf32>
    %256 = arith.addf %255, %146 : vector<16x16xf32>
    %257 = arith.subf %256, %251 : vector<16x16xf32>
    %258 = arith.subf %257, %254 : vector<16x16xf32>
    %cst_126 = arith.constant 0.0416666679 : f32
    %259 = vector.broadcast %cst_126 : f32 to vector<16x16xf32>
    %260 = arith.mulf %258, %259 : vector<16x16xf32>
    %261 = arith.subf %260, %254 : vector<16x16xf32>
    %cst_127 = arith.constant 8.000000e-01 : f32
    %262 = vector.broadcast %cst_127 : f32 to vector<16x16xf32>
    %263 = arith.cmpf olt, %261, %262 : vector<16x16xf32>
    %cst_128 = arith.constant 0.000000e+00 : f32
    %264 = vector.broadcast %cst_128 : f32 to vector<16x16xf32>
    %265 = arith.select %263, %264, %261 : vector<16x16xi1>, vector<16x16xf32>
    %266 = arith.mulf %153, %265 : vector<16x16xf32>
    %267 = arith.addf %148, %266 : vector<16x16xf32>
    %c0_129 = arith.constant 0 : index
    %c1_130 = arith.constant 1 : index
    %c0_131 = arith.constant 0 : index
    %c0_132 = arith.constant 0 : index
    %268 = vector.load %arg3[%c0_129, %c1_130, %c0_131, %c0_132] : memref<1x4x16x16xf32, #tpu.memory_space<vmem>>, vector<1x1x16x16xf32>
    %269 = vector.shape_cast %268 : vector<1x1x16x16xf32> to vector<16x16xf32>
    %270 = arith.subf %269, %61 : vector<16x16xf32>
    %271 = math.exp %270 : vector<16x16xf32>
    %272 = arith.addf %154, %271 : vector<16x16xf32>
    %c1_i32_133 = arith.constant 1 : i32
    %273 = vector.broadcast %c1_i32_133 : i32 to vector<16x16xi32>
    %274 = arith.cmpi eq, %6, %273 : vector<16x16xi32>
    %cst_134 = arith.constant 0.000000e+00 : f32
    %275 = vector.broadcast %cst_134 : f32 to vector<16x16xf32>
    %276 = arith.select %274, %269, %275 : vector<16x16xi1>, vector<16x16xf32>
    %277 = arith.addf %159, %276 : vector<16x16xf32>
    %cst_135 = arith.constant 1.000000e+00 : f32
    %278 = vector.broadcast %cst_135 : f32 to vector<16x16xf32>
    %279 = arith.cmpf oeq, %60, %278 : vector<16x16xf32>
    %cst_136 = arith.constant 0.000000e+00 : f32
    %280 = vector.broadcast %cst_136 : f32 to vector<16x16xf32>
    %281 = arith.select %279, %10, %280 : vector<16x16xi1>, vector<16x16xf32>
    %cst_137 = arith.constant 1.000000e+00 : f32
    %282 = vector.broadcast %cst_137 : f32 to vector<2x16xf32>
    %283 = arith.cmpf oeq, %14, %282 : vector<2x16xf32>
    %cst_138 = arith.constant 0.000000e+00 : f32
    %284 = vector.broadcast %cst_138 : f32 to vector<2x16xf32>
    %285 = arith.select %283, %13, %284 : vector<2x16xi1>, vector<2x16xf32>
    %cst_139 = arith.constant 1.000000e+00 : f32
    %286 = vector.broadcast %cst_139 : f32 to vector<2x16xf32>
    %287 = arith.cmpf oeq, %66, %286 : vector<2x16xf32>
    %cst_140 = arith.constant 0.000000e+00 : f32
    %288 = vector.broadcast %cst_140 : f32 to vector<2x16xf32>
    %289 = arith.select %287, %25, %288 : vector<2x16xi1>, vector<2x16xf32>
    %c15_i32_141 = arith.constant 15 : i32
    %290 = vector.broadcast %c15_i32_141 : i32 to vector<16x16xi32>
    %291 = arith.cmpi slt, %11, %290 : vector<16x16xi32>
    %c15_i32_142 = arith.constant 15 : i32
    %292 = tpu.dynamic_rotate %281 by %c15_i32_142 dim 0 : vector<16x16xf32>, i32 -> vector<16x16xf32>
    %cst_143 = arith.constant 0.000000e+00 : f32
    %293 = vector.broadcast %cst_143 : f32 to vector<16x16xf32>
    %294 = arith.select %291, %292, %293 : vector<16x16xi1>, vector<16x16xf32>
    %295 = arith.addf %281, %294 : vector<16x16xf32>
    %c1_i32_144 = arith.constant 1 : i32
    %296 = vector.broadcast %c1_i32_144 : i32 to vector<16x16xi32>
    %297 = arith.cmpi sge, %11, %296 : vector<16x16xi32>
    %c1_i32_145 = arith.constant 1 : i32
    %298 = tpu.dynamic_rotate %281 by %c1_i32_145 dim 0 : vector<16x16xf32>, i32 -> vector<16x16xf32>
    %cst_146 = arith.constant 0.000000e+00 : f32
    %299 = vector.broadcast %cst_146 : f32 to vector<16x16xf32>
    %300 = arith.select %297, %298, %299 : vector<16x16xi1>, vector<16x16xf32>
    %301 = arith.addf %295, %300 : vector<16x16xf32>
    %c14_i32_147 = arith.constant 14 : i32
    %302 = vector.broadcast %c14_i32_147 : i32 to vector<16x16xi32>
    %303 = arith.cmpi slt, %11, %302 : vector<16x16xi32>
    %c14_i32_148 = arith.constant 14 : i32
    %304 = tpu.dynamic_rotate %281 by %c14_i32_148 dim 0 : vector<16x16xf32>, i32 -> vector<16x16xf32>
    %cst_149 = arith.constant 0.000000e+00 : f32
    %305 = vector.broadcast %cst_149 : f32 to vector<16x16xf32>
    %306 = arith.select %303, %304, %305 : vector<16x16xi1>, vector<16x16xf32>
    %307 = arith.addf %301, %306 : vector<16x16xf32>
    %c2_i32_150 = arith.constant 2 : i32
    %308 = vector.broadcast %c2_i32_150 : i32 to vector<16x16xi32>
    %309 = arith.cmpi sge, %11, %308 : vector<16x16xi32>
    %c2_i32_151 = arith.constant 2 : i32
    %310 = tpu.dynamic_rotate %281 by %c2_i32_151 dim 0 : vector<16x16xf32>, i32 -> vector<16x16xf32>
    %cst_152 = arith.constant 0.000000e+00 : f32
    %311 = vector.broadcast %cst_152 : f32 to vector<16x16xf32>
    %312 = arith.select %309, %310, %311 : vector<16x16xi1>, vector<16x16xf32>
    %313 = arith.addf %307, %312 : vector<16x16xf32>
    %c0_i32_153 = arith.constant 0 : i32
    %314 = vector.broadcast %c0_i32_153 : i32 to vector<16x16xi32>
    %315 = arith.cmpi sle, %11, %314 : vector<16x16xi32>
    %316 = vector.extract_strided_slice %285 {offsets = [0, 0], sizes = [1, 16], strides = [1, 1]} : vector<2x16xf32> to vector<1x16xf32>
    %cst_154 = arith.constant 0.000000e+00 : f32
    %317 = vector.shape_cast %316 : vector<1x16xf32> to vector<1x16xf32>
    %318 = vector.broadcast %317 : vector<1x16xf32> to vector<16x16xf32>
    %319 = vector.broadcast %cst_154 : f32 to vector<16x16xf32>
    %320 = arith.select %315, %318, %319 : vector<16x16xi1>, vector<16x16xf32>
    %321 = arith.addf %313, %320 : vector<16x16xf32>
    %c14_i32_155 = arith.constant 14 : i32
    %322 = vector.broadcast %c14_i32_155 : i32 to vector<16x16xi32>
    %323 = arith.cmpi sge, %11, %322 : vector<16x16xi32>
    %324 = vector.extract_strided_slice %289 {offsets = [0, 0], sizes = [1, 16], strides = [1, 1]} : vector<2x16xf32> to vector<1x16xf32>
    %cst_156 = arith.constant 0.000000e+00 : f32
    %325 = vector.shape_cast %324 : vector<1x16xf32> to vector<1x16xf32>
    %326 = vector.broadcast %325 : vector<1x16xf32> to vector<16x16xf32>
    %327 = vector.broadcast %cst_156 : f32 to vector<16x16xf32>
    %328 = arith.select %323, %326, %327 : vector<16x16xi1>, vector<16x16xf32>
    %329 = arith.addf %321, %328 : vector<16x16xf32>
    %c1_i32_157 = arith.constant 1 : i32
    %330 = vector.broadcast %c1_i32_157 : i32 to vector<16x16xi32>
    %331 = arith.cmpi sle, %11, %330 : vector<16x16xi32>
    %332 = vector.extract_strided_slice %285 {offsets = [1, 0], sizes = [1, 16], strides = [1, 1]} : vector<2x16xf32> to vector<1x16xf32>
    %cst_158 = arith.constant 0.000000e+00 : f32
    %333 = vector.shape_cast %332 : vector<1x16xf32> to vector<1x16xf32>
    %334 = vector.broadcast %333 : vector<1x16xf32> to vector<16x16xf32>
    %335 = vector.broadcast %cst_158 : f32 to vector<16x16xf32>
    %336 = arith.select %331, %334, %335 : vector<16x16xi1>, vector<16x16xf32>
    %337 = arith.addf %329, %336 : vector<16x16xf32>
    %c15_i32_159 = arith.constant 15 : i32
    %338 = vector.broadcast %c15_i32_159 : i32 to vector<16x16xi32>
    %339 = arith.cmpi sge, %11, %338 : vector<16x16xi32>
    %340 = vector.extract_strided_slice %289 {offsets = [1, 0], sizes = [1, 16], strides = [1, 1]} : vector<2x16xf32> to vector<1x16xf32>
    %cst_160 = arith.constant 0.000000e+00 : f32
    %341 = vector.shape_cast %340 : vector<1x16xf32> to vector<1x16xf32>
    %342 = vector.broadcast %341 : vector<1x16xf32> to vector<16x16xf32>
    %343 = vector.broadcast %cst_160 : f32 to vector<16x16xf32>
    %344 = arith.select %339, %342, %343 : vector<16x16xi1>, vector<16x16xf32>
    %345 = arith.addf %337, %344 : vector<16x16xf32>
    %c15_i32_161 = arith.constant 15 : i32
    %346 = vector.broadcast %c15_i32_161 : i32 to vector<16x16xi32>
    %347 = arith.cmpi slt, %12, %346 : vector<16x16xi32>
    %c15_i32_162 = arith.constant 15 : i32
    %348 = tpu.dynamic_rotate %345 by %c15_i32_162 dim 1 : vector<16x16xf32>, i32 -> vector<16x16xf32>
    %cst_163 = arith.constant 0.000000e+00 : f32
    %349 = vector.broadcast %cst_163 : f32 to vector<16x16xf32>
    %350 = arith.select %347, %348, %349 : vector<16x16xi1>, vector<16x16xf32>
    %351 = arith.addf %345, %350 : vector<16x16xf32>
    %c1_i32_164 = arith.constant 1 : i32
    %352 = vector.broadcast %c1_i32_164 : i32 to vector<16x16xi32>
    %353 = arith.cmpi sge, %12, %352 : vector<16x16xi32>
    %c1_i32_165 = arith.constant 1 : i32
    %354 = tpu.dynamic_rotate %345 by %c1_i32_165 dim 1 : vector<16x16xf32>, i32 -> vector<16x16xf32>
    %cst_166 = arith.constant 0.000000e+00 : f32
    %355 = vector.broadcast %cst_166 : f32 to vector<16x16xf32>
    %356 = arith.select %353, %354, %355 : vector<16x16xi1>, vector<16x16xf32>
    %357 = arith.addf %351, %356 : vector<16x16xf32>
    %c14_i32_167 = arith.constant 14 : i32
    %358 = vector.broadcast %c14_i32_167 : i32 to vector<16x16xi32>
    %359 = arith.cmpi slt, %12, %358 : vector<16x16xi32>
    %c14_i32_168 = arith.constant 14 : i32
    %360 = tpu.dynamic_rotate %345 by %c14_i32_168 dim 1 : vector<16x16xf32>, i32 -> vector<16x16xf32>
    %cst_169 = arith.constant 0.000000e+00 : f32
    %361 = vector.broadcast %cst_169 : f32 to vector<16x16xf32>
    %362 = arith.select %359, %360, %361 : vector<16x16xi1>, vector<16x16xf32>
    %363 = arith.addf %357, %362 : vector<16x16xf32>
    %c2_i32_170 = arith.constant 2 : i32
    %364 = vector.broadcast %c2_i32_170 : i32 to vector<16x16xi32>
    %365 = arith.cmpi sge, %12, %364 : vector<16x16xi32>
    %c2_i32_171 = arith.constant 2 : i32
    %366 = tpu.dynamic_rotate %345 by %c2_i32_171 dim 1 : vector<16x16xf32>, i32 -> vector<16x16xf32>
    %cst_172 = arith.constant 0.000000e+00 : f32
    %367 = vector.broadcast %cst_172 : f32 to vector<16x16xf32>
    %368 = arith.select %365, %366, %367 : vector<16x16xi1>, vector<16x16xf32>
    %369 = arith.addf %363, %368 : vector<16x16xf32>
    %cst_173 = arith.constant 1.000000e+00 : f32
    %370 = vector.broadcast %cst_173 : f32 to vector<16x16xf32>
    %371 = arith.addf %370, %10 : vector<16x16xf32>
    %372 = arith.subf %371, %281 : vector<16x16xf32>
    %cst_174 = arith.constant 2.500000e+01 : f32
    %373 = vector.broadcast %cst_174 : f32 to vector<16x16xf32>
    %374 = arith.addf %373, %146 : vector<16x16xf32>
    %375 = arith.subf %374, %369 : vector<16x16xf32>
    %376 = arith.subf %375, %372 : vector<16x16xf32>
    %cst_175 = arith.constant 0.0416666679 : f32
    %377 = vector.broadcast %cst_175 : f32 to vector<16x16xf32>
    %378 = arith.mulf %376, %377 : vector<16x16xf32>
    %379 = arith.subf %378, %372 : vector<16x16xf32>
    %cst_176 = arith.constant 8.000000e-01 : f32
    %380 = vector.broadcast %cst_176 : f32 to vector<16x16xf32>
    %381 = arith.cmpf olt, %379, %380 : vector<16x16xf32>
    %cst_177 = arith.constant 0.000000e+00 : f32
    %382 = vector.broadcast %cst_177 : f32 to vector<16x16xf32>
    %383 = arith.select %381, %382, %379 : vector<16x16xi1>, vector<16x16xf32>
    %384 = arith.mulf %271, %383 : vector<16x16xf32>
    %385 = arith.addf %267, %384 : vector<16x16xf32>
    %c0_178 = arith.constant 0 : index
    %c2_179 = arith.constant 2 : index
    %c0_180 = arith.constant 0 : index
    %c0_181 = arith.constant 0 : index
    %386 = vector.load %arg3[%c0_178, %c2_179, %c0_180, %c0_181] : memref<1x4x16x16xf32, #tpu.memory_space<vmem>>, vector<1x1x16x16xf32>
    %387 = vector.shape_cast %386 : vector<1x1x16x16xf32> to vector<16x16xf32>
    %388 = arith.subf %387, %61 : vector<16x16xf32>
    %389 = math.exp %388 : vector<16x16xf32>
    %390 = arith.addf %272, %389 : vector<16x16xf32>
    %c2_i32_182 = arith.constant 2 : i32
    %391 = vector.broadcast %c2_i32_182 : i32 to vector<16x16xi32>
    %392 = arith.cmpi eq, %6, %391 : vector<16x16xi32>
    %cst_183 = arith.constant 0.000000e+00 : f32
    %393 = vector.broadcast %cst_183 : f32 to vector<16x16xf32>
    %394 = arith.select %392, %387, %393 : vector<16x16xi1>, vector<16x16xf32>
    %395 = arith.addf %277, %394 : vector<16x16xf32>
    %cst_184 = arith.constant 2.000000e+00 : f32
    %396 = vector.broadcast %cst_184 : f32 to vector<16x16xf32>
    %397 = arith.cmpf oeq, %60, %396 : vector<16x16xf32>
    %cst_185 = arith.constant 0.000000e+00 : f32
    %398 = vector.broadcast %cst_185 : f32 to vector<16x16xf32>
    %399 = arith.select %397, %10, %398 : vector<16x16xi1>, vector<16x16xf32>
    %cst_186 = arith.constant 2.000000e+00 : f32
    %400 = vector.broadcast %cst_186 : f32 to vector<2x16xf32>
    %401 = arith.cmpf oeq, %14, %400 : vector<2x16xf32>
    %cst_187 = arith.constant 0.000000e+00 : f32
    %402 = vector.broadcast %cst_187 : f32 to vector<2x16xf32>
    %403 = arith.select %401, %13, %402 : vector<2x16xi1>, vector<2x16xf32>
    %cst_188 = arith.constant 2.000000e+00 : f32
    %404 = vector.broadcast %cst_188 : f32 to vector<2x16xf32>
    %405 = arith.cmpf oeq, %66, %404 : vector<2x16xf32>
    %cst_189 = arith.constant 0.000000e+00 : f32
    %406 = vector.broadcast %cst_189 : f32 to vector<2x16xf32>
    %407 = arith.select %405, %25, %406 : vector<2x16xi1>, vector<2x16xf32>
    %c15_i32_190 = arith.constant 15 : i32
    %408 = vector.broadcast %c15_i32_190 : i32 to vector<16x16xi32>
    %409 = arith.cmpi slt, %11, %408 : vector<16x16xi32>
    %c15_i32_191 = arith.constant 15 : i32
    %410 = tpu.dynamic_rotate %399 by %c15_i32_191 dim 0 : vector<16x16xf32>, i32 -> vector<16x16xf32>
    %cst_192 = arith.constant 0.000000e+00 : f32
    %411 = vector.broadcast %cst_192 : f32 to vector<16x16xf32>
    %412 = arith.select %409, %410, %411 : vector<16x16xi1>, vector<16x16xf32>
    %413 = arith.addf %399, %412 : vector<16x16xf32>
    %c1_i32_193 = arith.constant 1 : i32
    %414 = vector.broadcast %c1_i32_193 : i32 to vector<16x16xi32>
    %415 = arith.cmpi sge, %11, %414 : vector<16x16xi32>
    %c1_i32_194 = arith.constant 1 : i32
    %416 = tpu.dynamic_rotate %399 by %c1_i32_194 dim 0 : vector<16x16xf32>, i32 -> vector<16x16xf32>
    %cst_195 = arith.constant 0.000000e+00 : f32
    %417 = vector.broadcast %cst_195 : f32 to vector<16x16xf32>
    %418 = arith.select %415, %416, %417 : vector<16x16xi1>, vector<16x16xf32>
    %419 = arith.addf %413, %418 : vector<16x16xf32>
    %c14_i32_196 = arith.constant 14 : i32
    %420 = vector.broadcast %c14_i32_196 : i32 to vector<16x16xi32>
    %421 = arith.cmpi slt, %11, %420 : vector<16x16xi32>
    %c14_i32_197 = arith.constant 14 : i32
    %422 = tpu.dynamic_rotate %399 by %c14_i32_197 dim 0 : vector<16x16xf32>, i32 -> vector<16x16xf32>
    %cst_198 = arith.constant 0.000000e+00 : f32
    %423 = vector.broadcast %cst_198 : f32 to vector<16x16xf32>
    %424 = arith.select %421, %422, %423 : vector<16x16xi1>, vector<16x16xf32>
    %425 = arith.addf %419, %424 : vector<16x16xf32>
    %c2_i32_199 = arith.constant 2 : i32
    %426 = vector.broadcast %c2_i32_199 : i32 to vector<16x16xi32>
    %427 = arith.cmpi sge, %11, %426 : vector<16x16xi32>
    %c2_i32_200 = arith.constant 2 : i32
    %428 = tpu.dynamic_rotate %399 by %c2_i32_200 dim 0 : vector<16x16xf32>, i32 -> vector<16x16xf32>
    %cst_201 = arith.constant 0.000000e+00 : f32
    %429 = vector.broadcast %cst_201 : f32 to vector<16x16xf32>
    %430 = arith.select %427, %428, %429 : vector<16x16xi1>, vector<16x16xf32>
    %431 = arith.addf %425, %430 : vector<16x16xf32>
    %c0_i32_202 = arith.constant 0 : i32
    %432 = vector.broadcast %c0_i32_202 : i32 to vector<16x16xi32>
    %433 = arith.cmpi sle, %11, %432 : vector<16x16xi32>
    %434 = vector.extract_strided_slice %403 {offsets = [0, 0], sizes = [1, 16], strides = [1, 1]} : vector<2x16xf32> to vector<1x16xf32>
    %cst_203 = arith.constant 0.000000e+00 : f32
    %435 = vector.shape_cast %434 : vector<1x16xf32> to vector<1x16xf32>
    %436 = vector.broadcast %435 : vector<1x16xf32> to vector<16x16xf32>
    %437 = vector.broadcast %cst_203 : f32 to vector<16x16xf32>
    %438 = arith.select %433, %436, %437 : vector<16x16xi1>, vector<16x16xf32>
    %439 = arith.addf %431, %438 : vector<16x16xf32>
    %c14_i32_204 = arith.constant 14 : i32
    %440 = vector.broadcast %c14_i32_204 : i32 to vector<16x16xi32>
    %441 = arith.cmpi sge, %11, %440 : vector<16x16xi32>
    %442 = vector.extract_strided_slice %407 {offsets = [0, 0], sizes = [1, 16], strides = [1, 1]} : vector<2x16xf32> to vector<1x16xf32>
    %cst_205 = arith.constant 0.000000e+00 : f32
    %443 = vector.shape_cast %442 : vector<1x16xf32> to vector<1x16xf32>
    %444 = vector.broadcast %443 : vector<1x16xf32> to vector<16x16xf32>
    %445 = vector.broadcast %cst_205 : f32 to vector<16x16xf32>
    %446 = arith.select %441, %444, %445 : vector<16x16xi1>, vector<16x16xf32>
    %447 = arith.addf %439, %446 : vector<16x16xf32>
    %c1_i32_206 = arith.constant 1 : i32
    %448 = vector.broadcast %c1_i32_206 : i32 to vector<16x16xi32>
    %449 = arith.cmpi sle, %11, %448 : vector<16x16xi32>
    %450 = vector.extract_strided_slice %403 {offsets = [1, 0], sizes = [1, 16], strides = [1, 1]} : vector<2x16xf32> to vector<1x16xf32>
    %cst_207 = arith.constant 0.000000e+00 : f32
    %451 = vector.shape_cast %450 : vector<1x16xf32> to vector<1x16xf32>
    %452 = vector.broadcast %451 : vector<1x16xf32> to vector<16x16xf32>
    %453 = vector.broadcast %cst_207 : f32 to vector<16x16xf32>
    %454 = arith.select %449, %452, %453 : vector<16x16xi1>, vector<16x16xf32>
    %455 = arith.addf %447, %454 : vector<16x16xf32>
    %c15_i32_208 = arith.constant 15 : i32
    %456 = vector.broadcast %c15_i32_208 : i32 to vector<16x16xi32>
    %457 = arith.cmpi sge, %11, %456 : vector<16x16xi32>
    %458 = vector.extract_strided_slice %407 {offsets = [1, 0], sizes = [1, 16], strides = [1, 1]} : vector<2x16xf32> to vector<1x16xf32>
    %cst_209 = arith.constant 0.000000e+00 : f32
    %459 = vector.shape_cast %458 : vector<1x16xf32> to vector<1x16xf32>
    %460 = vector.broadcast %459 : vector<1x16xf32> to vector<16x16xf32>
    %461 = vector.broadcast %cst_209 : f32 to vector<16x16xf32>
    %462 = arith.select %457, %460, %461 : vector<16x16xi1>, vector<16x16xf32>
    %463 = arith.addf %455, %462 : vector<16x16xf32>
    %c15_i32_210 = arith.constant 15 : i32
    %464 = vector.broadcast %c15_i32_210 : i32 to vector<16x16xi32>
    %465 = arith.cmpi slt, %12, %464 : vector<16x16xi32>
    %c15_i32_211 = arith.constant 15 : i32
    %466 = tpu.dynamic_rotate %463 by %c15_i32_211 dim 1 : vector<16x16xf32>, i32 -> vector<16x16xf32>
    %cst_212 = arith.constant 0.000000e+00 : f32
    %467 = vector.broadcast %cst_212 : f32 to vector<16x16xf32>
    %468 = arith.select %465, %466, %467 : vector<16x16xi1>, vector<16x16xf32>
    %469 = arith.addf %463, %468 : vector<16x16xf32>
    %c1_i32_213 = arith.constant 1 : i32
    %470 = vector.broadcast %c1_i32_213 : i32 to vector<16x16xi32>
    %471 = arith.cmpi sge, %12, %470 : vector<16x16xi32>
    %c1_i32_214 = arith.constant 1 : i32
    %472 = tpu.dynamic_rotate %463 by %c1_i32_214 dim 1 : vector<16x16xf32>, i32 -> vector<16x16xf32>
    %cst_215 = arith.constant 0.000000e+00 : f32
    %473 = vector.broadcast %cst_215 : f32 to vector<16x16xf32>
    %474 = arith.select %471, %472, %473 : vector<16x16xi1>, vector<16x16xf32>
    %475 = arith.addf %469, %474 : vector<16x16xf32>
    %c14_i32_216 = arith.constant 14 : i32
    %476 = vector.broadcast %c14_i32_216 : i32 to vector<16x16xi32>
    %477 = arith.cmpi slt, %12, %476 : vector<16x16xi32>
    %c14_i32_217 = arith.constant 14 : i32
    %478 = tpu.dynamic_rotate %463 by %c14_i32_217 dim 1 : vector<16x16xf32>, i32 -> vector<16x16xf32>
    %cst_218 = arith.constant 0.000000e+00 : f32
    %479 = vector.broadcast %cst_218 : f32 to vector<16x16xf32>
    %480 = arith.select %477, %478, %479 : vector<16x16xi1>, vector<16x16xf32>
    %481 = arith.addf %475, %480 : vector<16x16xf32>
    %c2_i32_219 = arith.constant 2 : i32
    %482 = vector.broadcast %c2_i32_219 : i32 to vector<16x16xi32>
    %483 = arith.cmpi sge, %12, %482 : vector<16x16xi32>
    %c2_i32_220 = arith.constant 2 : i32
    %484 = tpu.dynamic_rotate %463 by %c2_i32_220 dim 1 : vector<16x16xf32>, i32 -> vector<16x16xf32>
    %cst_221 = arith.constant 0.000000e+00 : f32
    %485 = vector.broadcast %cst_221 : f32 to vector<16x16xf32>
    %486 = arith.select %483, %484, %485 : vector<16x16xi1>, vector<16x16xf32>
    %487 = arith.addf %481, %486 : vector<16x16xf32>
    %cst_222 = arith.constant 1.000000e+00 : f32
    %488 = vector.broadcast %cst_222 : f32 to vector<16x16xf32>
    %489 = arith.addf %488, %10 : vector<16x16xf32>
    %490 = arith.subf %489, %399 : vector<16x16xf32>
    %cst_223 = arith.constant 2.500000e+01 : f32
    %491 = vector.broadcast %cst_223 : f32 to vector<16x16xf32>
    %492 = arith.addf %491, %146 : vector<16x16xf32>
    %493 = arith.subf %492, %487 : vector<16x16xf32>
    %494 = arith.subf %493, %490 : vector<16x16xf32>
    %cst_224 = arith.constant 0.0416666679 : f32
    %495 = vector.broadcast %cst_224 : f32 to vector<16x16xf32>
    %496 = arith.mulf %494, %495 : vector<16x16xf32>
    %497 = arith.subf %496, %490 : vector<16x16xf32>
    %cst_225 = arith.constant 8.000000e-01 : f32
    %498 = vector.broadcast %cst_225 : f32 to vector<16x16xf32>
    %499 = arith.cmpf olt, %497, %498 : vector<16x16xf32>
    %cst_226 = arith.constant 0.000000e+00 : f32
    %500 = vector.broadcast %cst_226 : f32 to vector<16x16xf32>
    %501 = arith.select %499, %500, %497 : vector<16x16xi1>, vector<16x16xf32>
    %502 = arith.mulf %389, %501 : vector<16x16xf32>
    %503 = arith.addf %385, %502 : vector<16x16xf32>
    %c0_227 = arith.constant 0 : index
    %c3_228 = arith.constant 3 : index
    %c0_229 = arith.constant 0 : index
    %c0_230 = arith.constant 0 : index
    %504 = vector.load %arg3[%c0_227, %c3_228, %c0_229, %c0_230] : memref<1x4x16x16xf32, #tpu.memory_space<vmem>>, vector<1x1x16x16xf32>
    %505 = vector.shape_cast %504 : vector<1x1x16x16xf32> to vector<16x16xf32>
    %506 = arith.subf %505, %61 : vector<16x16xf32>
    %507 = math.exp %506 : vector<16x16xf32>
    %508 = arith.addf %390, %507 : vector<16x16xf32>
    %c3_i32 = arith.constant 3 : i32
    %509 = vector.broadcast %c3_i32 : i32 to vector<16x16xi32>
    %510 = arith.cmpi eq, %6, %509 : vector<16x16xi32>
    %cst_231 = arith.constant 0.000000e+00 : f32
    %511 = vector.broadcast %cst_231 : f32 to vector<16x16xf32>
    %512 = arith.select %510, %505, %511 : vector<16x16xi1>, vector<16x16xf32>
    %513 = arith.addf %395, %512 : vector<16x16xf32>
    %cst_232 = arith.constant 3.000000e+00 : f32
    %514 = vector.broadcast %cst_232 : f32 to vector<16x16xf32>
    %515 = arith.cmpf oeq, %60, %514 : vector<16x16xf32>
    %cst_233 = arith.constant 0.000000e+00 : f32
    %516 = vector.broadcast %cst_233 : f32 to vector<16x16xf32>
    %517 = arith.select %515, %10, %516 : vector<16x16xi1>, vector<16x16xf32>
    %cst_234 = arith.constant 3.000000e+00 : f32
    %518 = vector.broadcast %cst_234 : f32 to vector<2x16xf32>
    %519 = arith.cmpf oeq, %14, %518 : vector<2x16xf32>
    %cst_235 = arith.constant 0.000000e+00 : f32
    %520 = vector.broadcast %cst_235 : f32 to vector<2x16xf32>
    %521 = arith.select %519, %13, %520 : vector<2x16xi1>, vector<2x16xf32>
    %cst_236 = arith.constant 3.000000e+00 : f32
    %522 = vector.broadcast %cst_236 : f32 to vector<2x16xf32>
    %523 = arith.cmpf oeq, %66, %522 : vector<2x16xf32>
    %cst_237 = arith.constant 0.000000e+00 : f32
    %524 = vector.broadcast %cst_237 : f32 to vector<2x16xf32>
    %525 = arith.select %523, %25, %524 : vector<2x16xi1>, vector<2x16xf32>
    %c15_i32_238 = arith.constant 15 : i32
    %526 = vector.broadcast %c15_i32_238 : i32 to vector<16x16xi32>
    %527 = arith.cmpi slt, %11, %526 : vector<16x16xi32>
    %c15_i32_239 = arith.constant 15 : i32
    %528 = tpu.dynamic_rotate %517 by %c15_i32_239 dim 0 : vector<16x16xf32>, i32 -> vector<16x16xf32>
    %cst_240 = arith.constant 0.000000e+00 : f32
    %529 = vector.broadcast %cst_240 : f32 to vector<16x16xf32>
    %530 = arith.select %527, %528, %529 : vector<16x16xi1>, vector<16x16xf32>
    %531 = arith.addf %517, %530 : vector<16x16xf32>
    %c1_i32_241 = arith.constant 1 : i32
    %532 = vector.broadcast %c1_i32_241 : i32 to vector<16x16xi32>
    %533 = arith.cmpi sge, %11, %532 : vector<16x16xi32>
    %c1_i32_242 = arith.constant 1 : i32
    %534 = tpu.dynamic_rotate %517 by %c1_i32_242 dim 0 : vector<16x16xf32>, i32 -> vector<16x16xf32>
    %cst_243 = arith.constant 0.000000e+00 : f32
    %535 = vector.broadcast %cst_243 : f32 to vector<16x16xf32>
    %536 = arith.select %533, %534, %535 : vector<16x16xi1>, vector<16x16xf32>
    %537 = arith.addf %531, %536 : vector<16x16xf32>
    %c14_i32_244 = arith.constant 14 : i32
    %538 = vector.broadcast %c14_i32_244 : i32 to vector<16x16xi32>
    %539 = arith.cmpi slt, %11, %538 : vector<16x16xi32>
    %c14_i32_245 = arith.constant 14 : i32
    %540 = tpu.dynamic_rotate %517 by %c14_i32_245 dim 0 : vector<16x16xf32>, i32 -> vector<16x16xf32>
    %cst_246 = arith.constant 0.000000e+00 : f32
    %541 = vector.broadcast %cst_246 : f32 to vector<16x16xf32>
    %542 = arith.select %539, %540, %541 : vector<16x16xi1>, vector<16x16xf32>
    %543 = arith.addf %537, %542 : vector<16x16xf32>
    %c2_i32_247 = arith.constant 2 : i32
    %544 = vector.broadcast %c2_i32_247 : i32 to vector<16x16xi32>
    %545 = arith.cmpi sge, %11, %544 : vector<16x16xi32>
    %c2_i32_248 = arith.constant 2 : i32
    %546 = tpu.dynamic_rotate %517 by %c2_i32_248 dim 0 : vector<16x16xf32>, i32 -> vector<16x16xf32>
    %cst_249 = arith.constant 0.000000e+00 : f32
    %547 = vector.broadcast %cst_249 : f32 to vector<16x16xf32>
    %548 = arith.select %545, %546, %547 : vector<16x16xi1>, vector<16x16xf32>
    %549 = arith.addf %543, %548 : vector<16x16xf32>
    %c0_i32_250 = arith.constant 0 : i32
    %550 = vector.broadcast %c0_i32_250 : i32 to vector<16x16xi32>
    %551 = arith.cmpi sle, %11, %550 : vector<16x16xi32>
    %552 = vector.extract_strided_slice %521 {offsets = [0, 0], sizes = [1, 16], strides = [1, 1]} : vector<2x16xf32> to vector<1x16xf32>
    %cst_251 = arith.constant 0.000000e+00 : f32
    %553 = vector.shape_cast %552 : vector<1x16xf32> to vector<1x16xf32>
    %554 = vector.broadcast %553 : vector<1x16xf32> to vector<16x16xf32>
    %555 = vector.broadcast %cst_251 : f32 to vector<16x16xf32>
    %556 = arith.select %551, %554, %555 : vector<16x16xi1>, vector<16x16xf32>
    %557 = arith.addf %549, %556 : vector<16x16xf32>
    %c14_i32_252 = arith.constant 14 : i32
    %558 = vector.broadcast %c14_i32_252 : i32 to vector<16x16xi32>
    %559 = arith.cmpi sge, %11, %558 : vector<16x16xi32>
    %560 = vector.extract_strided_slice %525 {offsets = [0, 0], sizes = [1, 16], strides = [1, 1]} : vector<2x16xf32> to vector<1x16xf32>
    %cst_253 = arith.constant 0.000000e+00 : f32
    %561 = vector.shape_cast %560 : vector<1x16xf32> to vector<1x16xf32>
    %562 = vector.broadcast %561 : vector<1x16xf32> to vector<16x16xf32>
    %563 = vector.broadcast %cst_253 : f32 to vector<16x16xf32>
    %564 = arith.select %559, %562, %563 : vector<16x16xi1>, vector<16x16xf32>
    %565 = arith.addf %557, %564 : vector<16x16xf32>
    %c1_i32_254 = arith.constant 1 : i32
    %566 = vector.broadcast %c1_i32_254 : i32 to vector<16x16xi32>
    %567 = arith.cmpi sle, %11, %566 : vector<16x16xi32>
    %568 = vector.extract_strided_slice %521 {offsets = [1, 0], sizes = [1, 16], strides = [1, 1]} : vector<2x16xf32> to vector<1x16xf32>
    %cst_255 = arith.constant 0.000000e+00 : f32
    %569 = vector.shape_cast %568 : vector<1x16xf32> to vector<1x16xf32>
    %570 = vector.broadcast %569 : vector<1x16xf32> to vector<16x16xf32>
    %571 = vector.broadcast %cst_255 : f32 to vector<16x16xf32>
    %572 = arith.select %567, %570, %571 : vector<16x16xi1>, vector<16x16xf32>
    %573 = arith.addf %565, %572 : vector<16x16xf32>
    %c15_i32_256 = arith.constant 15 : i32
    %574 = vector.broadcast %c15_i32_256 : i32 to vector<16x16xi32>
    %575 = arith.cmpi sge, %11, %574 : vector<16x16xi32>
    %576 = vector.extract_strided_slice %525 {offsets = [1, 0], sizes = [1, 16], strides = [1, 1]} : vector<2x16xf32> to vector<1x16xf32>
    %cst_257 = arith.constant 0.000000e+00 : f32
    %577 = vector.shape_cast %576 : vector<1x16xf32> to vector<1x16xf32>
    %578 = vector.broadcast %577 : vector<1x16xf32> to vector<16x16xf32>
    %579 = vector.broadcast %cst_257 : f32 to vector<16x16xf32>
    %580 = arith.select %575, %578, %579 : vector<16x16xi1>, vector<16x16xf32>
    %581 = arith.addf %573, %580 : vector<16x16xf32>
    %c15_i32_258 = arith.constant 15 : i32
    %582 = vector.broadcast %c15_i32_258 : i32 to vector<16x16xi32>
    %583 = arith.cmpi slt, %12, %582 : vector<16x16xi32>
    %c15_i32_259 = arith.constant 15 : i32
    %584 = tpu.dynamic_rotate %581 by %c15_i32_259 dim 1 : vector<16x16xf32>, i32 -> vector<16x16xf32>
    %cst_260 = arith.constant 0.000000e+00 : f32
    %585 = vector.broadcast %cst_260 : f32 to vector<16x16xf32>
    %586 = arith.select %583, %584, %585 : vector<16x16xi1>, vector<16x16xf32>
    %587 = arith.addf %581, %586 : vector<16x16xf32>
    %c1_i32_261 = arith.constant 1 : i32
    %588 = vector.broadcast %c1_i32_261 : i32 to vector<16x16xi32>
    %589 = arith.cmpi sge, %12, %588 : vector<16x16xi32>
    %c1_i32_262 = arith.constant 1 : i32
    %590 = tpu.dynamic_rotate %581 by %c1_i32_262 dim 1 : vector<16x16xf32>, i32 -> vector<16x16xf32>
    %cst_263 = arith.constant 0.000000e+00 : f32
    %591 = vector.broadcast %cst_263 : f32 to vector<16x16xf32>
    %592 = arith.select %589, %590, %591 : vector<16x16xi1>, vector<16x16xf32>
    %593 = arith.addf %587, %592 : vector<16x16xf32>
    %c14_i32_264 = arith.constant 14 : i32
    %594 = vector.broadcast %c14_i32_264 : i32 to vector<16x16xi32>
    %595 = arith.cmpi slt, %12, %594 : vector<16x16xi32>
    %c14_i32_265 = arith.constant 14 : i32
    %596 = tpu.dynamic_rotate %581 by %c14_i32_265 dim 1 : vector<16x16xf32>, i32 -> vector<16x16xf32>
    %cst_266 = arith.constant 0.000000e+00 : f32
    %597 = vector.broadcast %cst_266 : f32 to vector<16x16xf32>
    %598 = arith.select %595, %596, %597 : vector<16x16xi1>, vector<16x16xf32>
    %599 = arith.addf %593, %598 : vector<16x16xf32>
    %c2_i32_267 = arith.constant 2 : i32
    %600 = vector.broadcast %c2_i32_267 : i32 to vector<16x16xi32>
    %601 = arith.cmpi sge, %12, %600 : vector<16x16xi32>
    %c2_i32_268 = arith.constant 2 : i32
    %602 = tpu.dynamic_rotate %581 by %c2_i32_268 dim 1 : vector<16x16xf32>, i32 -> vector<16x16xf32>
    %cst_269 = arith.constant 0.000000e+00 : f32
    %603 = vector.broadcast %cst_269 : f32 to vector<16x16xf32>
    %604 = arith.select %601, %602, %603 : vector<16x16xi1>, vector<16x16xf32>
    %605 = arith.addf %599, %604 : vector<16x16xf32>
    %cst_270 = arith.constant 1.000000e+00 : f32
    %606 = vector.broadcast %cst_270 : f32 to vector<16x16xf32>
    %607 = arith.addf %606, %10 : vector<16x16xf32>
    %608 = arith.subf %607, %517 : vector<16x16xf32>
    %cst_271 = arith.constant 2.500000e+01 : f32
    %609 = vector.broadcast %cst_271 : f32 to vector<16x16xf32>
    %610 = arith.addf %609, %146 : vector<16x16xf32>
    %611 = arith.subf %610, %605 : vector<16x16xf32>
    %612 = arith.subf %611, %608 : vector<16x16xf32>
    %cst_272 = arith.constant 0.0416666679 : f32
    %613 = vector.broadcast %cst_272 : f32 to vector<16x16xf32>
    %614 = arith.mulf %612, %613 : vector<16x16xf32>
    %615 = arith.subf %614, %608 : vector<16x16xf32>
    %cst_273 = arith.constant 8.000000e-01 : f32
    %616 = vector.broadcast %cst_273 : f32 to vector<16x16xf32>
    %617 = arith.cmpf olt, %615, %616 : vector<16x16xf32>
    %cst_274 = arith.constant 0.000000e+00 : f32
    %618 = vector.broadcast %cst_274 : f32 to vector<16x16xf32>
    %619 = arith.select %617, %618, %615 : vector<16x16xi1>, vector<16x16xf32>
    %620 = arith.mulf %507, %619 : vector<16x16xf32>
    %621 = arith.addf %503, %620 : vector<16x16xf32>
    %622 = tpu.reciprocal %508 : vector<16x16xf32> -> vector<16x16xf32>
    %623 = arith.mulf %621, %10 : vector<16x16xf32>
    %624 = arith.mulf %623, %622 : vector<16x16xf32>
    %625 = arith.subf %513, %61 : vector<16x16xf32>
    %626 = math.log %508 : vector<16x16xf32>
    %627 = arith.subf %625, %626 : vector<16x16xf32>
    %c0_275 = arith.constant 0 : index
    %c0_276 = arith.constant 0 : index
    %628 = vector.load %arg12[%c0_275, %c0_276] : memref<1x16xf32, #tpu.memory_space<vmem>>, vector<1x16xf32>
    %cst_277 = arith.constant dense<0.000000e+00> : vector<16xf32>
    %629 = vector.multi_reduction <add>, %624, %cst_277 [0] : vector<16x16xf32> to vector<16xf32>
    %630 = vector.shape_cast %629 : vector<16xf32> to vector<1x16xf32>
    %631 = arith.addf %628, %630 : vector<1x16xf32>
    %c0_278 = arith.constant 0 : index
    %c0_279 = arith.constant 0 : index
    %632 = vector.load %arg12[%c0_278, %c0_279] : memref<1x16xf32, #tpu.memory_space<vmem>>, vector<1x16xf32>
    tpu.vector_store %arg12[%c0_278, %c0_279], %631 {strides = array<i32>} : memref<1x16xf32, #tpu.memory_space<vmem>>, vector<1x16xf32>,
    %c0_280 = arith.constant 0 : index
    %c0_281 = arith.constant 0 : index
    %633 = vector.load %arg13[%c0_280, %c0_281] : memref<1x16xf32, #tpu.memory_space<vmem>>, vector<1x16xf32>
    %cst_282 = arith.constant 0.000000e+00 : f32
    %634 = vector.broadcast %cst_282 : f32 to vector<16x16xf32>
    %635 = arith.subf %634, %627 : vector<16x16xf32>
    %636 = arith.mulf %635, %10 : vector<16x16xf32>
    %cst_283 = arith.constant dense<0.000000e+00> : vector<16xf32>
    %637 = vector.multi_reduction <add>, %636, %cst_283 [0] : vector<16x16xf32> to vector<16xf32>
    %638 = vector.shape_cast %637 : vector<16xf32> to vector<1x16xf32>
    %639 = arith.addf %633, %638 : vector<1x16xf32>
    %c0_284 = arith.constant 0 : index
    %c0_285 = arith.constant 0 : index
    %640 = vector.load %arg13[%c0_284, %c0_285] : memref<1x16xf32, #tpu.memory_space<vmem>>, vector<1x16xf32>
    tpu.vector_store %arg13[%c0_284, %c0_285], %639 {strides = array<i32>} : memref<1x16xf32, #tpu.memory_space<vmem>>, vector<1x16xf32>,
    %c0_286 = arith.constant 0 : index
    %c0_287 = arith.constant 0 : index
    %641 = vector.load %arg14[%c0_286, %c0_287] : memref<1x16xf32, #tpu.memory_space<vmem>>, vector<1x16xf32>
    %cst_288 = arith.constant dense<0.000000e+00> : vector<16xf32>
    %642 = vector.multi_reduction <add>, %10, %cst_288 [0] : vector<16x16xf32> to vector<16xf32>
    %643 = vector.shape_cast %642 : vector<16xf32> to vector<1x16xf32>
    %644 = arith.addf %641, %643 : vector<1x16xf32>
    %c0_289 = arith.constant 0 : index
    %c0_290 = arith.constant 0 : index
    %645 = vector.load %arg14[%c0_289, %c0_290] : memref<1x16xf32, #tpu.memory_space<vmem>>, vector<1x16xf32>
    tpu.vector_store %arg14[%c0_289, %c0_290], %644 {strides = array<i32>} : memref<1x16xf32, #tpu.memory_space<vmem>>, vector<1x16xf32>,
    %646 = vector.extract_strided_slice %10 {offsets = [14, 0], sizes = [2, 16], strides = [1, 1]} : vector<16x16xf32> to vector<2x16xf32>
    %c0_291 = arith.constant 0 : index
    %c0_292 = arith.constant 0 : index
    %647 = vector.load %arg10[%c0_291, %c0_292] : memref<2x16xf32, #tpu.memory_space<vmem>>, vector<2x16xf32>
    tpu.vector_store %arg10[%c0_291, %c0_292], %646 {strides = array<i32>} : memref<2x16xf32, #tpu.memory_space<vmem>>, vector<2x16xf32>,
    %648 = vector.extract_strided_slice %60 {offsets = [14, 0], sizes = [2, 16], strides = [1, 1]} : vector<16x16xf32> to vector<2x16xf32>
    %c0_293 = arith.constant 0 : index
    %c0_294 = arith.constant 0 : index
    %649 = vector.load %arg11[%c0_293, %c0_294] : memref<2x16xf32, #tpu.memory_space<vmem>>, vector<2x16xf32>
    tpu.vector_store %arg11[%c0_293, %c0_294], %648 {strides = array<i32>} : memref<2x16xf32, #tpu.memory_space<vmem>>, vector<2x16xf32>,
    %c0_i32_295 = arith.constant 0 : i32
    %650 = arith.cmpi eq, %arg2, %c0_i32_295 : i32
    %651 = arith.extui %650 : i1 to i32
    %c0_i32_296 = arith.constant 0 : i32
    %652 = arith.cmpi ne, %651, %c0_i32_296 : i32
    scf.if %652 {
      %653 = tpu.iota {dimensions = array<i32: 1>} : vector<1x128xi32>
      %c0_297 = arith.constant 0 : index
      %c0_298 = arith.constant 0 : index
      %654 = vector.load %arg12[%c0_297, %c0_298] : memref<1x16xf32, #tpu.memory_space<vmem>>, vector<1x16xf32>
      %cst_299 = arith.constant dense<0.000000e+00> : vector<1xf32>
      %655 = vector.multi_reduction <add>, %654, %cst_299 [1] : vector<1x16xf32> to vector<1xf32>
      %656 = vector.shape_cast %655 : vector<1xf32> to vector<1x1xf32>
      %c0_300 = arith.constant 0 : index
      %c0_301 = arith.constant 0 : index
      %657 = vector.load %arg13[%c0_300, %c0_301] : memref<1x16xf32, #tpu.memory_space<vmem>>, vector<1x16xf32>
      %cst_302 = arith.constant dense<0.000000e+00> : vector<1xf32>
      %658 = vector.multi_reduction <add>, %657, %cst_302 [1] : vector<1x16xf32> to vector<1xf32>
      %659 = vector.shape_cast %658 : vector<1xf32> to vector<1x1xf32>
      %c0_303 = arith.constant 0 : index
      %c0_304 = arith.constant 0 : index
      %660 = vector.load %arg14[%c0_303, %c0_304] : memref<1x16xf32, #tpu.memory_space<vmem>>, vector<1x16xf32>
      %cst_305 = arith.constant dense<0.000000e+00> : vector<1xf32>
      %661 = vector.multi_reduction <add>, %660, %cst_305 [1] : vector<1x16xf32> to vector<1xf32>
      %662 = vector.shape_cast %661 : vector<1xf32> to vector<1x1xf32>
      %c0_i32_306 = arith.constant 0 : i32
      %663 = vector.broadcast %c0_i32_306 : i32 to vector<1x128xi32>
      %664 = arith.cmpi eq, %653, %663 : vector<1x128xi32>
      %cst_307 = arith.constant 0.000000e+00 : f32
      %665 = vector.shape_cast %656 : vector<1x1xf32> to vector<1x1xf32>
      %666 = vector.broadcast %665 : vector<1x1xf32> to vector<1x128xf32>
      %667 = vector.broadcast %cst_307 : f32 to vector<1x128xf32>
      %668 = arith.select %664, %666, %667 : vector<1x128xi1>, vector<1x128xf32>
      %c1_i32_308 = arith.constant 1 : i32
      %669 = vector.broadcast %c1_i32_308 : i32 to vector<1x128xi32>
      %670 = arith.cmpi eq, %653, %669 : vector<1x128xi32>
      %cst_309 = arith.constant 0.000000e+00 : f32
      %671 = vector.shape_cast %659 : vector<1x1xf32> to vector<1x1xf32>
      %672 = vector.broadcast %671 : vector<1x1xf32> to vector<1x128xf32>
      %673 = vector.broadcast %cst_309 : f32 to vector<1x128xf32>
      %674 = arith.select %670, %672, %673 : vector<1x128xi1>, vector<1x128xf32>
      %675 = arith.addf %668, %674 : vector<1x128xf32>
      %c2_i32_310 = arith.constant 2 : i32
      %676 = vector.broadcast %c2_i32_310 : i32 to vector<1x128xi32>
      %677 = arith.cmpi eq, %653, %676 : vector<1x128xi32>
      %cst_311 = arith.constant 0.000000e+00 : f32
      %678 = vector.shape_cast %662 : vector<1x1xf32> to vector<1x1xf32>
      %679 = vector.broadcast %678 : vector<1x1xf32> to vector<1x128xf32>
      %680 = vector.broadcast %cst_311 : f32 to vector<1x128xf32>
      %681 = arith.select %677, %679, %680 : vector<1x128xi1>, vector<1x128xf32>
      %682 = arith.addf %675, %681 : vector<1x128xf32>
      %c0_312 = arith.constant 0 : index
      %c0_313 = arith.constant 0 : index
      %c0_314 = arith.constant 0 : index
      %683 = vector.load %arg9[%c0_312, %c0_313, %c0_314] : memref<1x1x128xf32, #tpu.memory_space<vmem>>, vector<1x1x128xf32>
      %684 = vector.shape_cast %683 : vector<1x1x128xf32> to vector<1x128xf32>
      %685 = vector.shape_cast %682 : vector<1x128xf32> to vector<1x1x128xf32>
      tpu.vector_store %arg9[%c0_312, %c0_313, %c0_314], %685 {strides = array<i32>} : memref<1x1x128xf32, #tpu.memory_space<vmem>>, vector<1x1x128xf32>,
    } else {
    }
    return
  }
  func.func @transform_0(%arg0: i32, %arg1: i32, %arg2: i32) -> (i32, i32, i32, i32) {
    %c1_i32 = arith.constant 1 : i32
    %0 = arith.muli %arg1, %c1_i32 : i32
    %1 = arith.addi %0, %arg2 : i32
    %c0_i32 = arith.constant 0 : i32
    %c0_i32_0 = arith.constant 0 : i32
    %c0_i32_1 = arith.constant 0 : i32
    return %arg0, %c0_i32, %1, %c0_i32_0 : i32, i32, i32, i32
  }
  func.func @transform_1(%arg0: i32, %arg1: i32, %arg2: i32) -> (i32, i32, i32, i32) {
    %c1_i32 = arith.constant 1 : i32
    %0 = arith.muli %arg1, %c1_i32 : i32
    %c2_i32 = arith.constant 2 : i32
    %1 = arith.muli %0, %c2_i32 : i32
    %c1_i32_0 = arith.constant 1 : i32
    %2 = arith.subi %1, %c1_i32_0 : i32
    %c0_i32 = arith.constant 0 : i32
    %3 = arith.maxsi %2, %c0_i32 : i32
    %c0_i32_1 = arith.constant 0 : i32
    %c0_i32_2 = arith.constant 0 : i32
    %c0_i32_3 = arith.constant 0 : i32
    return %arg0, %c0_i32_1, %3, %c0_i32_2 : i32, i32, i32, i32
  }
  func.func @transform_2(%arg0: i32, %arg1: i32, %arg2: i32) -> (i32, i32, i32, i32) {
    %c1_i32 = arith.constant 1 : i32
    %0 = arith.muli %arg1, %c1_i32 : i32
    %1 = arith.addi %0, %arg2 : i32
    %c1_i32_0 = arith.constant 1 : i32
    %2 = arith.addi %1, %c1_i32_0 : i32
    %c2_i32 = arith.constant 2 : i32
    %3 = arith.muli %2, %c2_i32 : i32
    %c1_i32_1 = arith.constant 1 : i32
    %4 = arith.minsi %3, %c1_i32_1 : i32
    %c0_i32 = arith.constant 0 : i32
    %c0_i32_2 = arith.constant 0 : i32
    %c0_i32_3 = arith.constant 0 : i32
    return %arg0, %c0_i32, %4, %c0_i32_2 : i32, i32, i32, i32
  }
  func.func @transform_3(%arg0: i32, %arg1: i32, %arg2: i32) -> (i32, i32, i32) {
    %c1_i32 = arith.constant 1 : i32
    %0 = arith.muli %arg1, %c1_i32 : i32
    %1 = arith.addi %0, %arg2 : i32
    %c0_i32 = arith.constant 0 : i32
    %c0_i32_0 = arith.constant 0 : i32
    return %arg0, %1, %c0_i32 : i32, i32, i32
  }
  func.func @transform_4(%arg0: i32, %arg1: i32, %arg2: i32) -> (i32, i32, i32) {
    %c1_i32 = arith.constant 1 : i32
    %0 = arith.muli %arg1, %c1_i32 : i32
    %c2_i32 = arith.constant 2 : i32
    %1 = arith.muli %0, %c2_i32 : i32
    %c1_i32_0 = arith.constant 1 : i32
    %2 = arith.subi %1, %c1_i32_0 : i32
    %c0_i32 = arith.constant 0 : i32
    %3 = arith.maxsi %2, %c0_i32 : i32
    %c0_i32_1 = arith.constant 0 : i32
    %c0_i32_2 = arith.constant 0 : i32
    return %arg0, %3, %c0_i32_1 : i32, i32, i32
  }
  func.func @transform_5(%arg0: i32, %arg1: i32, %arg2: i32) -> (i32, i32, i32) {
    %c1_i32 = arith.constant 1 : i32
    %0 = arith.muli %arg1, %c1_i32 : i32
    %1 = arith.addi %0, %arg2 : i32
    %c1_i32_0 = arith.constant 1 : i32
    %2 = arith.addi %1, %c1_i32_0 : i32
    %c2_i32 = arith.constant 2 : i32
    %3 = arith.muli %2, %c2_i32 : i32
    %c1_i32_1 = arith.constant 1 : i32
    %4 = arith.minsi %3, %c1_i32_1 : i32
    %c0_i32 = arith.constant 0 : i32
    %c0_i32_2 = arith.constant 0 : i32
    return %arg0, %4, %c0_i32 : i32, i32, i32
  }
  func.func @transform_6(%arg0: i32, %arg1: i32, %arg2: i32) -> (i32, i32, i32) {
    %c1_i32 = arith.constant 1 : i32
    %0 = arith.muli %arg0, %c1_i32 : i32
    %1 = arith.addi %0, %arg1 : i32
    %c0_i32 = arith.constant 0 : i32
    %c0_i32_0 = arith.constant 0 : i32
    %c0_i32_1 = arith.constant 0 : i32
    return %1, %c0_i32, %c0_i32_0 : i32, i32, i32
  }
}

</mosaic_0001>

<llo_original>
// kernel: tpu_custom_call.1
$region0: #{tpu_custom_call.1}
  #allocation0 [shape = 'u32[]', space=smem, size = 0x4, offset = 0x4, fixed_abs, tag = 'smem constant byte address 0x4 - core index']
  #allocation1 [shape = 'u32[144,128]{1,0:T(1,128)}', space=vmem, size = 0x12000, scoped, tag = 'internal scratch']
  #allocation2 [shape = 'f32[2,16]{1,0:T(2,128)}', space=vmem, size = 0x400, scoped, tag = 'scratch operand']
  #allocation3 [shape = 'f32[2,16]{1,0:T(2,128)}', space=vmem, size = 0x400, scoped, tag = 'scratch operand']
  #allocation4 [shape = 'f32[1,16]{1,0:T(1,128)}', space=vmem, size = 0x200, scoped, tag = 'scratch operand']
  #allocation5 [shape = 'f32[1,16]{1,0:T(1,128)}', space=vmem, size = 0x200, scoped, tag = 'scratch operand']
  #allocation6 [shape = 'f32[1,16]{1,0:T(1,128)}', space=vmem, size = 0x200, scoped, tag = 'scratch operand']
  %s0 = inlined_call_operand.hbm [shape: f32[2,4,16,16], index: 0, kind: input, shape index: {}]
  %s1 = inlined_call_operand.hbm [shape: f32[2,4,16,16], index: 1, kind: input, shape index: {}]
  %s2 = inlined_call_operand.hbm [shape: f32[2,4,16,16], index: 2, kind: input, shape index: {}]
  %s3 = inlined_call_operand.hbm [shape: s32[2,16,16], index: 3, kind: input, shape index: {}]
  %s4 = inlined_call_operand.hbm [shape: s32[2,16,16], index: 4, kind: input, shape index: {}]
  %s5 = inlined_call_operand.hbm [shape: s32[2,16,16], index: 5, kind: input, shape index: {}]
  %s6 = inlined_call_operand.hbm [shape: f32[2,1,128], index: 6, kind: output, shape index: {}]
  %s7 = sld [smem:[#allocation0]]
  $region89: #{tpu_custom_call.1} parent=0
    _
  %s9 = ssub.s32 1, %s7
  %s10 = scalar_select 0, %s9, %s7
  $region1: #{tpu_custom_call.1} parent=0
    #allocation7 [shape = 'u8[65536]{0}', space=vmem, size = 0x10000, scoped, tag = 'input window, operand 0']
    #allocation8 [shape = 's32[2]{0}', space=sflag, size = 0x8, scoped, tag = 'scoped memory for tpu_custom_call.1']
    #allocation9 [shape = 's32[2]{0}', space=sflag, size = 0x8, scoped, tag = 'scoped memory for tpu_custom_call.1']
    #allocation10 [shape = 'u8[32768]{0}', space=vmem, size = 0x8000, scoped, tag = 'input window, operand 1']
    #allocation11 [shape = 's32[2]{0}', space=sflag, size = 0x8, scoped, tag = 'scoped memory for tpu_custom_call.1']
    #allocation12 [shape = 'u8[32768]{0}', space=vmem, size = 0x8000, scoped, tag = 'input window, operand 2']
    #allocation13 [shape = 'u8[16384]{0}', space=vmem, size = 0x4000, scoped, tag = 'input window, operand 3']
    #allocation14 [shape = 's32[2]{0}', space=sflag, size = 0x8, scoped, tag = 'scoped memory for tpu_custom_call.1']
    #allocation15 [shape = 'u8[8192]{0}', space=vmem, size = 0x2000, scoped, tag = 'input window, operand 4']
    #allocation16 [shape = 'u8[8192]{0}', space=vmem, size = 0x2000, scoped, tag = 'input window, operand 5']
    #allocation17 [shape = 's32[2]{0}', space=sflag, size = 0x8, scoped, tag = 'scoped memory for tpu_custom_call.1']
    #allocation18 [shape = 'u8[1024]{0}', space=vmem, size = 0x400, scoped, tag = 'output window, operand 0']
    %11 = vsyncpa [#allocation8], 0
    %s12 = scalar_lea.sflag [#allocation8], 1
    %13 = vsyncpa %s12, 0
    %14 = vsyncpa [#allocation11], 0
    %s15 = scalar_lea.sflag [#allocation11], 1
    %16 = vsyncpa %s15, 0
    %17 = vsyncpa [#allocation14], 0
    %s18 = scalar_lea.sflag [#allocation14], 1
    %19 = vsyncpa %s18, 0
    %20 = vsyncpa [#allocation17], 0
    %s21 = scalar_lea.sflag [#allocation17], 1
    %22 = vsyncpa %s21, 0
    %23 = vsyncpa [#allocation9], 0
    %s24 = scalar_lea.sflag [#allocation9], 1
    %25 = vsyncpa %s24, 0
    loop: start=0, step=1, limit=4
    $region2: #{tpu_custom_call.1} parent=1 // loop_pre_header
      _
    $region3: #{tpu_custom_call.1} parent=1 // loop_header
      %s27 = sphi 0, %s31
      %p28 = scmp.ge.s32.totalorder %s27, 4
      %s34 = sphi 0, %s53
      %s35 = sphi 0, %s49
      %s36 = sphi 0, %s45
      %s37 = sphi 0, %s34
      %s38 = sphi 0, %s35
      %s39 = sphi 0, %s36
      %s40 = sphi 0, %s37
      %s41 = sphi 0, %s38
      %s42 = sphi 0, %s39
      %s60 = sphi 0, %s62
      %s63 = sphi 0, %s60
      %s64 = sphi 0, %s63
      %s80 = sphi 0, %s64
      %s96 = sphi 0, %s98
      %s99 = sphi 0, %s96
      %s100 = sphi 0, %s99
      %s116 = sphi 0, %s100
      %s134 = sphi 0, %s136
      %s137 = sphi 0, %s134
      %s138 = sphi 0, %s137
      %s154 = sphi 0, %s138
      %s164 = sphi 0, %s166
      %s167 = sphi 0, %s164
      %s168 = sphi 0, %s167
      %s184 = sphi 0, %s168
      %s200 = sphi 0, %s202
      %s203 = sphi 0, %s200
      %s204 = sphi 0, %s203
      %s220 = sphi 0, %s204
      %s238 = sphi 0, %s240
      %s241 = sphi 0, %s238
      %s242 = sphi 0, %s241
      %s258 = sphi 0, %s242
      %s266 = sphi 0, %s268
      %s269 = sphi 0, %s266
      %s270 = sphi 0, %s269
      %s286 = sphi 0, %s270
    $region4: #{tpu_custom_call.1} parent=1 // loop_header_branch
      %30 = sbr.rel (%p28) target = $region8
    $region5: #{tpu_custom_call.1} parent=1 // loop_body
      %s32 = ssub.s32 %s27, 1
      %s33 = ssub.s32 %s27, 2
      %s43 = sadd.s32 1, %s36
      %p44 = scmp.ge.s32.totalorder %s43, 1
      %s45 = scalar_select %p44, 0, %s43
      %s46 = sadd.s32 1, %s35
      %s47 = scalar_select %p44, %s46, %s35
      %p48 = scmp.ge.s32.totalorder %s47, 1
      %s49 = scalar_select %p48, 0, %s47
      %s50 = sadd.s32 1, %s34
      %s51 = scalar_select %p48, %s50, %s34
      %p52 = scmp.ge.s32.totalorder %s51, 2
      %s53 = scalar_select %p52, 0, %s51
      %s54 = sadd.s32 %s35, %s36
      %s55 = sadd.s32 %s49, %s45
      %s56 = ssub.s32 %s34, %s53
      %s57 = ssub.s32 %s54, %s55
      %s58 = sor.u32 %s56, %s57
      %p59 = scmp.eq.s32.totalorder %s58, 0
      %s61 = sadd.s32 %s60, 1
      %s62 = scalar_select %p59, %s60, %s61
      %p65 = pneg %p59
      %p66 = scmp.eq.s32.totalorder %s27, 1
      %p67 = por %p65, %p66
      %p68 = scmp.ne.s32.totalorder %s60, %s63
      %p69 = scmp.eq.s32.totalorder %s27, 0
      %p70 = por %p68, %p69
      %p71 = scmp.ne.s32.totalorder %s60, %s63
      %p72 = scmp.eq.s32.totalorder %s32, 1
      %p73 = por %p71, %p72
      %p74 = scmp.ne.s32.totalorder %s63, %s64
      %p75 = scmp.eq.s32.totalorder %s32, 0
      %p76 = por %p74, %p75
      %p77 = scmp.ne.s32.totalorder %s63, %s64
      %p78 = scmp.eq.s32.totalorder %s33, 1
      %p79 = por %p77, %p78
      %p81 = scmp.ne.s32.totalorder %s64, %s80
      %p82 = scmp.eq.s32.totalorder %s33, 0
      %p83 = por %p81, %p82
      %s84 = smul.u32 %s35, 2
      %s85 = ssub.s32 %s84, 1
      %p86 = scmp.gt.s32.totalorder %s85, 0
      %s87 = scalar_select %p86, %s85, 0
      %s88 = smul.u32 %s49, 2
      %s89 = ssub.s32 %s88, 1
      %p90 = scmp.gt.s32.totalorder %s89, 0
      %s91 = scalar_select %p90, %s89, 0
      %s92 = ssub.s32 %s34, %s53
      %s93 = ssub.s32 %s87, %s91
      %s94 = sor.u32 %s92, %s93
      %p95 = scmp.eq.s32.totalorder %s94, 0
      %s97 = sadd.s32 %s96, 1
      %s98 = scalar_select %p95, %s96, %s97
      %p101 = pneg %p95
      %p102 = scmp.eq.s32.totalorder %s27, 1
      %p103 = por %p101, %p102
      %p104 = scmp.ne.s32.totalorder %s96, %s99
      %p105 = scmp.eq.s32.totalorder %s27, 0
      %p106 = por %p104, %p105
      %p107 = scmp.ne.s32.totalorder %s96, %s99
      %p108 = scmp.eq.s32.totalorder %s32, 1
      %p109 = por %p107, %p108
      %p110 = scmp.ne.s32.totalorder %s99, %s100
      %p111 = scmp.eq.s32.totalorder %s32, 0
      %p112 = por %p110, %p111
      %p113 = scmp.ne.s32.totalorder %s99, %s100
      %p114 = scmp.eq.s32.totalorder %s33, 1
      %p115 = por %p113, %p114
      %p117 = scmp.ne.s32.totalorder %s100, %s116
      %p118 = scmp.eq.s32.totalorder %s33, 0
      %p119 = por %p117, %p118
      %s120 = sadd.s32 %s35, %s36
      %s121 = sadd.s32 %s120, 1
      %s122 = smul.u32 %s121, 2
      %p123 = scmp.lt.s32.totalorder %s122, 1
      %s124 = scalar_select %p123, %s122, 1
      %s125 = sadd.s32 %s49, %s45
      %s126 = sadd.s32 %s125, 1
      %s127 = smul.u32 %s126, 2
      %p128 = scmp.lt.s32.totalorder %s127, 1
      %s129 = scalar_select %p128, %s127, 1
      %s130 = ssub.s32 %s34, %s53
      %s131 = ssub.s32 %s124, %s129
      %s132 = sor.u32 %s130, %s131
      %p133 = scmp.eq.s32.totalorder %s132, 0
      %s135 = sadd.s32 %s134, 1
      %s136 = scalar_select %p133, %s134, %s135
      %p139 = pneg %p133
      %p140 = scmp.eq.s32.totalorder %s27, 1
      %p141 = por %p139, %p140
      %p142 = scmp.ne.s32.totalorder %s134, %s137
      %p143 = scmp.eq.s32.totalorder %s27, 0
      %p144 = por %p142, %p143
      %p145 = scmp.ne.s32.totalorder %s134, %s137
      %p146 = scmp.eq.s32.totalorder %s32, 1
      %p147 = por %p145, %p146
      %p148 = scmp.ne.s32.totalorder %s137, %s138
      %p149 = scmp.eq.s32.totalorder %s32, 0
      %p150 = por %p148, %p149
      %p151 = scmp.ne.s32.totalorder %s137, %s138
      %p152 = scmp.eq.s32.totalorder %s33, 1
      %p153 = por %p151, %p152
      %p155 = scmp.ne.s32.totalorder %s138, %s154
      %p156 = scmp.eq.s32.totalorder %s33, 0
      %p157 = por %p155, %p156
      %s158 = sadd.s32 %s35, %s36
      %s159 = sadd.s32 %s49, %s45
      %s160 = ssub.s32 %s34, %s53
      %s161 = ssub.s32 %s158, %s159
      %s162 = sor.u32 %s160, %s161
      %p163 = scmp.eq.s32.totalorder %s162, 0
      %s165 = sadd.s32 %s164, 1
      %s166 = scalar_select %p163, %s164, %s165
      %p169 = pneg %p163
      %p170 = scmp.eq.s32.totalorder %s27, 1
      %p171 = por %p169, %p170
      %p172 = scmp.ne.s32.totalorder %s164, %s167
      %p173 = scmp.eq.s32.totalorder %s27, 0
      %p174 = por %p172, %p173
      %p175 = scmp.ne.s32.totalorder %s164, %s167
      %p176 = scmp.eq.s32.totalorder %s32, 1
      %p177 = por %p175, %p176
      %p178 = scmp.ne.s32.totalorder %s167, %s168
      %p179 = scmp.eq.s32.totalorder %s32, 0
      %p180 = por %p178, %p179
      %p181 = scmp.ne.s32.totalorder %s167, %s168
      %p182 = scmp.eq.s32.totalorder %s33, 1
      %p183 = por %p181, %p182
      %p185 = scmp.ne.s32.totalorder %s168, %s184
      %p186 = scmp.eq.s32.totalorder %s33, 0
      %p187 = por %p185, %p186
      %s188 = smul.u32 %s35, 2
      %s189 = ssub.s32 %s188, 1
      %p190 = scmp.gt.s32.totalorder %s189, 0
      %s191 = scalar_select %p190, %s189, 0
      %s192 = smul.u32 %s49, 2
      %s193 = ssub.s32 %s192, 1
      %p194 = scmp.gt.s32.totalorder %s193, 0
      %s195 = scalar_select %p194, %s193, 0
      %s196 = ssub.s32 %s34, %s53
      %s197 = ssub.s32 %s191, %s195
      %s198 = sor.u32 %s196, %s197
      %p199 = scmp.eq.s32.totalorder %s198, 0
      %s201 = sadd.s32 %s200, 1
      %s202 = scalar_select %p199, %s200, %s201
      %p205 = pneg %p199
      %p206 = scmp.eq.s32.totalorder %s27, 1
      %p207 = por %p205, %p206
      %p208 = scmp.ne.s32.totalorder %s200, %s203
      %p209 = scmp.eq.s32.totalorder %s27, 0
      %p210 = por %p208, %p209
      %p211 = scmp.ne.s32.totalorder %s200, %s203
      %p212 = scmp.eq.s32.totalorder %s32, 1
      %p213 = por %p211, %p212
      %p214 = scmp.ne.s32.totalorder %s203, %s204
      %p215 = scmp.eq.s32.totalorder %s32, 0
      %p216 = por %p214, %p215
      %p217 = scmp.ne.s32.totalorder %s203, %s204
      %p218 = scmp.eq.s32.totalorder %s33, 1
      %p219 = por %p217, %p218
      %p221 = scmp.ne.s32.totalorder %s204, %s220
      %p222 = scmp.eq.s32.totalorder %s33, 0
      %p223 = por %p221, %p222
      %s224 = sadd.s32 %s35, %s36
      %s225 = sadd.s32 %s224, 1
      %s226 = smul.u32 %s225, 2
      %p227 = scmp.lt.s32.totalorder %s226, 1
      %s228 = scalar_select %p227, %s226, 1
      %s229 = sadd.s32 %s49, %s45
      %s230 = sadd.s32 %s229, 1
      %s231 = smul.u32 %s230, 2
      %p232 = scmp.lt.s32.totalorder %s231, 1
      %s233 = scalar_select %p232, %s231, 1
      %s234 = ssub.s32 %s34, %s53
      %s235 = ssub.s32 %s228, %s233
      %s236 = sor.u32 %s234, %s235
      %p237 = scmp.eq.s32.totalorder %s236, 0
      %s239 = sadd.s32 %s238, 1
      %s240 = scalar_select %p237, %s238, %s239
      %p243 = pneg %p237
      %p244 = scmp.eq.s32.totalorder %s27, 1
      %p245 = por %p243, %p244
      %p246 = scmp.ne.s32.totalorder %s238, %s241
      %p247 = scmp.eq.s32.totalorder %s27, 0
      %p248 = por %p246, %p247
      %p249 = scmp.ne.s32.totalorder %s238, %s241
      %p250 = scmp.eq.s32.totalorder %s32, 1
      %p251 = por %p249, %p250
      %p252 = scmp.ne.s32.totalorder %s241, %s242
      %p253 = scmp.eq.s32.totalorder %s32, 0
      %p254 = por %p252, %p253
      %p255 = scmp.ne.s32.totalorder %s241, %s242
      %p256 = scmp.eq.s32.totalorder %s33, 1
      %p257 = por %p255, %p256
      %p259 = scmp.ne.s32.totalorder %s242, %s258
      %p260 = scmp.eq.s32.totalorder %s33, 0
      %p261 = por %p259, %p260
      %s262 = sadd.s32 %s34, %s35
      %s263 = sadd.s32 %s53, %s49
      %s264 = ssub.s32 %s262, %s263
      %p265 = scmp.eq.s32.totalorder %s264, 0
      %s267 = sadd.s32 %s266, 1
      %s268 = scalar_select %p265, %s266, %s267
      %p271 = pneg %p265
      %p272 = scmp.eq.s32.totalorder %s27, 1
      %p273 = por %p271, %p272
      %p274 = scmp.ne.s32.totalorder %s266, %s269
      %p275 = scmp.eq.s32.totalorder %s27, 0
      %p276 = por %p274, %p275
      %p277 = scmp.ne.s32.totalorder %s266, %s269
      %p278 = scmp.eq.s32.totalorder %s32, 1
      %p279 = por %p277, %p278
      %p280 = scmp.ne.s32.totalorder %s269, %s270
      %p281 = scmp.eq.s32.totalorder %s32, 0
      %p282 = por %p280, %p281
      %p283 = scmp.ne.s32.totalorder %s269, %s270
      %p284 = scmp.eq.s32.totalorder %s33, 1
      %p285 = por %p283, %p284
      %p287 = scmp.ne.s32.totalorder %s270, %s286
      %p288 = scmp.eq.s32.totalorder %s33, 0
      %p289 = por %p287, %p288
      %p290 = scmp.le.s32.totalorder 1, %s27
      %p291 = scmp.lt.s32.totalorder %s27, 3
      %p292 = pnand %p290, %p291
      %p293 = pneg %p292
      // Predicated region
      $region9: #{tpu_custom_call.1} parent=5 // pred_check
        _
      $region10: #{tpu_custom_call.1} parent=5 // pred_check_branch
        %295 = sbr.rel (%p292) target = $region12
      $region11: #{tpu_custom_call.1} parent=5 // pred_region
        %s296 = ssub.s32 %s27, 1
      $region12: #{tpu_custom_call.1} parent=5 // pred_fallthru
        _
      %p297 = scmp.lt.s32.totalorder %s27, 2
      // Predicated region
      $region13: #{tpu_custom_call.1} parent=5 // pred_check
        %p298 = pneg %p297
      $region14: #{tpu_custom_call.1} parent=5 // pred_check_branch
        %300 = sbr.rel (%p298) target = $region16
      $region15: #{tpu_custom_call.1} parent=5 // pred_region
        // Predicated region
        $region17: #{tpu_custom_call.1} parent=15 // pred_check
          %p301 = pneg %p70
        $region18: #{tpu_custom_call.1} parent=15 // pred_check_branch
          %303 = sbr.rel (%p301) target = $region20
        $region19: #{tpu_custom_call.1} parent=15 // pred_region
          %s304 = sand.u32 %s60, 1
          %s305 = scalar_lea.sflag [#allocation8], %s304
          %s306 = sand.u32 %s60, 1
          %s307 = smul.addr %s306, 64
          %s308 = scalar_lea.vmem [#allocation7], %s307
          %s309 = sadd.s32 %s35, %s36
          %s310 = smul.u32 2, %s309
          %s312 = ssub.s32 1024, 1024
          %313 = vsyncadd %s305, %s312
          %s314 = smul.addr %s34, 8
          %s315 = sadd.s32 %s310, %s314
          %s316 = smul.addr %s315, 128
          %s317 = scalar_lea.hbm %s0, %s316
          %s318 = sshll.u32 %s308, 4
          %s319 = int_to_ptr.vmem [resolvable:$true] %s318
          %324 = dma.hbm_to_vmem [thread:$0]  %s317, 1024, %s319, %s305, 128, 128, 8
        $region20: #{tpu_custom_call.1} parent=15 // pred_fallthru
          _
        // Predicated region
        $region21: #{tpu_custom_call.1} parent=15 // pred_check
          %p325 = pneg %p106
        $region22: #{tpu_custom_call.1} parent=15 // pred_check_branch
          %327 = sbr.rel (%p325) target = $region24
        $region23: #{tpu_custom_call.1} parent=15 // pred_region
          %s328 = sand.u32 %s27, 1
          %s329 = scalar_lea.sflag [#allocation11], %s328
          %s330 = sand.u32 %s96, 1
          %s331 = smul.addr %s330, 32
          %s332 = scalar_lea.vmem [#allocation10], %s331
          %s333 = smul.u32 %s35, 2
          %s334 = ssub.s32 %s333, 1
          %p335 = scmp.gt.s32.totalorder %s334, 0
          %s336 = scalar_select %p335, %s334, 0
          %s338 = ssub.s32 512, 512
          %339 = vsyncadd %s329, %s338
          %s340 = smul.addr %s34, 8
          %s341 = sadd.s32 %s336, %s340
          %s342 = smul.addr %s341, 128
          %s343 = scalar_lea.hbm %s1, %s342
          %s344 = sshll.u32 %s332, 4
          %s345 = int_to_ptr.vmem [resolvable:$true] %s344
          %350 = dma.hbm_to_vmem [thread:$0]  %s343, 512, %s345, %s329, 256, 128, 8
        $region24: #{tpu_custom_call.1} parent=15 // pred_fallthru
          _
        // Predicated region
        $region25: #{tpu_custom_call.1} parent=15 // pred_check
          %p351 = pneg %p144
        $region26: #{tpu_custom_call.1} parent=15 // pred_check_branch
          %353 = sbr.rel (%p351) target = $region28
        $region27: #{tpu_custom_call.1} parent=15 // pred_region
          %s354 = sand.u32 %s27, 1
          %s355 = scalar_lea.sflag [#allocation11], %s354
          %s356 = sand.u32 %s134, 1
          %s357 = smul.addr %s356, 32
          %s358 = scalar_lea.vmem [#allocation12], %s357
          %s359 = sadd.s32 %s35, %s36
          %s360 = sadd.s32 %s359, 1
          %s361 = smul.u32 %s360, 2
          %p362 = scmp.lt.s32.totalorder %s361, 1
          %s363 = scalar_select %p362, %s361, 1
          %s365 = ssub.s32 512, 512
          %366 = vsyncadd %s355, %s365
          %s367 = smul.addr %s34, 8
          %s368 = sadd.s32 %s363, %s367
          %s369 = smul.addr %s368, 128
          %s370 = scalar_lea.hbm %s2, %s369
          %s371 = sshll.u32 %s358, 4
          %s372 = int_to_ptr.vmem [resolvable:$true] %s371
          %377 = dma.hbm_to_vmem [thread:$0]  %s370, 512, %s372, %s355, 256, 128, 8
        $region28: #{tpu_custom_call.1} parent=15 // pred_fallthru
          _
        // Predicated region
        $region29: #{tpu_custom_call.1} parent=15 // pred_check
          %p378 = pneg %p174
        $region30: #{tpu_custom_call.1} parent=15 // pred_check_branch
          %380 = sbr.rel (%p378) target = $region32
        $region31: #{tpu_custom_call.1} parent=15 // pred_region
          %s381 = sand.u32 %s27, 1
          %s382 = scalar_lea.sflag [#allocation14], %s381
          %s383 = sand.u32 %s164, 1
          %s384 = smul.addr %s383, 16
          %s385 = scalar_lea.vmem [#allocation13], %s384
          %s386 = sadd.s32 %s35, %s36
          %s387 = smul.u32 2, %s386
          %s389 = ssub.s32 256, 256
          %390 = vsyncadd %s382, %s389
          %s391 = smul.addr %s34, 2
          %s392 = sadd.s32 %s387, %s391
          %s393 = smul.addr %s392, 128
          %s394 = scalar_lea.hbm %s3, %s393
          %s395 = sshll.u32 %s385, 4
          %s396 = int_to_ptr.vmem [resolvable:$true] %s395
          %401 = dma.hbm_to_vmem [thread:$0]  %s394, 256, %s396, %s382, 128, 128, 8
        $region32: #{tpu_custom_call.1} parent=15 // pred_fallthru
          _
        // Predicated region
        $region33: #{tpu_custom_call.1} parent=15 // pred_check
          %p402 = pneg %p210
        $region34: #{tpu_custom_call.1} parent=15 // pred_check_branch
          %404 = sbr.rel (%p402) target = $region36
        $region35: #{tpu_custom_call.1} parent=15 // pred_region
          %s405 = sand.u32 %s27, 1
          %s406 = scalar_lea.sflag [#allocation14], %s405
          %s407 = sand.u32 %s200, 1
          %s408 = smul.addr %s407, 8
          %s409 = scalar_lea.vmem [#allocation15], %s408
          %s410 = smul.u32 %s35, 2
          %s411 = ssub.s32 %s410, 1
          %p412 = scmp.gt.s32.totalorder %s411, 0
          %s413 = scalar_select %p412, %s411, 0
          %s415 = ssub.s32 128, 128
          %416 = vsyncadd %s406, %s415
          %s417 = smul.addr %s34, 2
          %s418 = sadd.s32 %s413, %s417
          %s419 = smul.addr %s418, 128
          %s420 = scalar_lea.hbm %s4, %s419
          %s422 = sshll.u32 %s409, 4
          %s423 = int_to_ptr.vmem [resolvable:$true] %s422
          %425 = dma.hbm_to_vmem [thread:$0]  %s420, 128, %s423, %s406
        $region36: #{tpu_custom_call.1} parent=15 // pred_fallthru
          _
        // Predicated region
        $region37: #{tpu_custom_call.1} parent=15 // pred_check
          %p426 = pneg %p248
        $region38: #{tpu_custom_call.1} parent=15 // pred_check_branch
          %428 = sbr.rel (%p426) target = $region40
        $region39: #{tpu_custom_call.1} parent=15 // pred_region
          %s429 = sand.u32 %s238, 1
          %s430 = scalar_lea.sflag [#allocation17], %s429
          %s431 = sand.u32 %s238, 1
          %s432 = smul.addr %s431, 8
          %s433 = scalar_lea.vmem [#allocation16], %s432
          %s434 = sadd.s32 %s35, %s36
          %s435 = sadd.s32 %s434, 1
          %s436 = smul.u32 %s435, 2
          %p437 = scmp.lt.s32.totalorder %s436, 1
          %s438 = scalar_select %p437, %s436, 1
          %s440 = ssub.s32 128, 128
          %441 = vsyncadd %s430, %s440
          %s442 = smul.addr %s34, 2
          %s443 = sadd.s32 %s438, %s442
          %s444 = smul.addr %s443, 128
          %s445 = scalar_lea.hbm %s5, %s444
          %s447 = sshll.u32 %s433, 4
          %s448 = int_to_ptr.vmem [resolvable:$true] %s447
          %450 = dma.hbm_to_vmem [thread:$0]  %s445, 128, %s448, %s430
        $region40: #{tpu_custom_call.1} parent=15 // pred_fallthru
          _
      $region16: #{tpu_custom_call.1} parent=5 // pred_fallthru
        _
      %p451 = scmp.le.s32.totalorder 1, %s27
      %p452 = scmp.lt.s32.totalorder %s27, 3
      %p453 = pnand %p451, %p452
      %p454 = pneg %p453
      // Predicated region
      $region41: #{tpu_custom_call.1} parent=5 // pred_check
        _
      $region42: #{tpu_custom_call.1} parent=5 // pred_check_branch
        %456 = sbr.rel (%p453) target = $region44
      $region43: #{tpu_custom_call.1} parent=5 // pred_region
        %s457 = ssub.s32 %s27, 1
        %s458 = sand.u32 %s63, 1
        %s459 = scalar_lea.sflag [#allocation8], %s458
        %s460 = sand.u32 %s63, 1
        %s461 = smul.addr %s460, 64
        %s462 = scalar_lea.vmem [#allocation7], %s461
        // Predicated region
        $region45: #{tpu_custom_call.1} parent=43 // pred_check
          %p463 = pneg %p76
        $region46: #{tpu_custom_call.1} parent=43 // pred_check_branch
          %465 = sbr.rel (%p463) target = $region48
        $region47: #{tpu_custom_call.1} parent=43 // pred_region
          %466 = dma.done %s459, 1024
        $region48: #{tpu_custom_call.1} parent=43 // pred_fallthru
          _
        %s467 = sand.u32 %s32, 1
        %s468 = scalar_lea.sflag [#allocation11], %s467
        %s469 = sand.u32 %s99, 1
        %s470 = smul.addr %s469, 32
        %s471 = scalar_lea.vmem [#allocation10], %s470
        // Predicated region
        $region49: #{tpu_custom_call.1} parent=43 // pred_check
          %p472 = pneg %p112
        $region50: #{tpu_custom_call.1} parent=43 // pred_check_branch
          %474 = sbr.rel (%p472) target = $region52
        $region51: #{tpu_custom_call.1} parent=43 // pred_region
          %475 = dma.done %s468, 512
        $region52: #{tpu_custom_call.1} parent=43 // pred_fallthru
          _
        %s476 = sand.u32 %s32, 1
        %s477 = scalar_lea.sflag [#allocation11], %s476
        %s478 = sand.u32 %s137, 1
        %s479 = smul.addr %s478, 32
        %s480 = scalar_lea.vmem [#allocation12], %s479
        // Predicated region
        $region53: #{tpu_custom_call.1} parent=43 // pred_check
          %p481 = pneg %p150
        $region54: #{tpu_custom_call.1} parent=43 // pred_check_branch
          %483 = sbr.rel (%p481) target = $region56
        $region55: #{tpu_custom_call.1} parent=43 // pred_region
          %484 = dma.done %s477, 512
        $region56: #{tpu_custom_call.1} parent=43 // pred_fallthru
          _
        %s485 = sand.u32 %s32, 1
        %s486 = scalar_lea.sflag [#allocation14], %s485
        %s487 = sand.u32 %s167, 1
        %s488 = smul.addr %s487, 16
        %s489 = scalar_lea.vmem [#allocation13], %s488
        // Predicated region
        $region57: #{tpu_custom_call.1} parent=43 // pred_check
          %p490 = pneg %p180
        $region58: #{tpu_custom_call.1} parent=43 // pred_check_branch
          %492 = sbr.rel (%p490) target = $region60
        $region59: #{tpu_custom_call.1} parent=43 // pred_region
          %493 = dma.done %s486, 256
        $region60: #{tpu_custom_call.1} parent=43 // pred_fallthru
          _
        %s494 = sand.u32 %s32, 1
        %s495 = scalar_lea.sflag [#allocation14], %s494
        %s496 = sand.u32 %s203, 1
        %s497 = smul.addr %s496, 8
        %s498 = scalar_lea.vmem [#allocation15], %s497
        // Predicated region
        $region61: #{tpu_custom_call.1} parent=43 // pred_check
          %p499 = pneg %p216
        $region62: #{tpu_custom_call.1} parent=43 // pred_check_branch
          %501 = sbr.rel (%p499) target = $region64
        $region63: #{tpu_custom_call.1} parent=43 // pred_region
          %502 = dma.done %s495, 128
        $region64: #{tpu_custom_call.1} parent=43 // pred_fallthru
          _
        %s503 = sand.u32 %s241, 1
        %s504 = scalar_lea.sflag [#allocation17], %s503
        %s505 = sand.u32 %s241, 1
        %s506 = smul.addr %s505, 8
        %s507 = scalar_lea.vmem [#allocation16], %s506
        // Predicated region
        $region65: #{tpu_custom_call.1} parent=43 // pred_check
          %p508 = pneg %p254
        $region66: #{tpu_custom_call.1} parent=43 // pred_check_branch
          %510 = sbr.rel (%p508) target = $region68
        $region67: #{tpu_custom_call.1} parent=43 // pred_region
          %511 = dma.done %s504, 128
        $region68: #{tpu_custom_call.1} parent=43 // pred_fallthru
          _
        %s512 = sand.u32 %s63, 1
        %s513 = scalar_lea.sflag [#allocation8], %s512
        %s514 = sand.u32 %s63, 1
        %s515 = smul.addr %s514, 64
        %s516 = scalar_lea.vmem [#allocation7], %s515
        %p517 = pneg %p76
        %p518 = pneg %p73
        %s519 = sand.u32 %s32, 1
        %s520 = scalar_lea.sflag [#allocation11], %s519
        %s521 = sand.u32 %s99, 1
        %s522 = smul.addr %s521, 32
        %s523 = scalar_lea.vmem [#allocation10], %s522
        %p524 = pneg %p112
        %p525 = pneg %p109
        %s526 = sand.u32 %s32, 1
        %s527 = scalar_lea.sflag [#allocation11], %s526
        %s528 = sand.u32 %s137, 1
        %s529 = smul.addr %s528, 32
        %s530 = scalar_lea.vmem [#allocation12], %s529
        %p531 = pneg %p150
        %p532 = pneg %p147
        %s533 = sand.u32 %s32, 1
        %s534 = scalar_lea.sflag [#allocation14], %s533
        %s535 = sand.u32 %s167, 1
        %s536 = smul.addr %s535, 16
        %s537 = scalar_lea.vmem [#allocation13], %s536
        %p538 = pneg %p180
        %p539 = pneg %p177
        %s540 = sand.u32 %s32, 1
        %s541 = scalar_lea.sflag [#allocation14], %s540
        %s542 = sand.u32 %s203, 1
        %s543 = smul.addr %s542, 8
        %s544 = scalar_lea.vmem [#allocation15], %s543
        %p545 = pneg %p216
        %p546 = pneg %p213
        %s547 = sand.u32 %s241, 1
        %s548 = scalar_lea.sflag [#allocation17], %s547
        %s549 = sand.u32 %s241, 1
        %s550 = smul.addr %s549, 8
        %s551 = scalar_lea.vmem [#allocation16], %s550
        %p552 = pneg %p254
        %p553 = pneg %p251
        %p554 = pneg %p282
        %p555 = pneg %p279
        %s556 = sand.u32 %s269, 1
        %s557 = scalar_lea.sflag [#allocation9], %s556
        %s558 = sand.u32 %s269, 1
        %s559 = scalar_lea.vmem [#allocation18], %s558
        %s560 = sadd.s32 %s38, %s39
        %s561 = smul.u32 2, %s560
        %s562 = smul.u32 %s38, 2
        %s563 = ssub.s32 %s562, 1
        %p564 = scmp.gt.s32.totalorder %s563, 0
        %s565 = scalar_select %p564, %s563, 0
        %s566 = sadd.s32 %s38, %s39
        %s567 = sadd.s32 %s566, 1
        %s568 = smul.u32 %s567, 2
        %p569 = scmp.lt.s32.totalorder %s568, 1
        %s570 = scalar_select %p569, %s568, 1
        %s571 = sadd.s32 %s38, %s39
        %s572 = smul.u32 2, %s571
        %s573 = smul.u32 %s38, 2
        %s574 = ssub.s32 %s573, 1
        %p575 = scmp.gt.s32.totalorder %s574, 0
        %s576 = scalar_select %p575, %s574, 0
        %s577 = sadd.s32 %s38, %s39
        %s578 = sadd.s32 %s577, 1
        %s579 = smul.u32 %s578, 2
        %p580 = scmp.lt.s32.totalorder %s579, 1
        %s581 = scalar_select %p580, %s579, 1
        %s582 = sadd.s32 %s37, %s38
        %s583 = sadd.s32 %s38, %s39
        %p584 = scmp.eq.s32.totalorder %s39, 0
        // Predicated region
        $region69: #{tpu_custom_call.1} parent=43 // pred_check
          %p585 = pneg %p584
        $region70: #{tpu_custom_call.1} parent=43 // pred_check_branch
          %587 = sbr.rel (%p585) target = $region72
        $region71: #{tpu_custom_call.1} parent=43 // pred_region
          %vm588 = vcmask 122880
          %589 = vst.msk [vmem:[#allocation4] sm:$0x1] %vm588, 0.0
          %590 = vst.msk [vmem:[#allocation5] sm:$0x1] %vm588, 0.0
          %591 = vst.msk [vmem:[#allocation6] sm:$0x1] %vm588, 0.0
          %p592 = scmp.gt.s32.totalorder %s38, 0
          %s593 = scalar_select %p592, 1, 0
          %s594 = scvt.s32.f32 %s593
          %v595 = vld [vmem:[%s498 + $0x6] sm:$0x3]
          %vm596 = vcmp.ne.s32.totalorder %v595, 255
          %v597 = vsel %vm596, 1, 0
          %v598 = vcvt.s32.f32 %v597
          %v599 = vld [vmem:[%s471 + $0x6] sm:$0x3]
          %s600 = scalar_lea.vmem %s471, 8 [#allocation10]
          %v601 = vld [vmem:[%s600 + $0x6] sm:$0x3]
          %vm602 = vcmp.gt.f32.partialorder %v601, %v599
          %v603 = vsel %vm602, 1.0, 0.0
          %v604 = vmax.f32 %v599, %v601
          %s605 = scalar_lea.vmem %s471, 16 [#allocation10]
          %v606 = vld [vmem:[%s605 + $0x6] sm:$0x3]
          %vm607 = vcmp.gt.f32.partialorder %v606, %v604
          %v608 = vsel %vm607, 2.0, %v603
          %v609 = vmax.f32 %v604, %v606
          %s610 = scalar_lea.vmem %s471, 24 [#allocation10]
          %v611 = vld [vmem:[%s610 + $0x6] sm:$0x3]
          %vm612 = vcmp.gt.f32.partialorder %v611, %v609
          %v613 = vsel %vm612, 3.0, %v608
          %v614 = vstv %s594
          %v615 = vmul.f32 %v598, %v614
          %vm616 = vcmask 123904
          %617 = vst.msk [vmem:[#allocation2] sm:$0x3] %vm616, %v615
          %618 = vst.msk [vmem:[#allocation3] sm:$0x3] %vm616, %v613
        $region72: #{tpu_custom_call.1} parent=43 // pred_fallthru
          _
        %v619 = vld [vmem:[%s489] sm:$0xff]
        %v620 = vld [vmem:[%s489 + $0x8] sm:$0xff]
        %vm621 = vcmp.ne.s32.totalorder %v619, 255
        %vm622 = vcmp.ne.s32.totalorder %v620, 255
        %v623 = vsel %vm621, 1, 0
        %v624 = vsel %vm622, 1, 0
        %v625 = vcvt.s32.f32 %v623
        %v626 = vcvt.s32.f32 %v624
        %v627 = vlaneseq
        %v628 = vshrl.u32 %v627, 7
        %v629 = vadd.s32 %v628, 8
        %v630 = vlaneseq
        %v631 = vand.u32 %v630, 127
        %v632 = vld [vmem:[#allocation2] sm:$0x3]
        %v633 = vld [vmem:[#allocation3] sm:$0x3]
        %p634 = scmp.lt.s32.totalorder %s583, 0
        %s635 = scalar_select %p634, 1, 0
        %s636 = scvt.s32.f32 %s635
        %v637 = vld [vmem:[%s507] sm:$0x3]
        %vm638 = vcmp.ne.s32.totalorder %v637, 255
        %v639 = vsel %vm638, 1, 0
        %v640 = vcvt.s32.f32 %v639
        %v641 = vstv %s636
        %v642 = vmul.f32 %v640, %v641
        %v643 = vld [vmem:[%s462] sm:$0xff]
        %v644 = vld [vmem:[%s462 + $0x8] sm:$0xff]
        %v645 = vld [vmem:[%s480] sm:$0x3]
        %s646 = scalar_lea.vmem %s462, 16 [#allocation7]
        %v647 = vld [vmem:[%s646] sm:$0xff]
        %v648 = vld [vmem:[%s646 + $0x8] sm:$0xff]
        %vm649 = vcmp.gt.f32.partialorder %v647, %v643
        %vm650 = vcmp.gt.f32.partialorder %v648, %v644
        %v651 = vsel %vm649, 1.0, 0.0
        %v652 = vsel %vm650, 1.0, 0.0
        %v653 = vmax.f32 %v643, %v647
        %v654 = vmax.f32 %v644, %v648
        %s655 = scalar_lea.vmem %s480, 8 [#allocation12]
        %v656 = vld [vmem:[%s655] sm:$0x3]
        %vm657 = vcmp.gt.f32.partialorder %v656, %v645
        %v658 = vsel %vm657, 1.0, 0.0
        %v659 = vmax.f32 %v645, %v656
        %s660 = scalar_lea.vmem %s462, 32 [#allocation7]
        %v661 = vld [vmem:[%s660] sm:$0xff]
        %v662 = vld [vmem:[%s660 + $0x8] sm:$0xff]
        %vm663 = vcmp.gt.f32.partialorder %v661, %v653
        %vm664 = vcmp.gt.f32.partialorder %v662, %v654
        %v665 = vsel %vm663, 2.0, %v651
        %v666 = vsel %vm664, 2.0, %v652
        %v667 = vmax.f32 %v653, %v661
        %v668 = vmax.f32 %v654, %v662
        %s669 = scalar_lea.vmem %s480, 16 [#allocation12]
        %v670 = vld [vmem:[%s669] sm:$0x3]
        %vm671 = vcmp.gt.f32.partialorder %v670, %v659
        %v672 = vsel %vm671, 2.0, %v658
        %v673 = vmax.f32 %v659, %v670
        %s674 = scalar_lea.vmem %s462, 48 [#allocation7]
        %v675 = vld [vmem:[%s674] sm:$0xff]
        %v676 = vld [vmem:[%s674 + $0x8] sm:$0xff]
        %vm677 = vcmp.gt.f32.partialorder %v675, %v667
        %vm678 = vcmp.gt.f32.partialorder %v676, %v668
        %v679 = vsel %vm677, 3.0, %v665
        %v680 = vsel %vm678, 3.0, %v666
        %v681 = vmax.f32 %v667, %v675
        %v682 = vmax.f32 %v668, %v676
        %s683 = scalar_lea.vmem %s480, 24 [#allocation12]
        %v684 = vld [vmem:[%s683] sm:$0x3]
        %vm685 = vcmp.gt.f32.partialorder %v684, %v673
        %v686 = vsel %vm685, 3.0, %v672
        %vm687 = vcmp.lt.s32.totalorder %v628, 15
        %vm688 = vcmp.lt.s32.totalorder %v629, 15
        %v689 = vrot.slane %v625, 1
        %v690 = vrot.slane %v626, 1
        %vm691 = vcmp.lt.s32.totalorder %v628, 7
        %v692 = vsel %vm691, %v689, %v690
        %v693 = vsel %vm691, %v690, %v689
        %v694 = vsel %vm687, %v692, 0.0
        %v695 = vsel %vm688, %v693, 0.0
        %v696 = vadd.f32 %v625, %v694
        %v697 = vadd.f32 %v626, %v695
        %vm698 = vcmp.ge.s32.totalorder %v628, 1
        %vm699 = vcmp.ge.s32.totalorder %v629, 1
        %v700 = vrot.slane %v625, 7
        %v701 = vrot.slane %v626, 7
        %vm702 = vcmp.lt.s32.totalorder %v628, 1
        %v703 = vsel %vm702, %v700, %v701
        %v704 = vsel %vm702, %v701, %v700
        %v705 = vsel %vm698, %v704, 0.0
        %v706 = vsel %vm699, %v703, 0.0
        %v707 = vadd.f32 %v696, %v705
        %v708 = vadd.f32 %v697, %v706
        %vm709 = vcmp.lt.s32.totalorder %v628, 14
        %vm710 = vcmp.lt.s32.totalorder %v629, 14
        %v711 = vrot.slane %v625, 2
        %v712 = vrot.slane %v626, 2
        %vm713 = vcmp.lt.s32.totalorder %v628, 6
        %v714 = vsel %vm713, %v711, %v712
        %v715 = vsel %vm713, %v712, %v711
        %v716 = vsel %vm709, %v714, 0.0
        %v717 = vsel %vm710, %v715, 0.0
        %v718 = vadd.f32 %v707, %v716
        %v719 = vadd.f32 %v708, %v717
        %vm720 = vcmp.ge.s32.totalorder %v628, 2
        %vm721 = vcmp.ge.s32.totalorder %v629, 2
        %v722 = vrot.slane %v625, 6
        %v723 = vrot.slane %v626, 6
        %vm724 = vcmp.lt.s32.totalorder %v628, 2
        %v725 = vsel %vm724, %v722, %v723
        %v726 = vsel %vm724, %v723, %v722
        %v727 = vsel %vm720, %v726, 0.0
        %v728 = vsel %vm721, %v725, 0.0
        %v729 = vadd.f32 %v718, %v727
        %v730 = vadd.f32 %v719, %v728
        %vm731 = vcmp.le.s32.totalorder %v628, 0
        %vm732 = vcmp.le.s32.totalorder %v629, 0
        %v733 = vlaneseq
        %v734 = vshrl.u32 %v733, 7
        %v735 = vsub.s32 0, %v734
        %v736 = vrot.slane %v632, %v735
        %v737 = vsel %vm731, %v736, 0.0
        %v738 = vsel %vm732, %v736, 0.0
        %v739 = vadd.f32 %v729, %v737
        %v740 = vadd.f32 %v730, %v738
        %vm741 = vcmp.ge.s32.totalorder %v628, 14
        %vm742 = vcmp.ge.s32.totalorder %v629, 14
        %v743 = vlaneseq
        %v744 = vshrl.u32 %v743, 7
        %v745 = vsub.s32 0, %v744
        %v746 = vrot.slane %v642, %v745
        %v747 = vsel %vm741, %v746, 0.0
        %v748 = vsel %vm742, %v746, 0.0
        %v749 = vadd.f32 %v739, %v747
        %v750 = vadd.f32 %v740, %v748
        %vm751 = vcmp.le.s32.totalorder %v628, 1
        %vm752 = vcmp.le.s32.totalorder %v629, 1
        %v753 = vlaneseq
        %v754 = vshrl.u32 %v753, 7
        %v755 = vsub.s32 1, %v754
        %v756 = vrot.slane %v632, %v755
        %v757 = vsel %vm751, %v756, 0.0
        %v758 = vsel %vm752, %v756, 0.0
        %v759 = vadd.f32 %v749, %v757
        %v760 = vadd.f32 %v750, %v758
        %vm761 = vcmp.ge.s32.totalorder %v628, 15
        %vm762 = vcmp.ge.s32.totalorder %v629, 15
        %v763 = vlaneseq
        %v764 = vshrl.u32 %v763, 7
        %v765 = vsub.s32 1, %v764
        %v766 = vrot.slane %v642, %v765
        %v767 = vsel %vm761, %v766, 0.0
        %v768 = vsel %vm762, %v766, 0.0
        %v769 = vadd.f32 %v759, %v767
        %v770 = vadd.f32 %v760, %v768
        %vm771 = vcmp.lt.s32.totalorder %v631, 15
        %vm772 = vcmask 1047680
        %773 = vrot.lane.b32.xlu0 %v769, 16
        %v774 = vpop.permute.xlu0 %773
        %v775 = vsel %vm772, %v774, %v769
        %776 = vrot.lane.b32.xlu0 %v770, 16
        %v777 = vpop.permute.xlu0 %776
        %v778 = vsel %vm772, %v777, %v770
        %779 = vrot.lane.b32.xlu0 %v775, 16
        %v780 = vpop.permute.xlu0 %779
        %781 = vrot.lane.b32.xlu0 %v778, 16
        %v782 = vpop.permute.xlu0 %781
        %v783 = vsel %vm772, %v780, %v769
        %v784 = vsel %vm772, %v782, %v770
        %787 = vrot.lane.b32.xlu0 %v783, 127
        %v788 = vpop.permute.xlu0 %787
        %789 = vrot.lane.b32.xlu0 %v784, 127
        %v790 = vpop.permute.xlu0 %789
        %v793 = vsel %vm771, %v788, 0.0
        %v794 = vsel %vm771, %v790, 0.0
        %v795 = vadd.f32 %v769, %v793
        %v796 = vadd.f32 %v770, %v794
        %vm797 = vcmp.ge.s32.totalorder %v631, 1
        %798 = vrot.lane.b32.xlu0 %v783, 113
        %v799 = vpop.permute.xlu0 %798
        %800 = vrot.lane.b32.xlu0 %v784, 113
        %v801 = vpop.permute.xlu0 %800
        %v804 = vsel %vm797, %v799, 0.0
        %v805 = vsel %vm797, %v801, 0.0
        %v806 = vadd.f32 %v795, %v804
        %v807 = vadd.f32 %v796, %v805
        %vm808 = vcmp.lt.s32.totalorder %v631, 14
        %809 = vrot.lane.b32.xlu0 %v783, 126
        %v810 = vpop.permute.xlu0 %809
        %811 = vrot.lane.b32.xlu0 %v784, 126
        %v812 = vpop.permute.xlu0 %811
        %v815 = vsel %vm808, %v810, 0.0
        %v816 = vsel %vm808, %v812, 0.0
        %v817 = vadd.f32 %v806, %v815
        %v818 = vadd.f32 %v807, %v816
        %vm819 = vcmp.ge.s32.totalorder %v631, 2
        %820 = vrot.lane.b32.xlu0 %v783, 114
        %v821 = vpop.permute.xlu0 %820
        %822 = vrot.lane.b32.xlu0 %v784, 114
        %v823 = vpop.permute.xlu0 %822
        %v826 = vsel %vm819, %v821, 0.0
        %v827 = vsel %vm819, %v823, 0.0
        %v828 = vadd.f32 %v817, %v826
        %v829 = vadd.f32 %v818, %v827
        %v830 = vsub.f32 %v643, %v681
        %v831 = vsub.f32 %v644, %v682
        %v832 = vmul.f32 %v830, 1.442695
        %v833 = vpow.pop %v832
        %v834 = vmul.f32 %v831, 1.442695
        %v835 = vpow.pop %v834
        %v836 = vadd.f32 %v833, 0.0
        %v837 = vadd.f32 %v835, 0.0
        %vm838 = vcmp.eq.s32.totalorder %v619, 0
        %vm839 = vcmp.eq.s32.totalorder %v620, 0
        %v840 = vsel %vm838, %v643, 0.0
        %v841 = vsel %vm839, %v644, 0.0
        %v842 = vadd.f32 %v840, 0.0
        %v843 = vadd.f32 %v841, 0.0
        %vm844 = vcmp.eq.f32.partialorder %v679, 0.0
        %vm845 = vcmp.eq.f32.partialorder %v680, 0.0
        %v846 = vsel %vm844, %v625, 0.0
        %v847 = vsel %vm845, %v626, 0.0
        %vm848 = vcmp.eq.f32.partialorder %v633, 0.0
        %v849 = vsel %vm848, %v632, 0.0
        %vm850 = vcmp.eq.f32.partialorder %v686, 0.0
        %v851 = vsel %vm850, %v642, 0.0
        %v852 = vrot.slane %v846, 1
        %v853 = vrot.slane %v847, 1
        %v854 = vsel %vm691, %v852, %v853
        %v855 = vsel %vm691, %v853, %v852
        %v856 = vsel %vm687, %v854, 0.0
        %v857 = vsel %vm688, %v855, 0.0
        %v858 = vadd.f32 %v846, %v856
        %v859 = vadd.f32 %v847, %v857
        %v860 = vrot.slane %v846, 7
        %v861 = vrot.slane %v847, 7
        %v862 = vsel %vm702, %v860, %v861
        %v863 = vsel %vm702, %v861, %v860
        %v864 = vsel %vm698, %v863, 0.0
        %v865 = vsel %vm699, %v862, 0.0
        %v866 = vadd.f32 %v858, %v864
        %v867 = vadd.f32 %v859, %v865
        %v868 = vrot.slane %v846, 2
        %v869 = vrot.slane %v847, 2
        %v870 = vsel %vm713, %v868, %v869
        %v871 = vsel %vm713, %v869, %v868
        %v872 = vsel %vm709, %v870, 0.0
        %v873 = vsel %vm710, %v871, 0.0
        %v874 = vadd.f32 %v866, %v872
        %v875 = vadd.f32 %v867, %v873
        %v876 = vrot.slane %v846, 6
        %v877 = vrot.slane %v847, 6
        %v878 = vsel %vm724, %v876, %v877
        %v879 = vsel %vm724, %v877, %v876
        %v880 = vsel %vm720, %v879, 0.0
        %v881 = vsel %vm721, %v878, 0.0
        %v882 = vadd.f32 %v874, %v880
        %v883 = vadd.f32 %v875, %v881
        %v884 = vlaneseq
        %v885 = vshrl.u32 %v884, 7
        %v886 = vsub.s32 0, %v885
        %v887 = vrot.slane %v849, %v886
        %v888 = vsel %vm731, %v887, 0.0
        %v889 = vsel %vm732, %v887, 0.0
        %v890 = vadd.f32 %v882, %v888
        %v891 = vadd.f32 %v883, %v889
        %v892 = vlaneseq
        %v893 = vshrl.u32 %v892, 7
        %v894 = vsub.s32 0, %v893
        %v895 = vrot.slane %v851, %v894
        %v896 = vsel %vm741, %v895, 0.0
        %v897 = vsel %vm742, %v895, 0.0
        %v898 = vadd.f32 %v890, %v896
        %v899 = vadd.f32 %v891, %v897
        %v900 = vlaneseq
        %v901 = vshrl.u32 %v900, 7
        %v902 = vsub.s32 1, %v901
        %v903 = vrot.slane %v849, %v902
        %v904 = vsel %vm751, %v903, 0.0
        %v905 = vsel %vm752, %v903, 0.0
        %v906 = vadd.f32 %v898, %v904
        %v907 = vadd.f32 %v899, %v905
        %v908 = vlaneseq
        %v909 = vshrl.u32 %v908, 7
        %v910 = vsub.s32 1, %v909
        %v911 = vrot.slane %v851, %v910
        %v912 = vsel %vm761, %v911, 0.0
        %v913 = vsel %vm762, %v911, 0.0
        %v914 = vadd.f32 %v906, %v912
        %v915 = vadd.f32 %v907, %v913
        %916 = vrot.lane.b32.xlu0 %v914, 16
        %v917 = vpop.permute.xlu0 %916
        %v918 = vsel %vm772, %v917, %v914
        %919 = vrot.lane.b32.xlu0 %v915, 16
        %v920 = vpop.permute.xlu0 %919
        %v921 = vsel %vm772, %v920, %v915
        %922 = vrot.lane.b32.xlu0 %v918, 16
        %v923 = vpop.permute.xlu0 %922
        %924 = vrot.lane.b32.xlu0 %v921, 16
        %v925 = vpop.permute.xlu0 %924
        %v926 = vsel %vm772, %v923, %v914
        %v927 = vsel %vm772, %v925, %v915
        %930 = vrot.lane.b32.xlu0 %v926, 127
        %v931 = vpop.permute.xlu0 %930
        %932 = vrot.lane.b32.xlu0 %v927, 127
        %v933 = vpop.permute.xlu0 %932
        %v936 = vsel %vm771, %v931, 0.0
        %v937 = vsel %vm771, %v933, 0.0
        %v938 = vadd.f32 %v914, %v936
        %v939 = vadd.f32 %v915, %v937
        %940 = vrot.lane.b32.xlu0 %v926, 113
        %v941 = vpop.permute.xlu0 %940
        %942 = vrot.lane.b32.xlu0 %v927, 113
        %v943 = vpop.permute.xlu0 %942
        %v946 = vsel %vm797, %v941, 0.0
        %v947 = vsel %vm797, %v943, 0.0
        %v948 = vadd.f32 %v938, %v946
        %v949 = vadd.f32 %v939, %v947
        %950 = vrot.lane.b32.xlu0 %v926, 126
        %v951 = vpop.permute.xlu0 %950
        %952 = vrot.lane.b32.xlu0 %v927, 126
        %v953 = vpop.permute.xlu0 %952
        %v956 = vsel %vm808, %v951, 0.0
        %v957 = vsel %vm808, %v953, 0.0
        %v958 = vadd.f32 %v948, %v956
        %v959 = vadd.f32 %v949, %v957
        %960 = vrot.lane.b32.xlu0 %v926, 114
        %v961 = vpop.permute.xlu0 %960
        %962 = vrot.lane.b32.xlu0 %v927, 114
        %v963 = vpop.permute.xlu0 %962
        %v966 = vsel %vm819, %v961, 0.0
        %v967 = vsel %vm819, %v963, 0.0
        %v968 = vadd.f32 %v958, %v966
        %v969 = vadd.f32 %v959, %v967
        %v970 = vadd.f32 %v625, 1.0
        %v971 = vadd.f32 %v626, 1.0
        %v972 = vsub.f32 %v970, %v846
        %v973 = vsub.f32 %v971, %v847
        %v974 = vadd.f32 %v828, 25.0
        %v975 = vadd.f32 %v829, 25.0
        %v976 = vsub.f32 %v974, %v968
        %v977 = vsub.f32 %v975, %v969
        %v978 = vsub.f32 %v976, %v972
        %v979 = vsub.f32 %v977, %v973
        %v980 = vmul.f32 %v978, 0.041666668
        %v981 = vmul.f32 %v979, 0.041666668
        %v982 = vsub.f32 %v980, %v972
        %v983 = vsub.f32 %v981, %v973
        %vm984 = vcmp.lt.f32.partialorder %v982, 0.8
        %vm985 = vcmp.lt.f32.partialorder %v983, 0.8
        %v986 = vsel %vm984, 0.0, %v982
        %v987 = vsel %vm985, 0.0, %v983
        %v988 = vmul.f32 %v833, %v986
        %v989 = vmul.f32 %v835, %v987
        %v990 = vadd.f32 %v988, 0.0
        %v991 = vadd.f32 %v989, 0.0
        %v992 = vsub.f32 %v647, %v681
        %v993 = vsub.f32 %v648, %v682
        %v994 = vmul.f32 %v992, 1.442695
        %v995 = vpow.pop %v994
        %v996 = vmul.f32 %v993, 1.442695
        %v997 = vpow.pop %v996
        %v998 = vadd.f32 %v836, %v995
        %v999 = vadd.f32 %v837, %v997
        %vm1000 = vcmp.eq.s32.totalorder %v619, 1
        %vm1001 = vcmp.eq.s32.totalorder %v620, 1
        %v1002 = vsel %vm1000, %v647, 0.0
        %v1003 = vsel %vm1001, %v648, 0.0
        %v1004 = vadd.f32 %v842, %v1002
        %v1005 = vadd.f32 %v843, %v1003
        %vm1006 = vcmp.eq.f32.partialorder %v679, 1.0
        %vm1007 = vcmp.eq.f32.partialorder %v680, 1.0
        %v1008 = vsel %vm1006, %v625, 0.0
        %v1009 = vsel %vm1007, %v626, 0.0
        %vm1010 = vcmp.eq.f32.partialorder %v633, 1.0
        %v1011 = vsel %vm1010, %v632, 0.0
        %vm1012 = vcmp.eq.f32.partialorder %v686, 1.0
        %v1013 = vsel %vm1012, %v642, 0.0
        %v1014 = vrot.slane %v1008, 1
        %v1015 = vrot.slane %v1009, 1
        %v1016 = vsel %vm691, %v1014, %v1015
        %v1017 = vsel %vm691, %v1015, %v1014
        %v1018 = vsel %vm687, %v1016, 0.0
        %v1019 = vsel %vm688, %v1017, 0.0
        %v1020 = vadd.f32 %v1008, %v1018
        %v1021 = vadd.f32 %v1009, %v1019
        %v1022 = vrot.slane %v1008, 7
        %v1023 = vrot.slane %v1009, 7
        %v1024 = vsel %vm702, %v1022, %v1023
        %v1025 = vsel %vm702, %v1023, %v1022
        %v1026 = vsel %vm698, %v1025, 0.0
        %v1027 = vsel %vm699, %v1024, 0.0
        %v1028 = vadd.f32 %v1020, %v1026
        %v1029 = vadd.f32 %v1021, %v1027
        %v1030 = vrot.slane %v1008, 2
        %v1031 = vrot.slane %v1009, 2
        %v1032 = vsel %vm713, %v1030, %v1031
        %v1033 = vsel %vm713, %v1031, %v1030
        %v1034 = vsel %vm709, %v1032, 0.0
        %v1035 = vsel %vm710, %v1033, 0.0
        %v1036 = vadd.f32 %v1028, %v1034
        %v1037 = vadd.f32 %v1029, %v1035
        %v1038 = vrot.slane %v1008, 6
        %v1039 = vrot.slane %v1009, 6
        %v1040 = vsel %vm724, %v1038, %v1039
        %v1041 = vsel %vm724, %v1039, %v1038
        %v1042 = vsel %vm720, %v1041, 0.0
        %v1043 = vsel %vm721, %v1040, 0.0
        %v1044 = vadd.f32 %v1036, %v1042
        %v1045 = vadd.f32 %v1037, %v1043
        %v1046 = vlaneseq
        %v1047 = vshrl.u32 %v1046, 7
        %v1048 = vsub.s32 0, %v1047
        %v1049 = vrot.slane %v1011, %v1048
        %v1050 = vsel %vm731, %v1049, 0.0
        %v1051 = vsel %vm732, %v1049, 0.0
        %v1052 = vadd.f32 %v1044, %v1050
        %v1053 = vadd.f32 %v1045, %v1051
        %v1054 = vlaneseq
        %v1055 = vshrl.u32 %v1054, 7
        %v1056 = vsub.s32 0, %v1055
        %v1057 = vrot.slane %v1013, %v1056
        %v1058 = vsel %vm741, %v1057, 0.0
        %v1059 = vsel %vm742, %v1057, 0.0
        %v1060 = vadd.f32 %v1052, %v1058
        %v1061 = vadd.f32 %v1053, %v1059
        %v1062 = vlaneseq
        %v1063 = vshrl.u32 %v1062, 7
        %v1064 = vsub.s32 1, %v1063
        %v1065 = vrot.slane %v1011, %v1064
        %v1066 = vsel %vm751, %v1065, 0.0
        %v1067 = vsel %vm752, %v1065, 0.0
        %v1068 = vadd.f32 %v1060, %v1066
        %v1069 = vadd.f32 %v1061, %v1067
        %v1070 = vlaneseq
        %v1071 = vshrl.u32 %v1070, 7
        %v1072 = vsub.s32 1, %v1071
        %v1073 = vrot.slane %v1013, %v1072
        %v1074 = vsel %vm761, %v1073, 0.0
        %v1075 = vsel %vm762, %v1073, 0.0
        %v1076 = vadd.f32 %v1068, %v1074
        %v1077 = vadd.f32 %v1069, %v1075
        %1078 = vrot.lane.b32.xlu0 %v1076, 16
        %v1079 = vpop.permute.xlu0 %1078
        %v1080 = vsel %vm772, %v1079, %v1076
        %1081 = vrot.lane.b32.xlu0 %v1077, 16
        %v1082 = vpop.permute.xlu0 %1081
        %v1083 = vsel %vm772, %v1082, %v1077
        %1084 = vrot.lane.b32.xlu0 %v1080, 16
        %v1085 = vpop.permute.xlu0 %1084
        %1086 = vrot.lane.b32.xlu0 %v1083, 16
        %v1087 = vpop.permute.xlu0 %1086
        %v1088 = vsel %vm772, %v1085, %v1076
        %v1089 = vsel %vm772, %v1087, %v1077
        %1092 = vrot.lane.b32.xlu0 %v1088, 127
        %v1093 = vpop.permute.xlu0 %1092
        %1094 = vrot.lane.b32.xlu0 %v1089, 127
        %v1095 = vpop.permute.xlu0 %1094
        %v1098 = vsel %vm771, %v1093, 0.0
        %v1099 = vsel %vm771, %v1095, 0.0
        %v1100 = vadd.f32 %v1076, %v1098
        %v1101 = vadd.f32 %v1077, %v1099
        %1102 = vrot.lane.b32.xlu0 %v1088, 113
        %v1103 = vpop.permute.xlu0 %1102
        %1104 = vrot.lane.b32.xlu0 %v1089, 113
        %v1105 = vpop.permute.xlu0 %1104
        %v1108 = vsel %vm797, %v1103, 0.0
        %v1109 = vsel %vm797, %v1105, 0.0
        %v1110 = vadd.f32 %v1100, %v1108
        %v1111 = vadd.f32 %v1101, %v1109
        %1112 = vrot.lane.b32.xlu0 %v1088, 126
        %v1113 = vpop.permute.xlu0 %1112
        %1114 = vrot.lane.b32.xlu0 %v1089, 126
        %v1115 = vpop.permute.xlu0 %1114
        %v1118 = vsel %vm808, %v1113, 0.0
        %v1119 = vsel %vm808, %v1115, 0.0
        %v1120 = vadd.f32 %v1110, %v1118
        %v1121 = vadd.f32 %v1111, %v1119
        %1122 = vrot.lane.b32.xlu0 %v1088, 114
        %v1123 = vpop.permute.xlu0 %1122
        %1124 = vrot.lane.b32.xlu0 %v1089, 114
        %v1125 = vpop.permute.xlu0 %1124
        %v1128 = vsel %vm819, %v1123, 0.0
        %v1129 = vsel %vm819, %v1125, 0.0
        %v1130 = vadd.f32 %v1120, %v1128
        %v1131 = vadd.f32 %v1121, %v1129
        %v1132 = vsub.f32 %v970, %v1008
        %v1133 = vsub.f32 %v971, %v1009
        %v1134 = vsub.f32 %v974, %v1130
        %v1135 = vsub.f32 %v975, %v1131
        %v1136 = vsub.f32 %v1134, %v1132
        %v1137 = vsub.f32 %v1135, %v1133
        %v1138 = vmul.f32 %v1136, 0.041666668
        %v1139 = vmul.f32 %v1137, 0.041666668
        %v1140 = vsub.f32 %v1138, %v1132
        %v1141 = vsub.f32 %v1139, %v1133
        %vm1142 = vcmp.lt.f32.partialorder %v1140, 0.8
        %vm1143 = vcmp.lt.f32.partialorder %v1141, 0.8
        %v1144 = vsel %vm1142, 0.0, %v1140
        %v1145 = vsel %vm1143, 0.0, %v1141
        %v1146 = vmul.f32 %v995, %v1144
        %v1147 = vmul.f32 %v997, %v1145
        %v1148 = vadd.f32 %v990, %v1146
        %v1149 = vadd.f32 %v991, %v1147
        %v1150 = vsub.f32 %v661, %v681
        %v1151 = vsub.f32 %v662, %v682
        %v1152 = vmul.f32 %v1150, 1.442695
        %v1153 = vpow.pop %v1152
        %v1154 = vmul.f32 %v1151, 1.442695
        %v1155 = vpow.pop %v1154
        %v1156 = vadd.f32 %v998, %v1153
        %v1157 = vadd.f32 %v999, %v1155
        %vm1158 = vcmp.eq.s32.totalorder %v619, 2
        %vm1159 = vcmp.eq.s32.totalorder %v620, 2
        %v1160 = vsel %vm1158, %v661, 0.0
        %v1161 = vsel %vm1159, %v662, 0.0
        %v1162 = vadd.f32 %v1004, %v1160
        %v1163 = vadd.f32 %v1005, %v1161
        %vm1164 = vcmp.eq.f32.partialorder %v679, 2.0
        %vm1165 = vcmp.eq.f32.partialorder %v680, 2.0
        %v1166 = vsel %vm1164, %v625, 0.0
        %v1167 = vsel %vm1165, %v626, 0.0
        %vm1168 = vcmp.eq.f32.partialorder %v633, 2.0
        %v1169 = vsel %vm1168, %v632, 0.0
        %vm1170 = vcmp.eq.f32.partialorder %v686, 2.0
        %v1171 = vsel %vm1170, %v642, 0.0
        %v1172 = vrot.slane %v1166, 1
        %v1173 = vrot.slane %v1167, 1
        %v1174 = vsel %vm691, %v1172, %v1173
        %v1175 = vsel %vm691, %v1173, %v1172
        %v1176 = vsel %vm687, %v1174, 0.0
        %v1177 = vsel %vm688, %v1175, 0.0
        %v1178 = vadd.f32 %v1166, %v1176
        %v1179 = vadd.f32 %v1167, %v1177
        %v1180 = vrot.slane %v1166, 7
        %v1181 = vrot.slane %v1167, 7
        %v1182 = vsel %vm702, %v1180, %v1181
        %v1183 = vsel %vm702, %v1181, %v1180
        %v1184 = vsel %vm698, %v1183, 0.0
        %v1185 = vsel %vm699, %v1182, 0.0
        %v1186 = vadd.f32 %v1178, %v1184
        %v1187 = vadd.f32 %v1179, %v1185
        %v1188 = vrot.slane %v1166, 2
        %v1189 = vrot.slane %v1167, 2
        %v1190 = vsel %vm713, %v1188, %v1189
        %v1191 = vsel %vm713, %v1189, %v1188
        %v1192 = vsel %vm709, %v1190, 0.0
        %v1193 = vsel %vm710, %v1191, 0.0
        %v1194 = vadd.f32 %v1186, %v1192
        %v1195 = vadd.f32 %v1187, %v1193
        %v1196 = vrot.slane %v1166, 6
        %v1197 = vrot.slane %v1167, 6
        %v1198 = vsel %vm724, %v1196, %v1197
        %v1199 = vsel %vm724, %v1197, %v1196
        %v1200 = vsel %vm720, %v1199, 0.0
        %v1201 = vsel %vm721, %v1198, 0.0
        %v1202 = vadd.f32 %v1194, %v1200
        %v1203 = vadd.f32 %v1195, %v1201
        %v1204 = vlaneseq
        %v1205 = vshrl.u32 %v1204, 7
        %v1206 = vsub.s32 0, %v1205
        %v1207 = vrot.slane %v1169, %v1206
        %v1208 = vsel %vm731, %v1207, 0.0
        %v1209 = vsel %vm732, %v1207, 0.0
        %v1210 = vadd.f32 %v1202, %v1208
        %v1211 = vadd.f32 %v1203, %v1209
        %v1212 = vlaneseq
        %v1213 = vshrl.u32 %v1212, 7
        %v1214 = vsub.s32 0, %v1213
        %v1215 = vrot.slane %v1171, %v1214
        %v1216 = vsel %vm741, %v1215, 0.0
        %v1217 = vsel %vm742, %v1215, 0.0
        %v1218 = vadd.f32 %v1210, %v1216
        %v1219 = vadd.f32 %v1211, %v1217
        %v1220 = vlaneseq
        %v1221 = vshrl.u32 %v1220, 7
        %v1222 = vsub.s32 1, %v1221
        %v1223 = vrot.slane %v1169, %v1222
        %v1224 = vsel %vm751, %v1223, 0.0
        %v1225 = vsel %vm752, %v1223, 0.0
        %v1226 = vadd.f32 %v1218, %v1224
        %v1227 = vadd.f32 %v1219, %v1225
        %v1228 = vlaneseq
        %v1229 = vshrl.u32 %v1228, 7
        %v1230 = vsub.s32 1, %v1229
        %v1231 = vrot.slane %v1171, %v1230
        %v1232 = vsel %vm761, %v1231, 0.0
        %v1233 = vsel %vm762, %v1231, 0.0
        %v1234 = vadd.f32 %v1226, %v1232
        %v1235 = vadd.f32 %v1227, %v1233
        %1236 = vrot.lane.b32.xlu0 %v1234, 16
        %v1237 = vpop.permute.xlu0 %1236
        %v1238 = vsel %vm772, %v1237, %v1234
        %1239 = vrot.lane.b32.xlu0 %v1235, 16
        %v1240 = vpop.permute.xlu0 %1239
        %v1241 = vsel %vm772, %v1240, %v1235
        %1242 = vrot.lane.b32.xlu0 %v1238, 16
        %v1243 = vpop.permute.xlu0 %1242
        %1244 = vrot.lane.b32.xlu0 %v1241, 16
        %v1245 = vpop.permute.xlu0 %1244
        %v1246 = vsel %vm772, %v1243, %v1234
        %v1247 = vsel %vm772, %v1245, %v1235
        %1250 = vrot.lane.b32.xlu0 %v1246, 127
        %v1251 = vpop.permute.xlu0 %1250
        %1252 = vrot.lane.b32.xlu0 %v1247, 127
        %v1253 = vpop.permute.xlu0 %1252
        %v1256 = vsel %vm771, %v1251, 0.0
        %v1257 = vsel %vm771, %v1253, 0.0
        %v1258 = vadd.f32 %v1234, %v1256
        %v1259 = vadd.f32 %v1235, %v1257
        %1260 = vrot.lane.b32.xlu0 %v1246, 113
        %v1261 = vpop.permute.xlu0 %1260
        %1262 = vrot.lane.b32.xlu0 %v1247, 113
        %v1263 = vpop.permute.xlu0 %1262
        %v1266 = vsel %vm797, %v1261, 0.0
        %v1267 = vsel %vm797, %v1263, 0.0
        %v1268 = vadd.f32 %v1258, %v1266
        %v1269 = vadd.f32 %v1259, %v1267
        %1270 = vrot.lane.b32.xlu0 %v1246, 126
        %v1271 = vpop.permute.xlu0 %1270
        %1272 = vrot.lane.b32.xlu0 %v1247, 126
        %v1273 = vpop.permute.xlu0 %1272
        %v1276 = vsel %vm808, %v1271, 0.0
        %v1277 = vsel %vm808, %v1273, 0.0
        %v1278 = vadd.f32 %v1268, %v1276
        %v1279 = vadd.f32 %v1269, %v1277
        %1280 = vrot.lane.b32.xlu0 %v1246, 114
        %v1281 = vpop.permute.xlu0 %1280
        %1282 = vrot.lane.b32.xlu0 %v1247, 114
        %v1283 = vpop.permute.xlu0 %1282
        %v1286 = vsel %vm819, %v1281, 0.0
        %v1287 = vsel %vm819, %v1283, 0.0
        %v1288 = vadd.f32 %v1278, %v1286
        %v1289 = vadd.f32 %v1279, %v1287
        %v1290 = vsub.f32 %v970, %v1166
        %v1291 = vsub.f32 %v971, %v1167
        %v1292 = vsub.f32 %v974, %v1288
        %v1293 = vsub.f32 %v975, %v1289
        %v1294 = vsub.f32 %v1292, %v1290
        %v1295 = vsub.f32 %v1293, %v1291
        %v1296 = vmul.f32 %v1294, 0.041666668
        %v1297 = vmul.f32 %v1295, 0.041666668
        %v1298 = vsub.f32 %v1296, %v1290
        %v1299 = vsub.f32 %v1297, %v1291
        %vm1300 = vcmp.lt.f32.partialorder %v1298, 0.8
        %vm1301 = vcmp.lt.f32.partialorder %v1299, 0.8
        %v1302 = vsel %vm1300, 0.0, %v1298
        %v1303 = vsel %vm1301, 0.0, %v1299
        %v1304 = vmul.f32 %v1153, %v1302
        %v1305 = vmul.f32 %v1155, %v1303
        %v1306 = vadd.f32 %v1148, %v1304
        %v1307 = vadd.f32 %v1149, %v1305
        %v1308 = vsub.f32 %v675, %v681
        %v1309 = vsub.f32 %v676, %v682
        %v1310 = vmul.f32 %v1308, 1.442695
        %v1311 = vpow.pop %v1310
        %v1312 = vmul.f32 %v1309, 1.442695
        %v1313 = vpow.pop %v1312
        %v1314 = vadd.f32 %v1156, %v1311
        %v1315 = vadd.f32 %v1157, %v1313
        %vm1316 = vcmp.eq.s32.totalorder %v619, 3
        %vm1317 = vcmp.eq.s32.totalorder %v620, 3
        %v1318 = vsel %vm1316, %v675, 0.0
        %v1319 = vsel %vm1317, %v676, 0.0
        %v1320 = vadd.f32 %v1162, %v1318
        %v1321 = vadd.f32 %v1163, %v1319
        %vm1322 = vcmp.eq.f32.partialorder %v679, 3.0
        %vm1323 = vcmp.eq.f32.partialorder %v680, 3.0
        %v1324 = vsel %vm1322, %v625, 0.0
        %v1325 = vsel %vm1323, %v626, 0.0
        %vm1326 = vcmp.eq.f32.partialorder %v633, 3.0
        %v1327 = vsel %vm1326, %v632, 0.0
        %vm1328 = vcmp.eq.f32.partialorder %v686, 3.0
        %v1329 = vsel %vm1328, %v642, 0.0
        %v1330 = vrot.slane %v1324, 1
        %v1331 = vrot.slane %v1325, 1
        %v1332 = vsel %vm691, %v1330, %v1331
        %v1333 = vsel %vm691, %v1331, %v1330
        %v1334 = vsel %vm687, %v1332, 0.0
        %v1335 = vsel %vm688, %v1333, 0.0
        %v1336 = vadd.f32 %v1324, %v1334
        %v1337 = vadd.f32 %v1325, %v1335
        %v1338 = vrot.slane %v1324, 7
        %v1339 = vrot.slane %v1325, 7
        %v1340 = vsel %vm702, %v1338, %v1339
        %v1341 = vsel %vm702, %v1339, %v1338
        %v1342 = vsel %vm698, %v1341, 0.0
        %v1343 = vsel %vm699, %v1340, 0.0
        %v1344 = vadd.f32 %v1336, %v1342
        %v1345 = vadd.f32 %v1337, %v1343
        %v1346 = vrot.slane %v1324, 2
        %v1347 = vrot.slane %v1325, 2
        %v1348 = vsel %vm713, %v1346, %v1347
        %v1349 = vsel %vm713, %v1347, %v1346
        %v1350 = vsel %vm709, %v1348, 0.0
        %v1351 = vsel %vm710, %v1349, 0.0
        %v1352 = vadd.f32 %v1344, %v1350
        %v1353 = vadd.f32 %v1345, %v1351
        %v1354 = vrot.slane %v1324, 6
        %v1355 = vrot.slane %v1325, 6
        %v1356 = vsel %vm724, %v1354, %v1355
        %v1357 = vsel %vm724, %v1355, %v1354
        %v1358 = vsel %vm720, %v1357, 0.0
        %v1359 = vsel %vm721, %v1356, 0.0
        %v1360 = vadd.f32 %v1352, %v1358
        %v1361 = vadd.f32 %v1353, %v1359
        %v1362 = vlaneseq
        %v1363 = vshrl.u32 %v1362, 7
        %v1364 = vsub.s32 0, %v1363
        %v1365 = vrot.slane %v1327, %v1364
        %v1366 = vsel %vm731, %v1365, 0.0
        %v1367 = vsel %vm732, %v1365, 0.0
        %v1368 = vadd.f32 %v1360, %v1366
        %v1369 = vadd.f32 %v1361, %v1367
        %v1370 = vlaneseq
        %v1371 = vshrl.u32 %v1370, 7
        %v1372 = vsub.s32 0, %v1371
        %v1373 = vrot.slane %v1329, %v1372
        %v1374 = vsel %vm741, %v1373, 0.0
        %v1375 = vsel %vm742, %v1373, 0.0
        %v1376 = vadd.f32 %v1368, %v1374
        %v1377 = vadd.f32 %v1369, %v1375
        %v1378 = vlaneseq
        %v1379 = vshrl.u32 %v1378, 7
        %v1380 = vsub.s32 1, %v1379
        %v1381 = vrot.slane %v1327, %v1380
        %v1382 = vsel %vm751, %v1381, 0.0
        %v1383 = vsel %vm752, %v1381, 0.0
        %v1384 = vadd.f32 %v1376, %v1382
        %v1385 = vadd.f32 %v1377, %v1383
        %v1386 = vlaneseq
        %v1387 = vshrl.u32 %v1386, 7
        %v1388 = vsub.s32 1, %v1387
        %v1389 = vrot.slane %v1329, %v1388
        %v1390 = vsel %vm761, %v1389, 0.0
        %v1391 = vsel %vm762, %v1389, 0.0
        %v1392 = vadd.f32 %v1384, %v1390
        %v1393 = vadd.f32 %v1385, %v1391
        %1394 = vrot.lane.b32.xlu0 %v1392, 16
        %v1395 = vpop.permute.xlu0 %1394
        %v1396 = vsel %vm772, %v1395, %v1392
        %1397 = vrot.lane.b32.xlu0 %v1393, 16
        %v1398 = vpop.permute.xlu0 %1397
        %v1399 = vsel %vm772, %v1398, %v1393
        %1400 = vrot.lane.b32.xlu0 %v1396, 16
        %v1401 = vpop.permute.xlu0 %1400
        %1402 = vrot.lane.b32.xlu0 %v1399, 16
        %v1403 = vpop.permute.xlu0 %1402
        %v1404 = vsel %vm772, %v1401, %v1392
        %v1405 = vsel %vm772, %v1403, %v1393
        %1408 = vrot.lane.b32.xlu0 %v1404, 127
        %v1409 = vpop.permute.xlu0 %1408
        %1410 = vrot.lane.b32.xlu0 %v1405, 127
        %v1411 = vpop.permute.xlu0 %1410
        %v1414 = vsel %vm771, %v1409, 0.0
        %v1415 = vsel %vm771, %v1411, 0.0
        %v1416 = vadd.f32 %v1392, %v1414
        %v1417 = vadd.f32 %v1393, %v1415
        %1418 = vrot.lane.b32.xlu0 %v1404, 113
        %v1419 = vpop.permute.xlu0 %1418
        %1420 = vrot.lane.b32.xlu0 %v1405, 113
        %v1421 = vpop.permute.xlu0 %1420
        %v1424 = vsel %vm797, %v1419, 0.0
        %v1425 = vsel %vm797, %v1421, 0.0
        %v1426 = vadd.f32 %v1416, %v1424
        %v1427 = vadd.f32 %v1417, %v1425
        %1428 = vrot.lane.b32.xlu0 %v1404, 126
        %v1429 = vpop.permute.xlu0 %1428
        %1430 = vrot.lane.b32.xlu0 %v1405, 126
        %v1431 = vpop.permute.xlu0 %1430
        %v1434 = vsel %vm808, %v1429, 0.0
        %v1435 = vsel %vm808, %v1431, 0.0
        %v1436 = vadd.f32 %v1426, %v1434
        %v1437 = vadd.f32 %v1427, %v1435
        %1438 = vrot.lane.b32.xlu0 %v1404, 114
        %v1439 = vpop.permute.xlu0 %1438
        %1440 = vrot.lane.b32.xlu0 %v1405, 114
        %v1441 = vpop.permute.xlu0 %1440
        %v1444 = vsel %vm819, %v1439, 0.0
        %v1445 = vsel %vm819, %v1441, 0.0
        %v1446 = vadd.f32 %v1436, %v1444
        %v1447 = vadd.f32 %v1437, %v1445
        %v1448 = vsub.f32 %v970, %v1324
        %v1449 = vsub.f32 %v971, %v1325
        %v1450 = vsub.f32 %v974, %v1446
        %v1451 = vsub.f32 %v975, %v1447
        %v1452 = vsub.f32 %v1450, %v1448
        %v1453 = vsub.f32 %v1451, %v1449
        %v1454 = vmul.f32 %v1452, 0.041666668
        %v1455 = vmul.f32 %v1453, 0.041666668
        %v1456 = vsub.f32 %v1454, %v1448
        %v1457 = vsub.f32 %v1455, %v1449
        %vm1458 = vcmp.lt.f32.partialorder %v1456, 0.8
        %vm1459 = vcmp.lt.f32.partialorder %v1457, 0.8
        %v1460 = vsel %vm1458, 0.0, %v1456
        %v1461 = vsel %vm1459, 0.0, %v1457
        %v1462 = vmul.f32 %v1311, %v1460
        %v1463 = vmul.f32 %v1313, %v1461
        %v1464 = vadd.f32 %v1306, %v1462
        %v1465 = vadd.f32 %v1307, %v1463
        %v1466 = vrcp.pop %v1314
        %v1467 = vrcp.pop %v1315
        %v1468 = vmul.f32 %v1464, %v625
        %v1469 = vmul.f32 %v1465, %v626
        %v1470 = vmul.f32 %v1468, %v1466
        %v1471 = vmul.f32 %v1469, %v1467
        %v1472 = vsub.f32 %v1320, %v681
        %v1473 = vsub.f32 %v1321, %v682
        %v1474 = vlog2.pop %v1314
        %v1475 = vmul.f32 %v1474, 0.6931472
        %v1476 = vlog2.pop %v1315
        %v1477 = vmul.f32 %v1476, 0.6931472
        %v1478 = vsub.f32 %v1472, %v1475
        %v1479 = vsub.f32 %v1473, %v1477
        %v1480 = vld [vmem:[#allocation4] sm:$0x1]
        %vm1481 = vcmask 130048
        %v1482 = vsel %vm1481, %v1470, 0.0
        %v1483 = vsel %vm1481, %v1471, 0.0
        %v1484 = vadd.f32 %v1482, %v1483
        %v1485 = vrot.slane %v1484, 4
        %v1486 = vadd.f32 %v1484, %v1485
        %v1487 = vrot.slane %v1486, 2
        %v1488 = vadd.f32 %v1486, %v1487
        %v1489 = vrot.slane %v1488, 1
        %v1490 = vadd.f32 %v1488, %v1489
        %v1491 = vadd.f32 %v1480, %v1490
        %vm1492 = vcmask 122880
        %1493 = vst.msk [vmem:[#allocation4] sm:$0x1] %vm1492, %v1491
        %v1494 = vld [vmem:[#allocation5] sm:$0x1]
        %v1495 = vsub.f32 0.0, %v1478
        %v1496 = vsub.f32 0.0, %v1479
        %v1497 = vmul.f32 %v1495, %v625
        %v1498 = vmul.f32 %v1496, %v626
        %v1499 = vsel %vm1481, %v1497, 0.0
        %v1500 = vsel %vm1481, %v1498, 0.0
        %v1501 = vadd.f32 %v1499, %v1500
        %v1502 = vrot.slane %v1501, 4
        %v1503 = vadd.f32 %v1501, %v1502
        %v1504 = vrot.slane %v1503, 2
        %v1505 = vadd.f32 %v1503, %v1504
        %v1506 = vrot.slane %v1505, 1
        %v1507 = vadd.f32 %v1505, %v1506
        %v1508 = vadd.f32 %v1494, %v1507
        %1509 = vst.msk [vmem:[#allocation5] sm:$0x1] %vm1492, %v1508
        %v1510 = vld [vmem:[#allocation6] sm:$0x1]
        %v1511 = vsel %vm1481, %v625, 0.0
        %v1512 = vsel %vm1481, %v626, 0.0
        %v1513 = vadd.f32 %v1511, %v1512
        %v1514 = vrot.slane %v1513, 4
        %v1515 = vadd.f32 %v1513, %v1514
        %v1516 = vrot.slane %v1515, 2
        %v1517 = vadd.f32 %v1515, %v1516
        %v1518 = vrot.slane %v1517, 1
        %v1519 = vadd.f32 %v1517, %v1518
        %v1520 = vadd.f32 %v1510, %v1519
        %1521 = vst.msk [vmem:[#allocation6] sm:$0x1] %vm1492, %v1520
        %vm1522 = vcmask 130054
        %1523 = vst.msk [vmem:[#allocation2 - $0x6] sm:$0xc0] %vm1522, %v626
        %1524 = vst.msk [vmem:[#allocation3 - $0x6] sm:$0xc0] %vm1522, %v680
        // Predicated region
        $region73: #{tpu_custom_call.1} parent=43 // pred_check
          %p1525 = pneg %p584
        $region74: #{tpu_custom_call.1} parent=43 // pred_check_branch
          %1527 = sbr.rel (%p1525) target = $region76
        $region75: #{tpu_custom_call.1} parent=43 // pred_region
          %v1528 = vld [vmem:[#allocation4] sm:$0x1]
          %v1529 = vsel %vm1492, %v1528, 0.0
          %1530 = vadd.xlane.f32.xlu0 %v1529
          %v1531 = vpop.xlane.xlu0 %1530
          %v1532 = vld [vmem:[#allocation5] sm:$0x1]
          %v1533 = vsel %vm1492, %v1532, 0.0
          %1534 = vadd.xlane.f32.xlu0 %v1533
          %v1535 = vpop.xlane.xlu0 %1534
          %v1536 = vld [vmem:[#allocation6] sm:$0x1]
          %v1537 = vsel %vm1492, %v1536, 0.0
          %1538 = vadd.xlane.f32.xlu0 %v1537
          %v1539 = vpop.xlane.xlu0 %1538
          %vm1540 = vcmp.eq.s32.totalorder %v631, 0
          %v1541 = vsel %vm1540, %v1531, 0.0
          %vm1542 = vcmp.eq.s32.totalorder %v631, 1
          %v1543 = vsel %vm1542, %v1535, 0.0
          %v1544 = vadd.f32 %v1541, %v1543
          %vm1545 = vcmp.eq.s32.totalorder %v631, 2
          %v1546 = vsel %vm1545, %v1539, 0.0
          %v1547 = vadd.f32 %v1544, %v1546
          %1548 = vst [vmem:[%s559] sm:$0x1] %v1547
        $region76: #{tpu_custom_call.1} parent=43 // pred_fallthru
          _
        %s1549 = sand.u32 %s269, 1
        %s1550 = scalar_lea.sflag [#allocation9], %s1549
        %s1551 = sand.u32 %s269, 1
        %s1552 = scalar_lea.vmem [#allocation18], %s1551
        // Predicated region
        $region77: #{tpu_custom_call.1} parent=43 // pred_check
          %p1553 = pneg %p279
        $region78: #{tpu_custom_call.1} parent=43 // pred_check_branch
          %1555 = sbr.rel (%p1553) target = $region80
        $region79: #{tpu_custom_call.1} parent=43 // pred_region
          %s1556 = sadd.s32 %s37, %s38
          %s1558 = ssub.s32 16, 16
          %1559 = vsyncadd %s1550, %s1558
          %s1560 = smul.addr %s1556, 16
          %s1561 = scalar_lea.hbm %s6, %s1560
          %s1563 = sshll.u32 %s1552, 4
          %s1564 = int_to_ptr.vmem [resolvable:$true] %s1563
          %1566 = dma.vmem_to_hbm [thread:$0]  %s1564, 16, %s1561, %s1550
        $region80: #{tpu_custom_call.1} parent=43 // pred_fallthru
          _
      $region44: #{tpu_custom_call.1} parent=5 // pred_fallthru
        _
      %p1567 = scmp.le.s32.totalorder 2, %s27
      // Predicated region
      $region81: #{tpu_custom_call.1} parent=5 // pred_check
        %p1568 = pneg %p1567
      $region82: #{tpu_custom_call.1} parent=5 // pred_check_branch
        %1570 = sbr.rel (%p1568) target = $region84
      $region83: #{tpu_custom_call.1} parent=5 // pred_region
        %s1571 = ssub.s32 %s27, 2
        // Predicated region
        $region85: #{tpu_custom_call.1} parent=83 // pred_check
          %p1572 = pneg %p285
        $region86: #{tpu_custom_call.1} parent=83 // pred_check_branch
          %1574 = sbr.rel (%p1572) target = $region88
        $region87: #{tpu_custom_call.1} parent=83 // pred_region
          %s1575 = sand.u32 %s270, 1
          %s1576 = scalar_lea.sflag [#allocation9], %s1575
          %s1577 = sand.u32 %s270, 1
          %s1578 = scalar_lea.vmem [#allocation18], %s1577
          %1579 = dma.done %s1576, 16
        $region88: #{tpu_custom_call.1} parent=83 // pred_fallthru
          _
      $region84: #{tpu_custom_call.1} parent=5 // pred_fallthru
        _
    $region6: #{tpu_custom_call.1} parent=1 // loop_footer
      %s31 = sadd.s32 1, %s27
    $region7: #{tpu_custom_call.1} parent=1 // loop_footer_branch
      %26 = sbr.rel target = $region3
    $region8: #{tpu_custom_call.1} parent=1 // loop_exit
      _
    %1580 = vsyncpa [#allocation8], 1
    %s1581 = scalar_lea.sflag [#allocation8], 1
    %1582 = vsyncpa %s1581, 1
    %1583 = vsyncpa [#allocation11], 1
    %s1584 = scalar_lea.sflag [#allocation11], 1
    %1585 = vsyncpa %s1584, 1
    %1586 = vsyncpa [#allocation14], 1
    %s1587 = scalar_lea.sflag [#allocation14], 1
    %1588 = vsyncpa %s1587, 1
    %1589 = vsyncpa [#allocation17], 1
    %s1590 = scalar_lea.sflag [#allocation17], 1
    %1591 = vsyncpa %s1590, 1
    %1592 = vsyncpa [#allocation9], 1
    %s1593 = scalar_lea.sflag [#allocation9], 1
    %1594 = vsyncpa %s1593, 1

</llo_original>
